<compile_context>
chip_gen: v7x
topology: tpu7x:2x2x1
jax: 0.10.0
libtpu: 0.0.40
codegen_flags: <defaults>
</compile_context>

<pallas_src>
import functools

import jax
import jax.numpy as jnp
from jax.experimental import pallas as pl
from jax.experimental.pallas import tpu as pltpu


# ----------------------------------------------------------------------------
# In-kernel helpers (pure jnp on values already loaded from VMEM refs)
# ----------------------------------------------------------------------------
def _layernorm(x, g, b, eps=1e-5):
    mu = jnp.mean(x, axis=-1, keepdims=True)
    var = jnp.mean((x - mu) ** 2, axis=-1, keepdims=True)
    return (x - mu) * jax.lax.rsqrt(var + eps) * g + b


def _mha(x, wqkv, bqkv, wo, bo, *, batch, seq, n_heads):
    """Multi-head self-attention on a [batch*seq, F] slab.

    Heads (and batch elements) are gathered into a single leading batch axis so
    the QK^T and PV products are two batched dot_generals instead of
    2*batch*n_heads tiny per-head matmuls.
    """
    _, F = x.shape
    dh = F // n_heads
    scale = 1.0 / (dh ** 0.5)

    qkv = jnp.dot(x, wqkv, preferred_element_type=jnp.float32) + bqkv      # [R, 3F]
    q_all, k_all, v_all = qkv[:, 0:F], qkv[:, F:2 * F], qkv[:, 2 * F:3 * F]

    qs, ks, vs = [], [], []
    for b in range(batch):
        r0 = b * seq
        for h in range(n_heads):
            c0 = h * dh
            qs.append(q_all[r0:r0 + seq, c0:c0 + dh])
            ks.append(k_all[r0:r0 + seq, c0:c0 + dh])
            vs.append(v_all[r0:r0 + seq, c0:c0 + dh])
    qh = jnp.stack(qs, axis=0)                                             # [B*H, S, dh]
    kh = jnp.stack(ks, axis=0)
    vh = jnp.stack(vs, axis=0)

    s = jnp.einsum('nqd,nkd->nqk', qh, kh,
                   preferred_element_type=jnp.float32) * scale             # [B*H, S, S]
    s = s - jnp.max(s, axis=-1, keepdims=True)
    p = jnp.exp(s)
    p = p * pl.reciprocal(jnp.sum(p, axis=-1, keepdims=True), approx=True)
    o = jnp.einsum('nqk,nkd->nqd', p, vh,
                   preferred_element_type=jnp.float32)                     # [B*H, S, dh]

    rows = []
    for b in range(batch):
        rows.append(jnp.concatenate(
            [o[b * n_heads + h] for h in range(n_heads)], axis=-1))        # [S, F]
    attn = jnp.concatenate(rows, axis=0)                                   # [R, F]
    return jnp.dot(attn, wo, preferred_element_type=jnp.float32) + bo


def _transformer_block(x, p, *, batch, seq, n_heads):
    """Pre-LN transformer encoder block (MHA + ReLU FFN) on a [batch*seq, F] slab."""
    h = _layernorm(x, p["ln1g"], p["ln1b"])
    x = x + _mha(h, p["wqkv"], p["bqkv"], p["wo"], p["bo"],
                 batch=batch, seq=seq, n_heads=n_heads)
    h2 = _layernorm(x, p["ln2g"], p["ln2b"])
    ff = jnp.dot(h2, p["w1"], preferred_element_type=jnp.float32) + p["b1"]
    ff = jnp.maximum(ff, 0.0)                                              # ReLU
    ff = jnp.dot(ff, p["w2"], preferred_element_type=jnp.float32) + p["b2"]
    return x + ff


# ----------------------------------------------------------------------------
# The single fused kernel: embed -> backbone block -> proj -> VAE block ->
# mean|logvar head -> reparameterization.  Everything VMEM resident.
# ----------------------------------------------------------------------------
def fused_vae_kernel(
    x_ref, pos_ref,
    embed_w_ref, embed_b_ref,
    bb_wqkv_ref, bb_bqkv_ref, bb_wo_ref, bb_bo_ref,
    bb_ln1g_ref, bb_ln1b_ref, bb_ln2g_ref, bb_ln2b_ref,
    bb_w1_ref, bb_b1_ref, bb_w2_ref, bb_b2_ref,
    proj_w_ref, proj_b_ref, tok_ref,
    v_wqkv_ref, v_bqkv_ref, v_wo_ref, v_bo_ref,
    v_ln1g_ref, v_ln1b_ref, v_ln2g_ref, v_ln2b_ref,
    v_w1_ref, v_b1_ref, v_w2_ref, v_b2_ref,
    head_w_ref, head_b_ref, eps_ref,
    out_ref,
    *, batch, seq, n_tokens, bb_heads, vae_heads, latent_len, out_lanes,
):
    f32 = jnp.float32
    x = x_ref[...].astype(f32)                     # [B*S, Din]
    pos = pos_ref[...].astype(f32)                 # [B*S, Fb] (reused twice from VMEM)

    # ---- Transformer_Backbone ------------------------------------------
    emb = jnp.dot(x, embed_w_ref[...], preferred_element_type=f32) + embed_b_ref[...]
    bb = dict(wqkv=bb_wqkv_ref[...], bqkv=bb_bqkv_ref[...],
              wo=bb_wo_ref[...], bo=bb_bo_ref[...],
              ln1g=bb_ln1g_ref[...], ln1b=bb_ln1b_ref[...],
              ln2g=bb_ln2g_ref[...], ln2b=bb_ln2b_ref[...],
              w1=bb_w1_ref[...], b1=bb_b1_ref[...],
              w2=bb_w2_ref[...], b2=bb_b2_ref[...])
    backbone_out = _transformer_block(emb + pos, bb,
                                      batch=batch, seq=seq, n_heads=bb_heads)

    # ---- VAE_Branch ------------------------------------------------------
    y = backbone_out + pos                         # backbone output + embedded positions
    y = jnp.dot(y, proj_w_ref[...], preferred_element_type=f32) + proj_b_ref[...]   # [B*S, Fv]

    tokens = tok_ref[...].astype(f32)              # [n_tokens, Fv]
    rows = []
    for b in range(batch):
        rows.append(tokens)                        # prepend learned latent query tokens
        rows.append(y[b * seq:(b + 1) * seq, :])
    seq_slab = jnp.concatenate(rows, axis=0)       # [B*(n_tokens+S), Fv]
    seq_v = n_tokens + seq

    vp = dict(wqkv=v_wqkv_ref[...], bqkv=v_bqkv_ref[...],
              wo=v_wo_ref[...], bo=v_bo_ref[...],
              ln1g=v_ln1g_ref[...], ln1b=v_ln1b_ref[...],
              ln2g=v_ln2g_ref[...], ln2b=v_ln2b_ref[...],
              w1=v_w1_ref[...], b1=v_b1_ref[...],
              w2=v_w2_ref[...], b2=v_b2_ref[...])
    seq_slab = _transformer_block(seq_slab, vp,
                                  batch=batch, seq=seq_v, n_heads=vae_heads)

    # Flatten the latent query tokens per batch element (row-major flatten).
    pooled_rows = []
    for b in range(batch):
        r0 = b * seq_v
        pooled_rows.append(jnp.concatenate(
            [seq_slab[r0 + t:r0 + t + 1, :] for t in range(n_tokens)], axis=-1))
    pooled = jnp.concatenate(pooled_rows, axis=0)  # [B, n_tokens*Fv]

    # Fused mean|logvar head (single matmul) + reparameterization epilogue.
    heads = jnp.dot(pooled, head_w_ref[...], preferred_element_type=f32) + head_b_ref[...]
    L = latent_len
    mean = heads[:, 0:L]
    logvar = heads[:, L:2 * L]
    std = jnp.exp(0.5 * logvar)
    z = mean + std * eps_ref[...].astype(f32)

    # Single lane-dense output slab: [z | mean | std | zero pad]; wrapper slices.
    parts = [z, mean, std]
    if out_lanes > 3 * L:
        parts.append(jnp.zeros((z.shape[0], out_lanes - 3 * L), f32))
    out_ref[...] = jnp.concatenate(parts, axis=-1).astype(out_ref.dtype)


# ----------------------------------------------------------------------------
# Parameter init (deterministic, synthetic)
# ----------------------------------------------------------------------------
def _dense(key, din, dout, scale=0.02):
    return (scale * jax.random.normal(key, (din, dout), jnp.float32),
            jnp.zeros((1, dout), jnp.float32))


def _block_params(key, F, ffn_mult=4):
    ks = jax.random.split(key, 4)
    wqkv, bqkv = _dense(ks[0], F, 3 * F)
    wo, bo = _dense(ks[1], F, F)
    w1, b1 = _dense(ks[2], F, ffn_mult * F)
    w2, b2 = _dense(ks[3], ffn_mult * F, F)
    return dict(
        wqkv=wqkv, bqkv=bqkv, wo=wo, bo=bo,
        ln1g=jnp.ones((1, F), jnp.float32), ln1b=jnp.zeros((1, F), jnp.float32),
        ln2g=jnp.ones((1, F), jnp.float32), ln2b=jnp.zeros((1, F), jnp.float32),
        w1=w1, b1=b1, w2=w2, b2=b2,
    )


def init_vae_params(key, cfg):
    ks = jax.random.split(key, 8)
    Fb, Fv = cfg["backbone_n_features"], cfg["vae_n_features"]
    embed_w, embed_b = _dense(ks[0], cfg["input_dimension"], Fb)
    pos_emb = 0.02 * jax.random.normal(
        ks[1], (cfg["backbone_transformer_sequence_len"], Fb), jnp.float32)
    proj_w, proj_b = _dense(ks[3], Fb, Fv)
    latent_tokens = 0.02 * jax.random.normal(ks[4], (cfg["n_tokens"], Fv), jnp.float32)
    mean_w, mean_b = _dense(ks[6], cfg["n_tokens"] * Fv, cfg["latent_vec_len"])
    logvar_w, logvar_b = _dense(ks[7], cfg["n_tokens"] * Fv, cfg["latent_vec_len"])
    return dict(
        embed_w=embed_w, embed_b=embed_b, pos_emb=pos_emb,
        bb_block=_block_params(ks[2], Fb),
        proj_w=proj_w, proj_b=proj_b, latent_tokens=latent_tokens,
        vae_block=_block_params(ks[5], Fv),
        mean_w=mean_w, mean_b=mean_b, logvar_w=logvar_w, logvar_b=logvar_b,
    )


# ----------------------------------------------------------------------------
# Forward pass wrapper: one fused pallas_call, grid=(1,)
# ----------------------------------------------------------------------------
def vae_forward(params, cfg, unmasked_input, unmasked_token_indices, eps):
    """Returns (z, mean, std), mirroring the VAE path of VAE_MAE_Seg_Model.forward."""
    B, S, Din = unmasked_input.shape
    Fb = cfg["backbone_n_features"]
    n_tokens = cfg["n_tokens"]
    L = cfg["latent_vec_len"]
    out_lanes = ((3 * L + 127) // 128) * 128       # lane-dense output slab width

    # Data-dependent positional-embedding gather stays as XLA glue; the gathered
    # table is read ONCE by the fused kernel and reused from VMEM for both adds.
    # TODO(synk): could move the gather in-kernel via PrefetchScalarGridSpec + SMEM indices.
    pos2d = params["pos_emb"][unmasked_token_indices].reshape(B * S, Fb)
    x2d = unmasked_input.reshape(B * S, Din)

    # Merge mean / logvar heads into a single weight (one matmul in the kernel).
    head_w = jnp.concatenate([params["mean_w"], params["logvar_w"]], axis=1)
    head_b = jnp.concatenate([params["mean_b"], params["logvar_b"]], axis=1)

    bb, vb = params["bb_block"], params["vae_block"]
    inputs = (
        x2d, pos2d,
        params["embed_w"], params["embed_b"],
        bb["wqkv"], bb["bqkv"], bb["wo"], bb["bo"],
        bb["ln1g"], bb["ln1b"], bb["ln2g"], bb["ln2b"],
        bb["w1"], bb["b1"], bb["w2"], bb["b2"],
        params["proj_w"], params["proj_b"], params["latent_tokens"],
        vb["wqkv"], vb["bqkv"], vb["wo"], vb["bo"],
        vb["ln1g"], vb["ln1b"], vb["ln2g"], vb["ln2b"],
        vb["w1"], vb["b1"], vb["w2"], vb["b2"],
        head_w, head_b, eps,
    )
    in_specs = [pl.BlockSpec(a.shape, lambda i, nd=a.ndim: (0,) * nd) for a in inputs]

    out = pl.pallas_call(
        functools.partial(
            fused_vae_kernel,
            batch=B, seq=S, n_tokens=n_tokens,
            bb_heads=cfg["backbone_n_heads"], vae_heads=cfg["vae_n_heads"],
            latent_len=L, out_lanes=out_lanes),
        out_shape=jax.ShapeDtypeStruct((B, out_lanes), jnp.float32),
        grid=(1,),
        in_specs=in_specs,
        out_specs=pl.BlockSpec((B, out_lanes), lambda i: (0, 0)),
        compiler_params=pltpu.CompilerParams(dimension_semantics=("arbitrary",)),
    )(*inputs)

    z = out[:, 0:L]
    mean = out[:, L:2 * L]
    std = out[:, 2 * L:3 * L]
    # TODO(synk): MAE_Branch / Segmentation_Branch (undisclosed submodules) are not
    # implemented; this mirrors VAE_MAE_Seg_Model with mae=False, seg=False.
    return z, mean, std


# ----------------------------------------------------------------------------
if __name__ == "__main__":
    cfg = dict(
        input_dimension=16,
        backbone_transformer_sequence_len=8,
        vae_transformer_sequence_len=10,     # = seq_len + n_tokens
        backbone_n_features=32,
        backbone_n_heads=4,
        backbone_dropout_rate=0.1,
        vae_n_features=32,
        vae_n_heads=4,
        vae_dropout_rate=0.1,
        n_tokens=2,
        latent_vec_len=8,
    )
    B, S = 2, cfg["backbone_transformer_sequence_len"]

    key = jax.random.PRNGKey(0)
    k_params, k_x, k_eps = jax.random.split(key, 3)

    params = init_vae_params(k_params, cfg)
    unmasked_input = jax.random.normal(k_x, (B, S, cfg["input_dimension"]), jnp.float32)
    # unmasked_token_indices: list[list[int]] in PyTorch -> int32 array here
    unmasked_token_indices = jnp.broadcast_to(jnp.arange(S, dtype=jnp.int32), (B, S))
    eps = jax.random.normal(k_eps, (B, cfg["latent_vec_len"]), jnp.float32)

    z, mean, std = vae_forward(params, cfg, unmasked_input,
                               unmasked_token_indices, eps)
    jax.block_until_ready((z, mean, std))

    assert z.shape == (B, cfg["latent_vec_len"])
    assert mean.shape == (B, cfg["latent_vec_len"])
    assert std.shape == (B, cfg["latent_vec_len"])
    assert bool(jnp.all(jnp.isfinite(z)))
    assert bool(jnp.all(std > 0.0))
    print("KERNEL_OK")
</pallas_src>

<mosaic_0001>
module attributes {stable_mosaic.version = 11 : i64} {
  func.func @fused_vae_kernel(%arg0: i32, %arg1: memref<16x16xf32, #tpu.memory_space<vmem>>, %arg2: memref<16x32xf32, #tpu.memory_space<vmem>>, %arg3: memref<16x32xf32, #tpu.memory_space<vmem>>, %arg4: memref<1x32xf32, #tpu.memory_space<vmem>>, %arg5: memref<32x96xf32, #tpu.memory_space<vmem>>, %arg6: memref<1x96xf32, #tpu.memory_space<vmem>>, %arg7: memref<32x32xf32, #tpu.memory_space<vmem>>, %arg8: memref<1x32xf32, #tpu.memory_space<vmem>>, %arg9: memref<1x32xf32, #tpu.memory_space<vmem>>, %arg10: memref<1x32xf32, #tpu.memory_space<vmem>>, %arg11: memref<1x32xf32, #tpu.memory_space<vmem>>, %arg12: memref<1x32xf32, #tpu.memory_space<vmem>>, %arg13: memref<32x128xf32, #tpu.memory_space<vmem>>, %arg14: memref<1x128xf32, #tpu.memory_space<vmem>>, %arg15: memref<128x32xf32, #tpu.memory_space<vmem>>, %arg16: memref<1x32xf32, #tpu.memory_space<vmem>>, %arg17: memref<32x32xf32, #tpu.memory_space<vmem>>, %arg18: memref<1x32xf32, #tpu.memory_space<vmem>>, %arg19: memref<2x32xf32, #tpu.memory_space<vmem>>, %arg20: memref<32x96xf32, #tpu.memory_space<vmem>>, %arg21: memref<1x96xf32, #tpu.memory_space<vmem>>, %arg22: memref<32x32xf32, #tpu.memory_space<vmem>>, %arg23: memref<1x32xf32, #tpu.memory_space<vmem>>, %arg24: memref<1x32xf32, #tpu.memory_space<vmem>>, %arg25: memref<1x32xf32, #tpu.memory_space<vmem>>, %arg26: memref<1x32xf32, #tpu.memory_space<vmem>>, %arg27: memref<1x32xf32, #tpu.memory_space<vmem>>, %arg28: memref<32x128xf32, #tpu.memory_space<vmem>>, %arg29: memref<1x128xf32, #tpu.memory_space<vmem>>, %arg30: memref<128x32xf32, #tpu.memory_space<vmem>>, %arg31: memref<1x32xf32, #tpu.memory_space<vmem>>, %arg32: memref<64x16xf32, #tpu.memory_space<vmem>>, %arg33: memref<1x16xf32, #tpu.memory_space<vmem>>, %arg34: memref<2x8xf32, #tpu.memory_space<vmem>>, %arg35: memref<2x128xf32, #tpu.memory_space<vmem>>) attributes {dimension_semantics = [#tpu.dimension_semantics<arbitrary>], iteration_bounds = array<i64: 1>, scalar_prefetch = 0 : i64, scratch_operands = 0 : i64, tpu.core_type = #tpu.core_type<tc>, window_params = [{pipeline_mode = #tpu.pipeline_mode<synchronous>, transform_indices = @transform_0, window_bounds = array<i64: 16, 16>}, {pipeline_mode = #tpu.pipeline_mode<synchronous>, transform_indices = @transform_1, window_bounds = array<i64: 16, 32>}, {pipeline_mode = #tpu.pipeline_mode<synchronous>, transform_indices = @transform_2, window_bounds = array<i64: 16, 32>}, {pipeline_mode = #tpu.pipeline_mode<synchronous>, transform_indices = @transform_3, window_bounds = array<i64: 1, 32>}, {pipeline_mode = #tpu.pipeline_mode<synchronous>, transform_indices = @transform_4, window_bounds = array<i64: 32, 96>}, {pipeline_mode = #tpu.pipeline_mode<synchronous>, transform_indices = @transform_5, window_bounds = array<i64: 1, 96>}, {pipeline_mode = #tpu.pipeline_mode<synchronous>, transform_indices = @transform_6, window_bounds = array<i64: 32, 32>}, {pipeline_mode = #tpu.pipeline_mode<synchronous>, transform_indices = @transform_7, window_bounds = array<i64: 1, 32>}, {pipeline_mode = #tpu.pipeline_mode<synchronous>, transform_indices = @transform_8, window_bounds = array<i64: 1, 32>}, {pipeline_mode = #tpu.pipeline_mode<synchronous>, transform_indices = @transform_9, window_bounds = array<i64: 1, 32>}, {pipeline_mode = #tpu.pipeline_mode<synchronous>, transform_indices = @transform_10, window_bounds = array<i64: 1, 32>}, {pipeline_mode = #tpu.pipeline_mode<synchronous>, transform_indices = @transform_11, window_bounds = array<i64: 1, 32>}, {pipeline_mode = #tpu.pipeline_mode<synchronous>, transform_indices = @transform_12, window_bounds = array<i64: 32, 128>}, {pipeline_mode = #tpu.pipeline_mode<synchronous>, transform_indices = @transform_13, window_bounds = array<i64: 1, 128>}, {pipeline_mode = #tpu.pipeline_mode<synchronous>, transform_indices = @transform_14, window_bounds = array<i64: 128, 32>}, {pipeline_mode = #tpu.pipeline_mode<synchronous>, transform_indices = @transform_15, window_bounds = array<i64: 1, 32>}, {pipeline_mode = #tpu.pipeline_mode<synchronous>, transform_indices = @transform_16, window_bounds = array<i64: 32, 32>}, {pipeline_mode = #tpu.pipeline_mode<synchronous>, transform_indices = @transform_17, window_bounds = array<i64: 1, 32>}, {pipeline_mode = #tpu.pipeline_mode<synchronous>, transform_indices = @transform_18, window_bounds = array<i64: 2, 32>}, {pipeline_mode = #tpu.pipeline_mode<synchronous>, transform_indices = @transform_19, window_bounds = array<i64: 32, 96>}, {pipeline_mode = #tpu.pipeline_mode<synchronous>, transform_indices = @transform_20, window_bounds = array<i64: 1, 96>}, {pipeline_mode = #tpu.pipeline_mode<synchronous>, transform_indices = @transform_21, window_bounds = array<i64: 32, 32>}, {pipeline_mode = #tpu.pipeline_mode<synchronous>, transform_indices = @transform_22, window_bounds = array<i64: 1, 32>}, {pipeline_mode = #tpu.pipeline_mode<synchronous>, transform_indices = @transform_23, window_bounds = array<i64: 1, 32>}, {pipeline_mode = #tpu.pipeline_mode<synchronous>, transform_indices = @transform_24, window_bounds = array<i64: 1, 32>}, {pipeline_mode = #tpu.pipeline_mode<synchronous>, transform_indices = @transform_25, window_bounds = array<i64: 1, 32>}, {pipeline_mode = #tpu.pipeline_mode<synchronous>, transform_indices = @transform_26, window_bounds = array<i64: 1, 32>}, {pipeline_mode = #tpu.pipeline_mode<synchronous>, transform_indices = @transform_27, window_bounds = array<i64: 32, 128>}, {pipeline_mode = #tpu.pipeline_mode<synchronous>, transform_indices = @transform_28, window_bounds = array<i64: 1, 128>}, {pipeline_mode = #tpu.pipeline_mode<synchronous>, transform_indices = @transform_29, window_bounds = array<i64: 128, 32>}, {pipeline_mode = #tpu.pipeline_mode<synchronous>, transform_indices = @transform_30, window_bounds = array<i64: 1, 32>}, {pipeline_mode = #tpu.pipeline_mode<synchronous>, transform_indices = @transform_31, window_bounds = array<i64: 64, 16>}, {pipeline_mode = #tpu.pipeline_mode<synchronous>, transform_indices = @transform_32, window_bounds = array<i64: 1, 16>}, {pipeline_mode = #tpu.pipeline_mode<synchronous>, transform_indices = @transform_33, window_bounds = array<i64: 2, 8>}, {pipeline_mode = #tpu.pipeline_mode<synchronous>, transform_indices = @transform_34, window_bounds = array<i64: 2, 128>}]} {
    %c0 = arith.constant 0 : index
    %c0_0 = arith.constant 0 : index
    %0 = vector.load %arg1[%c0, %c0_0] : memref<16x16xf32, #tpu.memory_space<vmem>>, vector<16x16xf32>
    %c0_1 = arith.constant 0 : index
    %c0_2 = arith.constant 0 : index
    %1 = vector.load %arg2[%c0_1, %c0_2] : memref<16x32xf32, #tpu.memory_space<vmem>>, vector<16x32xf32>
    %c0_3 = arith.constant 0 : index
    %c0_4 = arith.constant 0 : index
    %2 = vector.load %arg3[%c0_3, %c0_4] : memref<16x32xf32, #tpu.memory_space<vmem>>, vector<16x32xf32>
    %cst = arith.constant dense<0.000000e+00> : vector<16x32xf32>
    %3 = tpu.matmul %0, %2, %cst {dimension_numbers = #tpu.dot_dimension_numbers<[1], [0], [0], [1], [0, 0, 1, 1], [], []>} : vector<16x16xf32>, vector<16x32xf32>, vector<16x32xf32> -> vector<16x32xf32>
    %c0_5 = arith.constant 0 : index
    %c0_6 = arith.constant 0 : index
    %4 = vector.load %arg4[%c0_5, %c0_6] : memref<1x32xf32, #tpu.memory_space<vmem>>, vector<1x32xf32>
    %5 = vector.broadcast %4 : vector<1x32xf32> to vector<16x32xf32>
    %6 = arith.addf %3, %5 : vector<16x32xf32>
    %c0_7 = arith.constant 0 : index
    %c0_8 = arith.constant 0 : index
    %7 = vector.load %arg5[%c0_7, %c0_8] : memref<32x96xf32, #tpu.memory_space<vmem>>, vector<32x96xf32>
    %c0_9 = arith.constant 0 : index
    %c0_10 = arith.constant 0 : index
    %8 = vector.load %arg6[%c0_9, %c0_10] : memref<1x96xf32, #tpu.memory_space<vmem>>, vector<1x96xf32>
    %c0_11 = arith.constant 0 : index
    %c0_12 = arith.constant 0 : index
    %9 = vector.load %arg7[%c0_11, %c0_12] : memref<32x32xf32, #tpu.memory_space<vmem>>, vector<32x32xf32>
    %c0_13 = arith.constant 0 : index
    %c0_14 = arith.constant 0 : index
    %10 = vector.load %arg8[%c0_13, %c0_14] : memref<1x32xf32, #tpu.memory_space<vmem>>, vector<1x32xf32>
    %c0_15 = arith.constant 0 : index
    %c0_16 = arith.constant 0 : index
    %11 = vector.load %arg9[%c0_15, %c0_16] : memref<1x32xf32, #tpu.memory_space<vmem>>, vector<1x32xf32>
    %c0_17 = arith.constant 0 : index
    %c0_18 = arith.constant 0 : index
    %12 = vector.load %arg10[%c0_17, %c0_18] : memref<1x32xf32, #tpu.memory_space<vmem>>, vector<1x32xf32>
    %c0_19 = arith.constant 0 : index
    %c0_20 = arith.constant 0 : index
    %13 = vector.load %arg11[%c0_19, %c0_20] : memref<1x32xf32, #tpu.memory_space<vmem>>, vector<1x32xf32>
    %c0_21 = arith.constant 0 : index
    %c0_22 = arith.constant 0 : index
    %14 = vector.load %arg12[%c0_21, %c0_22] : memref<1x32xf32, #tpu.memory_space<vmem>>, vector<1x32xf32>
    %c0_23 = arith.constant 0 : index
    %c0_24 = arith.constant 0 : index
    %15 = vector.load %arg13[%c0_23, %c0_24] : memref<32x128xf32, #tpu.memory_space<vmem>>, vector<32x128xf32>
    %c0_25 = arith.constant 0 : index
    %c0_26 = arith.constant 0 : index
    %16 = vector.load %arg14[%c0_25, %c0_26] : memref<1x128xf32, #tpu.memory_space<vmem>>, vector<1x128xf32>
    %c0_27 = arith.constant 0 : index
    %c0_28 = arith.constant 0 : index
    %17 = vector.load %arg15[%c0_27, %c0_28] : memref<128x32xf32, #tpu.memory_space<vmem>>, vector<128x32xf32>
    %c0_29 = arith.constant 0 : index
    %c0_30 = arith.constant 0 : index
    %18 = vector.load %arg16[%c0_29, %c0_30] : memref<1x32xf32, #tpu.memory_space<vmem>>, vector<1x32xf32>
    %19 = arith.addf %6, %1 : vector<16x32xf32>
    %cst_31 = arith.constant dense<0.000000e+00> : vector<16xf32>
    %20 = vector.multi_reduction <add>, %19, %cst_31 [1] : vector<16x32xf32> to vector<16xf32>
    %21 = vector.shape_cast %20 : vector<16xf32> to vector<16x1xf32>
    %cst_32 = arith.constant 3.200000e+01 : f32
    %22 = vector.broadcast %cst_32 : f32 to vector<16x1xf32>
    %23 = arith.divf %21, %22 : vector<16x1xf32>
    %24 = vector.broadcast %23 : vector<16x1xf32> to vector<16x32xf32>
    %25 = arith.subf %19, %24 : vector<16x32xf32>
    %26 = arith.mulf %25, %25 : vector<16x32xf32>
    %cst_33 = arith.constant dense<0.000000e+00> : vector<16xf32>
    %27 = vector.multi_reduction <add>, %26, %cst_33 [1] : vector<16x32xf32> to vector<16xf32>
    %28 = vector.shape_cast %27 : vector<16xf32> to vector<16x1xf32>
    %cst_34 = arith.constant 3.200000e+01 : f32
    %29 = vector.broadcast %cst_34 : f32 to vector<16x1xf32>
    %30 = arith.divf %28, %29 : vector<16x1xf32>
    %31 = vector.broadcast %23 : vector<16x1xf32> to vector<16x32xf32>
    %32 = arith.subf %19, %31 : vector<16x32xf32>
    %cst_35 = arith.constant 9.99999974E-6 : f32
    %33 = vector.broadcast %cst_35 : f32 to vector<16x1xf32>
    %34 = arith.addf %30, %33 : vector<16x1xf32>
    %35 = math.rsqrt %34 : vector<16x1xf32>
    %36 = vector.broadcast %35 : vector<16x1xf32> to vector<16x32xf32>
    %37 = arith.mulf %32, %36 : vector<16x32xf32>
    %38 = vector.broadcast %11 : vector<1x32xf32> to vector<16x32xf32>
    %39 = arith.mulf %37, %38 : vector<16x32xf32>
    %40 = vector.broadcast %12 : vector<1x32xf32> to vector<16x32xf32>
    %41 = arith.addf %39, %40 : vector<16x32xf32>
    %cst_36 = arith.constant dense<0.000000e+00> : vector<16x96xf32>
    %42 = tpu.matmul %41, %7, %cst_36 {dimension_numbers = #tpu.dot_dimension_numbers<[1], [0], [0], [1], [0, 0, 1, 1], [], []>} : vector<16x32xf32>, vector<32x96xf32>, vector<16x96xf32> -> vector<16x96xf32>
    %43 = vector.broadcast %8 : vector<1x96xf32> to vector<16x96xf32>
    %44 = arith.addf %42, %43 : vector<16x96xf32>
    %45 = vector.extract_strided_slice %44 {offsets = [0, 0], sizes = [16, 32], strides = [1, 1]} : vector<16x96xf32> to vector<16x32xf32>
    %46 = vector.extract_strided_slice %44 {offsets = [0, 32], sizes = [16, 32], strides = [1, 1]} : vector<16x96xf32> to vector<16x32xf32>
    %47 = vector.extract_strided_slice %44 {offsets = [0, 64], sizes = [16, 32], strides = [1, 1]} : vector<16x96xf32> to vector<16x32xf32>
    %48 = vector.extract_strided_slice %45 {offsets = [0, 0], sizes = [8, 8], strides = [1, 1]} : vector<16x32xf32> to vector<8x8xf32>
    %49 = vector.extract_strided_slice %46 {offsets = [0, 0], sizes = [8, 8], strides = [1, 1]} : vector<16x32xf32> to vector<8x8xf32>
    %50 = vector.extract_strided_slice %47 {offsets = [0, 0], sizes = [8, 8], strides = [1, 1]} : vector<16x32xf32> to vector<8x8xf32>
    %51 = vector.extract_strided_slice %45 {offsets = [0, 8], sizes = [8, 8], strides = [1, 1]} : vector<16x32xf32> to vector<8x8xf32>
    %52 = vector.extract_strided_slice %46 {offsets = [0, 8], sizes = [8, 8], strides = [1, 1]} : vector<16x32xf32> to vector<8x8xf32>
    %53 = vector.extract_strided_slice %47 {offsets = [0, 8], sizes = [8, 8], strides = [1, 1]} : vector<16x32xf32> to vector<8x8xf32>
    %54 = vector.extract_strided_slice %45 {offsets = [0, 16], sizes = [8, 8], strides = [1, 1]} : vector<16x32xf32> to vector<8x8xf32>
    %55 = vector.extract_strided_slice %46 {offsets = [0, 16], sizes = [8, 8], strides = [1, 1]} : vector<16x32xf32> to vector<8x8xf32>
    %56 = vector.extract_strided_slice %47 {offsets = [0, 16], sizes = [8, 8], strides = [1, 1]} : vector<16x32xf32> to vector<8x8xf32>
    %57 = vector.extract_strided_slice %45 {offsets = [0, 24], sizes = [8, 8], strides = [1, 1]} : vector<16x32xf32> to vector<8x8xf32>
    %58 = vector.extract_strided_slice %46 {offsets = [0, 24], sizes = [8, 8], strides = [1, 1]} : vector<16x32xf32> to vector<8x8xf32>
    %59 = vector.extract_strided_slice %47 {offsets = [0, 24], sizes = [8, 8], strides = [1, 1]} : vector<16x32xf32> to vector<8x8xf32>
    %60 = vector.extract_strided_slice %45 {offsets = [8, 0], sizes = [8, 8], strides = [1, 1]} : vector<16x32xf32> to vector<8x8xf32>
    %61 = vector.extract_strided_slice %46 {offsets = [8, 0], sizes = [8, 8], strides = [1, 1]} : vector<16x32xf32> to vector<8x8xf32>
    %62 = vector.extract_strided_slice %47 {offsets = [8, 0], sizes = [8, 8], strides = [1, 1]} : vector<16x32xf32> to vector<8x8xf32>
    %63 = vector.extract_strided_slice %45 {offsets = [8, 8], sizes = [8, 8], strides = [1, 1]} : vector<16x32xf32> to vector<8x8xf32>
    %64 = vector.extract_strided_slice %46 {offsets = [8, 8], sizes = [8, 8], strides = [1, 1]} : vector<16x32xf32> to vector<8x8xf32>
    %65 = vector.extract_strided_slice %47 {offsets = [8, 8], sizes = [8, 8], strides = [1, 1]} : vector<16x32xf32> to vector<8x8xf32>
    %66 = vector.extract_strided_slice %45 {offsets = [8, 16], sizes = [8, 8], strides = [1, 1]} : vector<16x32xf32> to vector<8x8xf32>
    %67 = vector.extract_strided_slice %46 {offsets = [8, 16], sizes = [8, 8], strides = [1, 1]} : vector<16x32xf32> to vector<8x8xf32>
    %68 = vector.extract_strided_slice %47 {offsets = [8, 16], sizes = [8, 8], strides = [1, 1]} : vector<16x32xf32> to vector<8x8xf32>
    %69 = vector.extract_strided_slice %45 {offsets = [8, 24], sizes = [8, 8], strides = [1, 1]} : vector<16x32xf32> to vector<8x8xf32>
    %70 = vector.extract_strided_slice %46 {offsets = [8, 24], sizes = [8, 8], strides = [1, 1]} : vector<16x32xf32> to vector<8x8xf32>
    %71 = vector.extract_strided_slice %47 {offsets = [8, 24], sizes = [8, 8], strides = [1, 1]} : vector<16x32xf32> to vector<8x8xf32>
    %72 = vector.shape_cast %48 : vector<8x8xf32> to vector<1x8x8xf32>
    %73 = vector.shape_cast %51 : vector<8x8xf32> to vector<1x8x8xf32>
    %74 = vector.shape_cast %54 : vector<8x8xf32> to vector<1x8x8xf32>
    %75 = vector.shape_cast %57 : vector<8x8xf32> to vector<1x8x8xf32>
    %76 = vector.shape_cast %60 : vector<8x8xf32> to vector<1x8x8xf32>
    %77 = vector.shape_cast %63 : vector<8x8xf32> to vector<1x8x8xf32>
    %78 = vector.shape_cast %66 : vector<8x8xf32> to vector<1x8x8xf32>
    %79 = vector.shape_cast %69 : vector<8x8xf32> to vector<1x8x8xf32>
    %80 = tpu.concatenate %72, %73, %74, %75, %76, %77, %78, %79 in 0 : vector<1x8x8xf32>, vector<1x8x8xf32>, vector<1x8x8xf32>, vector<1x8x8xf32>, vector<1x8x8xf32>, vector<1x8x8xf32>, vector<1x8x8xf32>, vector<1x8x8xf32> -> vector<8x8x8xf32>
    %81 = vector.shape_cast %49 : vector<8x8xf32> to vector<1x8x8xf32>
    %82 = vector.shape_cast %52 : vector<8x8xf32> to vector<1x8x8xf32>
    %83 = vector.shape_cast %55 : vector<8x8xf32> to vector<1x8x8xf32>
    %84 = vector.shape_cast %58 : vector<8x8xf32> to vector<1x8x8xf32>
    %85 = vector.shape_cast %61 : vector<8x8xf32> to vector<1x8x8xf32>
    %86 = vector.shape_cast %64 : vector<8x8xf32> to vector<1x8x8xf32>
    %87 = vector.shape_cast %67 : vector<8x8xf32> to vector<1x8x8xf32>
    %88 = vector.shape_cast %70 : vector<8x8xf32> to vector<1x8x8xf32>
    %89 = tpu.concatenate %81, %82, %83, %84, %85, %86, %87, %88 in 0 : vector<1x8x8xf32>, vector<1x8x8xf32>, vector<1x8x8xf32>, vector<1x8x8xf32>, vector<1x8x8xf32>, vector<1x8x8xf32>, vector<1x8x8xf32>, vector<1x8x8xf32> -> vector<8x8x8xf32>
    %90 = vector.shape_cast %50 : vector<8x8xf32> to vector<1x8x8xf32>
    %91 = vector.shape_cast %53 : vector<8x8xf32> to vector<1x8x8xf32>
    %92 = vector.shape_cast %56 : vector<8x8xf32> to vector<1x8x8xf32>
    %93 = vector.shape_cast %59 : vector<8x8xf32> to vector<1x8x8xf32>
    %94 = vector.shape_cast %62 : vector<8x8xf32> to vector<1x8x8xf32>
    %95 = vector.shape_cast %65 : vector<8x8xf32> to vector<1x8x8xf32>
    %96 = vector.shape_cast %68 : vector<8x8xf32> to vector<1x8x8xf32>
    %97 = vector.shape_cast %71 : vector<8x8xf32> to vector<1x8x8xf32>
    %98 = tpu.concatenate %90, %91, %92, %93, %94, %95, %96, %97 in 0 : vector<1x8x8xf32>, vector<1x8x8xf32>, vector<1x8x8xf32>, vector<1x8x8xf32>, vector<1x8x8xf32>, vector<1x8x8xf32>, vector<1x8x8xf32>, vector<1x8x8xf32> -> vector<8x8x8xf32>
    "tpu.trace_start"() <{level = 10 : i32, message = "nqd,nkd->nqk"}> : () -> ()
    %cst_37 = arith.constant dense<0.000000e+00> : vector<8x8x8xf32>
    %99 = tpu.matmul %80, %89, %cst_37 {dimension_numbers = #tpu.dot_dimension_numbers<[2], [2], [1], [1], [0, 0, 0, 1, 1, 1], [0], [0]>} : vector<8x8x8xf32>, vector<8x8x8xf32>, vector<8x8x8xf32> -> vector<8x8x8xf32>
    "tpu.trace_stop"() : () -> ()
    %cst_38 = arith.constant 0.353553385 : f32
    %100 = vector.broadcast %cst_38 : f32 to vector<8x8x8xf32>
    %101 = arith.mulf %99, %100 : vector<8x8x8xf32>
    %cst_39 = arith.constant dense<0xFF800000> : vector<8x8xf32>
    %102 = vector.multi_reduction <maximumf>, %101, %cst_39 [2] : vector<8x8x8xf32> to vector<8x8xf32>
    %103 = vector.shape_cast %102 : vector<8x8xf32> to vector<8x8x1xf32>
    %104 = vector.broadcast %103 : vector<8x8x1xf32> to vector<8x8x8xf32>
    %105 = arith.subf %101, %104 : vector<8x8x8xf32>
    %106 = math.exp %105 : vector<8x8x8xf32>
    %cst_40 = arith.constant dense<0.000000e+00> : vector<8x8xf32>
    %107 = vector.multi_reduction <add>, %106, %cst_40 [2] : vector<8x8x8xf32> to vector<8x8xf32>
    %108 = vector.shape_cast %107 : vector<8x8xf32> to vector<8x8x1xf32>
    %109 = tpu.reciprocal %108 {approx = true} : vector<8x8x1xf32> -> vector<8x8x1xf32>
    %110 = vector.broadcast %109 : vector<8x8x1xf32> to vector<8x8x8xf32>
    %111 = arith.mulf %106, %110 : vector<8x8x8xf32>
    "tpu.trace_start"() <{level = 10 : i32, message = "nqk,nkd->nqd"}> : () -> ()
    %cst_41 = arith.constant dense<0.000000e+00> : vector<8x8x8xf32>
    %112 = tpu.matmul %111, %98, %cst_41 {dimension_numbers = #tpu.dot_dimension_numbers<[2], [1], [1], [2], [0, 0, 0, 1, 1, 2], [0], [0]>} : vector<8x8x8xf32>, vector<8x8x8xf32>, vector<8x8x8xf32> -> vector<8x8x8xf32>
    "tpu.trace_stop"() : () -> ()
    %113 = vector.extract_strided_slice %112 {offsets = [0, 0, 0], sizes = [1, 8, 8], strides = [1, 1, 1]} : vector<8x8x8xf32> to vector<1x8x8xf32>
    %114 = vector.shape_cast %113 : vector<1x8x8xf32> to vector<8x8xf32>
    %115 = vector.extract_strided_slice %112 {offsets = [1, 0, 0], sizes = [1, 8, 8], strides = [1, 1, 1]} : vector<8x8x8xf32> to vector<1x8x8xf32>
    %116 = vector.shape_cast %115 : vector<1x8x8xf32> to vector<8x8xf32>
    %117 = vector.extract_strided_slice %112 {offsets = [2, 0, 0], sizes = [1, 8, 8], strides = [1, 1, 1]} : vector<8x8x8xf32> to vector<1x8x8xf32>
    %118 = vector.shape_cast %117 : vector<1x8x8xf32> to vector<8x8xf32>
    %119 = vector.extract_strided_slice %112 {offsets = [3, 0, 0], sizes = [1, 8, 8], strides = [1, 1, 1]} : vector<8x8x8xf32> to vector<1x8x8xf32>
    %120 = vector.shape_cast %119 : vector<1x8x8xf32> to vector<8x8xf32>
    %121 = tpu.concatenate %114, %116, %118, %120 in 1 : vector<8x8xf32>, vector<8x8xf32>, vector<8x8xf32>, vector<8x8xf32> -> vector<8x32xf32>
    %122 = vector.extract_strided_slice %112 {offsets = [4, 0, 0], sizes = [1, 8, 8], strides = [1, 1, 1]} : vector<8x8x8xf32> to vector<1x8x8xf32>
    %123 = vector.shape_cast %122 : vector<1x8x8xf32> to vector<8x8xf32>
    %124 = vector.extract_strided_slice %112 {offsets = [5, 0, 0], sizes = [1, 8, 8], strides = [1, 1, 1]} : vector<8x8x8xf32> to vector<1x8x8xf32>
    %125 = vector.shape_cast %124 : vector<1x8x8xf32> to vector<8x8xf32>
    %126 = vector.extract_strided_slice %112 {offsets = [6, 0, 0], sizes = [1, 8, 8], strides = [1, 1, 1]} : vector<8x8x8xf32> to vector<1x8x8xf32>
    %127 = vector.shape_cast %126 : vector<1x8x8xf32> to vector<8x8xf32>
    %128 = vector.extract_strided_slice %112 {offsets = [7, 0, 0], sizes = [1, 8, 8], strides = [1, 1, 1]} : vector<8x8x8xf32> to vector<1x8x8xf32>
    %129 = vector.shape_cast %128 : vector<1x8x8xf32> to vector<8x8xf32>
    %130 = tpu.concatenate %123, %125, %127, %129 in 1 : vector<8x8xf32>, vector<8x8xf32>, vector<8x8xf32>, vector<8x8xf32> -> vector<8x32xf32>
    %131 = tpu.concatenate %121, %130 in 0 : vector<8x32xf32>, vector<8x32xf32> -> vector<16x32xf32>
    %cst_42 = arith.constant dense<0.000000e+00> : vector<16x32xf32>
    %132 = tpu.matmul %131, %9, %cst_42 {dimension_numbers = #tpu.dot_dimension_numbers<[1], [0], [0], [1], [0, 0, 1, 1], [], []>} : vector<16x32xf32>, vector<32x32xf32>, vector<16x32xf32> -> vector<16x32xf32>
    %133 = vector.broadcast %10 : vector<1x32xf32> to vector<16x32xf32>
    %134 = arith.addf %132, %133 : vector<16x32xf32>
    %135 = arith.addf %19, %134 : vector<16x32xf32>
    %cst_43 = arith.constant dense<0.000000e+00> : vector<16xf32>
    %136 = vector.multi_reduction <add>, %135, %cst_43 [1] : vector<16x32xf32> to vector<16xf32>
    %137 = vector.shape_cast %136 : vector<16xf32> to vector<16x1xf32>
    %cst_44 = arith.constant 3.200000e+01 : f32
    %138 = vector.broadcast %cst_44 : f32 to vector<16x1xf32>
    %139 = arith.divf %137, %138 : vector<16x1xf32>
    %140 = vector.broadcast %139 : vector<16x1xf32> to vector<16x32xf32>
    %141 = arith.subf %135, %140 : vector<16x32xf32>
    %142 = arith.mulf %141, %141 : vector<16x32xf32>
    %cst_45 = arith.constant dense<0.000000e+00> : vector<16xf32>
    %143 = vector.multi_reduction <add>, %142, %cst_45 [1] : vector<16x32xf32> to vector<16xf32>
    %144 = vector.shape_cast %143 : vector<16xf32> to vector<16x1xf32>
    %cst_46 = arith.constant 3.200000e+01 : f32
    %145 = vector.broadcast %cst_46 : f32 to vector<16x1xf32>
    %146 = arith.divf %144, %145 : vector<16x1xf32>
    %147 = vector.broadcast %139 : vector<16x1xf32> to vector<16x32xf32>
    %148 = arith.subf %135, %147 : vector<16x32xf32>
    %cst_47 = arith.constant 9.99999974E-6 : f32
    %149 = vector.broadcast %cst_47 : f32 to vector<16x1xf32>
    %150 = arith.addf %146, %149 : vector<16x1xf32>
    %151 = math.rsqrt %150 : vector<16x1xf32>
    %152 = vector.broadcast %151 : vector<16x1xf32> to vector<16x32xf32>
    %153 = arith.mulf %148, %152 : vector<16x32xf32>
    %154 = vector.broadcast %13 : vector<1x32xf32> to vector<16x32xf32>
    %155 = arith.mulf %153, %154 : vector<16x32xf32>
    %156 = vector.broadcast %14 : vector<1x32xf32> to vector<16x32xf32>
    %157 = arith.addf %155, %156 : vector<16x32xf32>
    %cst_48 = arith.constant dense<0.000000e+00> : vector<16x128xf32>
    %158 = tpu.matmul %157, %15, %cst_48 {dimension_numbers = #tpu.dot_dimension_numbers<[1], [0], [0], [1], [0, 0, 1, 1], [], []>} : vector<16x32xf32>, vector<32x128xf32>, vector<16x128xf32> -> vector<16x128xf32>
    %159 = vector.broadcast %16 : vector<1x128xf32> to vector<16x128xf32>
    %160 = arith.addf %158, %159 : vector<16x128xf32>
    %cst_49 = arith.constant 0.000000e+00 : f32
    %161 = vector.broadcast %cst_49 : f32 to vector<16x128xf32>
    %162 = arith.maximumf %160, %161 : vector<16x128xf32>
    %cst_50 = arith.constant dense<0.000000e+00> : vector<16x32xf32>
    %163 = tpu.matmul %162, %17, %cst_50 {dimension_numbers = #tpu.dot_dimension_numbers<[1], [0], [0], [1], [0, 0, 1, 1], [], []>} : vector<16x128xf32>, vector<128x32xf32>, vector<16x32xf32> -> vector<16x32xf32>
    %164 = vector.broadcast %18 : vector<1x32xf32> to vector<16x32xf32>
    %165 = arith.addf %163, %164 : vector<16x32xf32>
    %166 = arith.addf %135, %165 : vector<16x32xf32>
    %167 = arith.addf %166, %1 : vector<16x32xf32>
    %c0_51 = arith.constant 0 : index
    %c0_52 = arith.constant 0 : index
    %168 = vector.load %arg17[%c0_51, %c0_52] : memref<32x32xf32, #tpu.memory_space<vmem>>, vector<32x32xf32>
    %cst_53 = arith.constant dense<0.000000e+00> : vector<16x32xf32>
    %169 = tpu.matmul %167, %168, %cst_53 {dimension_numbers = #tpu.dot_dimension_numbers<[1], [0], [0], [1], [0, 0, 1, 1], [], []>} : vector<16x32xf32>, vector<32x32xf32>, vector<16x32xf32> -> vector<16x32xf32>
    %c0_54 = arith.constant 0 : index
    %c0_55 = arith.constant 0 : index
    %170 = vector.load %arg18[%c0_54, %c0_55] : memref<1x32xf32, #tpu.memory_space<vmem>>, vector<1x32xf32>
    %171 = vector.broadcast %170 : vector<1x32xf32> to vector<16x32xf32>
    %172 = arith.addf %169, %171 : vector<16x32xf32>
    %c0_56 = arith.constant 0 : index
    %c0_57 = arith.constant 0 : index
    %173 = vector.load %arg19[%c0_56, %c0_57] : memref<2x32xf32, #tpu.memory_space<vmem>>, vector<2x32xf32>
    %174 = vector.extract_strided_slice %172 {offsets = [0, 0], sizes = [8, 32], strides = [1, 1]} : vector<16x32xf32> to vector<8x32xf32>
    %175 = vector.extract_strided_slice %172 {offsets = [8, 0], sizes = [8, 32], strides = [1, 1]} : vector<16x32xf32> to vector<8x32xf32>
    %176 = tpu.concatenate %173, %174, %173, %175 in 0 : vector<2x32xf32>, vector<8x32xf32>, vector<2x32xf32>, vector<8x32xf32> -> vector<20x32xf32>
    %c0_58 = arith.constant 0 : index
    %c0_59 = arith.constant 0 : index
    %177 = vector.load %arg20[%c0_58, %c0_59] : memref<32x96xf32, #tpu.memory_space<vmem>>, vector<32x96xf32>
    %c0_60 = arith.constant 0 : index
    %c0_61 = arith.constant 0 : index
    %178 = vector.load %arg21[%c0_60, %c0_61] : memref<1x96xf32, #tpu.memory_space<vmem>>, vector<1x96xf32>
    %c0_62 = arith.constant 0 : index
    %c0_63 = arith.constant 0 : index
    %179 = vector.load %arg22[%c0_62, %c0_63] : memref<32x32xf32, #tpu.memory_space<vmem>>, vector<32x32xf32>
    %c0_64 = arith.constant 0 : index
    %c0_65 = arith.constant 0 : index
    %180 = vector.load %arg23[%c0_64, %c0_65] : memref<1x32xf32, #tpu.memory_space<vmem>>, vector<1x32xf32>
    %c0_66 = arith.constant 0 : index
    %c0_67 = arith.constant 0 : index
    %181 = vector.load %arg24[%c0_66, %c0_67] : memref<1x32xf32, #tpu.memory_space<vmem>>, vector<1x32xf32>
    %c0_68 = arith.constant 0 : index
    %c0_69 = arith.constant 0 : index
    %182 = vector.load %arg25[%c0_68, %c0_69] : memref<1x32xf32, #tpu.memory_space<vmem>>, vector<1x32xf32>
    %c0_70 = arith.constant 0 : index
    %c0_71 = arith.constant 0 : index
    %183 = vector.load %arg26[%c0_70, %c0_71] : memref<1x32xf32, #tpu.memory_space<vmem>>, vector<1x32xf32>
    %c0_72 = arith.constant 0 : index
    %c0_73 = arith.constant 0 : index
    %184 = vector.load %arg27[%c0_72, %c0_73] : memref<1x32xf32, #tpu.memory_space<vmem>>, vector<1x32xf32>
    %c0_74 = arith.constant 0 : index
    %c0_75 = arith.constant 0 : index
    %185 = vector.load %arg28[%c0_74, %c0_75] : memref<32x128xf32, #tpu.memory_space<vmem>>, vector<32x128xf32>
    %c0_76 = arith.constant 0 : index
    %c0_77 = arith.constant 0 : index
    %186 = vector.load %arg29[%c0_76, %c0_77] : memref<1x128xf32, #tpu.memory_space<vmem>>, vector<1x128xf32>
    %c0_78 = arith.constant 0 : index
    %c0_79 = arith.constant 0 : index
    %187 = vector.load %arg30[%c0_78, %c0_79] : memref<128x32xf32, #tpu.memory_space<vmem>>, vector<128x32xf32>
    %c0_80 = arith.constant 0 : index
    %c0_81 = arith.constant 0 : index
    %188 = vector.load %arg31[%c0_80, %c0_81] : memref<1x32xf32, #tpu.memory_space<vmem>>, vector<1x32xf32>
    %cst_82 = arith.constant dense<0.000000e+00> : vector<20xf32>
    %189 = vector.multi_reduction <add>, %176, %cst_82 [1] : vector<20x32xf32> to vector<20xf32>
    %190 = vector.shape_cast %189 : vector<20xf32> to vector<20x1xf32>
    %cst_83 = arith.constant 3.200000e+01 : f32
    %191 = vector.broadcast %cst_83 : f32 to vector<20x1xf32>
    %192 = arith.divf %190, %191 : vector<20x1xf32>
    %193 = vector.broadcast %192 : vector<20x1xf32> to vector<20x32xf32>
    %194 = arith.subf %176, %193 : vector<20x32xf32>
    %195 = arith.mulf %194, %194 : vector<20x32xf32>
    %cst_84 = arith.constant dense<0.000000e+00> : vector<20xf32>
    %196 = vector.multi_reduction <add>, %195, %cst_84 [1] : vector<20x32xf32> to vector<20xf32>
    %197 = vector.shape_cast %196 : vector<20xf32> to vector<20x1xf32>
    %cst_85 = arith.constant 3.200000e+01 : f32
    %198 = vector.broadcast %cst_85 : f32 to vector<20x1xf32>
    %199 = arith.divf %197, %198 : vector<20x1xf32>
    %200 = vector.broadcast %192 : vector<20x1xf32> to vector<20x32xf32>
    %201 = arith.subf %176, %200 : vector<20x32xf32>
    %cst_86 = arith.constant 9.99999974E-6 : f32
    %202 = vector.broadcast %cst_86 : f32 to vector<20x1xf32>
    %203 = arith.addf %199, %202 : vector<20x1xf32>
    %204 = math.rsqrt %203 : vector<20x1xf32>
    %205 = vector.broadcast %204 : vector<20x1xf32> to vector<20x32xf32>
    %206 = arith.mulf %201, %205 : vector<20x32xf32>
    %207 = vector.broadcast %181 : vector<1x32xf32> to vector<20x32xf32>
    %208 = arith.mulf %206, %207 : vector<20x32xf32>
    %209 = vector.broadcast %182 : vector<1x32xf32> to vector<20x32xf32>
    %210 = arith.addf %208, %209 : vector<20x32xf32>
    %cst_87 = arith.constant dense<0.000000e+00> : vector<20x96xf32>
    %211 = tpu.matmul %210, %177, %cst_87 {dimension_numbers = #tpu.dot_dimension_numbers<[1], [0], [0], [1], [0, 0, 1, 1], [], []>} : vector<20x32xf32>, vector<32x96xf32>, vector<20x96xf32> -> vector<20x96xf32>
    %212 = vector.broadcast %178 : vector<1x96xf32> to vector<20x96xf32>
    %213 = arith.addf %211, %212 : vector<20x96xf32>
    %214 = vector.extract_strided_slice %213 {offsets = [0, 0], sizes = [20, 32], strides = [1, 1]} : vector<20x96xf32> to vector<20x32xf32>
    %215 = vector.extract_strided_slice %213 {offsets = [0, 32], sizes = [20, 32], strides = [1, 1]} : vector<20x96xf32> to vector<20x32xf32>
    %216 = vector.extract_strided_slice %213 {offsets = [0, 64], sizes = [20, 32], strides = [1, 1]} : vector<20x96xf32> to vector<20x32xf32>
    %217 = vector.extract_strided_slice %214 {offsets = [0, 0], sizes = [10, 8], strides = [1, 1]} : vector<20x32xf32> to vector<10x8xf32>
    %218 = vector.extract_strided_slice %215 {offsets = [0, 0], sizes = [10, 8], strides = [1, 1]} : vector<20x32xf32> to vector<10x8xf32>
    %219 = vector.extract_strided_slice %216 {offsets = [0, 0], sizes = [10, 8], strides = [1, 1]} : vector<20x32xf32> to vector<10x8xf32>
    %220 = vector.extract_strided_slice %214 {offsets = [0, 8], sizes = [10, 8], strides = [1, 1]} : vector<20x32xf32> to vector<10x8xf32>
    %221 = vector.extract_strided_slice %215 {offsets = [0, 8], sizes = [10, 8], strides = [1, 1]} : vector<20x32xf32> to vector<10x8xf32>
    %222 = vector.extract_strided_slice %216 {offsets = [0, 8], sizes = [10, 8], strides = [1, 1]} : vector<20x32xf32> to vector<10x8xf32>
    %223 = vector.extract_strided_slice %214 {offsets = [0, 16], sizes = [10, 8], strides = [1, 1]} : vector<20x32xf32> to vector<10x8xf32>
    %224 = vector.extract_strided_slice %215 {offsets = [0, 16], sizes = [10, 8], strides = [1, 1]} : vector<20x32xf32> to vector<10x8xf32>
    %225 = vector.extract_strided_slice %216 {offsets = [0, 16], sizes = [10, 8], strides = [1, 1]} : vector<20x32xf32> to vector<10x8xf32>
    %226 = vector.extract_strided_slice %214 {offsets = [0, 24], sizes = [10, 8], strides = [1, 1]} : vector<20x32xf32> to vector<10x8xf32>
    %227 = vector.extract_strided_slice %215 {offsets = [0, 24], sizes = [10, 8], strides = [1, 1]} : vector<20x32xf32> to vector<10x8xf32>
    %228 = vector.extract_strided_slice %216 {offsets = [0, 24], sizes = [10, 8], strides = [1, 1]} : vector<20x32xf32> to vector<10x8xf32>
    %229 = vector.extract_strided_slice %214 {offsets = [10, 0], sizes = [10, 8], strides = [1, 1]} : vector<20x32xf32> to vector<10x8xf32>
    %230 = vector.extract_strided_slice %215 {offsets = [10, 0], sizes = [10, 8], strides = [1, 1]} : vector<20x32xf32> to vector<10x8xf32>
    %231 = vector.extract_strided_slice %216 {offsets = [10, 0], sizes = [10, 8], strides = [1, 1]} : vector<20x32xf32> to vector<10x8xf32>
    %232 = vector.extract_strided_slice %214 {offsets = [10, 8], sizes = [10, 8], strides = [1, 1]} : vector<20x32xf32> to vector<10x8xf32>
    %233 = vector.extract_strided_slice %215 {offsets = [10, 8], sizes = [10, 8], strides = [1, 1]} : vector<20x32xf32> to vector<10x8xf32>
    %234 = vector.extract_strided_slice %216 {offsets = [10, 8], sizes = [10, 8], strides = [1, 1]} : vector<20x32xf32> to vector<10x8xf32>
    %235 = vector.extract_strided_slice %214 {offsets = [10, 16], sizes = [10, 8], strides = [1, 1]} : vector<20x32xf32> to vector<10x8xf32>
    %236 = vector.extract_strided_slice %215 {offsets = [10, 16], sizes = [10, 8], strides = [1, 1]} : vector<20x32xf32> to vector<10x8xf32>
    %237 = vector.extract_strided_slice %216 {offsets = [10, 16], sizes = [10, 8], strides = [1, 1]} : vector<20x32xf32> to vector<10x8xf32>
    %238 = vector.extract_strided_slice %214 {offsets = [10, 24], sizes = [10, 8], strides = [1, 1]} : vector<20x32xf32> to vector<10x8xf32>
    %239 = vector.extract_strided_slice %215 {offsets = [10, 24], sizes = [10, 8], strides = [1, 1]} : vector<20x32xf32> to vector<10x8xf32>
    %240 = vector.extract_strided_slice %216 {offsets = [10, 24], sizes = [10, 8], strides = [1, 1]} : vector<20x32xf32> to vector<10x8xf32>
    %241 = vector.shape_cast %217 : vector<10x8xf32> to vector<1x10x8xf32>
    %242 = vector.shape_cast %220 : vector<10x8xf32> to vector<1x10x8xf32>
    %243 = vector.shape_cast %223 : vector<10x8xf32> to vector<1x10x8xf32>
    %244 = vector.shape_cast %226 : vector<10x8xf32> to vector<1x10x8xf32>
    %245 = vector.shape_cast %229 : vector<10x8xf32> to vector<1x10x8xf32>
    %246 = vector.shape_cast %232 : vector<10x8xf32> to vector<1x10x8xf32>
    %247 = vector.shape_cast %235 : vector<10x8xf32> to vector<1x10x8xf32>
    %248 = vector.shape_cast %238 : vector<10x8xf32> to vector<1x10x8xf32>
    %249 = tpu.concatenate %241, %242, %243, %244, %245, %246, %247, %248 in 0 : vector<1x10x8xf32>, vector<1x10x8xf32>, vector<1x10x8xf32>, vector<1x10x8xf32>, vector<1x10x8xf32>, vector<1x10x8xf32>, vector<1x10x8xf32>, vector<1x10x8xf32> -> vector<8x10x8xf32>
    %250 = vector.shape_cast %218 : vector<10x8xf32> to vector<1x10x8xf32>
    %251 = vector.shape_cast %221 : vector<10x8xf32> to vector<1x10x8xf32>
    %252 = vector.shape_cast %224 : vector<10x8xf32> to vector<1x10x8xf32>
    %253 = vector.shape_cast %227 : vector<10x8xf32> to vector<1x10x8xf32>
    %254 = vector.shape_cast %230 : vector<10x8xf32> to vector<1x10x8xf32>
    %255 = vector.shape_cast %233 : vector<10x8xf32> to vector<1x10x8xf32>
    %256 = vector.shape_cast %236 : vector<10x8xf32> to vector<1x10x8xf32>
    %257 = vector.shape_cast %239 : vector<10x8xf32> to vector<1x10x8xf32>
    %258 = tpu.concatenate %250, %251, %252, %253, %254, %255, %256, %257 in 0 : vector<1x10x8xf32>, vector<1x10x8xf32>, vector<1x10x8xf32>, vector<1x10x8xf32>, vector<1x10x8xf32>, vector<1x10x8xf32>, vector<1x10x8xf32>, vector<1x10x8xf32> -> vector<8x10x8xf32>
    %259 = vector.shape_cast %219 : vector<10x8xf32> to vector<1x10x8xf32>
    %260 = vector.shape_cast %222 : vector<10x8xf32> to vector<1x10x8xf32>
    %261 = vector.shape_cast %225 : vector<10x8xf32> to vector<1x10x8xf32>
    %262 = vector.shape_cast %228 : vector<10x8xf32> to vector<1x10x8xf32>
    %263 = vector.shape_cast %231 : vector<10x8xf32> to vector<1x10x8xf32>
    %264 = vector.shape_cast %234 : vector<10x8xf32> to vector<1x10x8xf32>
    %265 = vector.shape_cast %237 : vector<10x8xf32> to vector<1x10x8xf32>
    %266 = vector.shape_cast %240 : vector<10x8xf32> to vector<1x10x8xf32>
    %267 = tpu.concatenate %259, %260, %261, %262, %263, %264, %265, %266 in 0 : vector<1x10x8xf32>, vector<1x10x8xf32>, vector<1x10x8xf32>, vector<1x10x8xf32>, vector<1x10x8xf32>, vector<1x10x8xf32>, vector<1x10x8xf32>, vector<1x10x8xf32> -> vector<8x10x8xf32>
    "tpu.trace_start"() <{level = 10 : i32, message = "nqd,nkd->nqk"}> : () -> ()
    %cst_88 = arith.constant dense<0.000000e+00> : vector<8x10x10xf32>
    %268 = tpu.matmul %249, %258, %cst_88 {dimension_numbers = #tpu.dot_dimension_numbers<[2], [2], [1], [1], [0, 0, 0, 1, 1, 1], [0], [0]>} : vector<8x10x8xf32>, vector<8x10x8xf32>, vector<8x10x10xf32> -> vector<8x10x10xf32>
    "tpu.trace_stop"() : () -> ()
    %cst_89 = arith.constant 0.353553385 : f32
    %269 = vector.broadcast %cst_89 : f32 to vector<8x10x10xf32>
    %270 = arith.mulf %268, %269 : vector<8x10x10xf32>
    %cst_90 = arith.constant dense<0xFF800000> : vector<8x10xf32>
    %271 = vector.multi_reduction <maximumf>, %270, %cst_90 [2] : vector<8x10x10xf32> to vector<8x10xf32>
    %272 = vector.shape_cast %271 : vector<8x10xf32> to vector<8x10x1xf32>
    %273 = vector.broadcast %272 : vector<8x10x1xf32> to vector<8x10x10xf32>
    %274 = arith.subf %270, %273 : vector<8x10x10xf32>
    %275 = math.exp %274 : vector<8x10x10xf32>
    %cst_91 = arith.constant dense<0.000000e+00> : vector<8x10xf32>
    %276 = vector.multi_reduction <add>, %275, %cst_91 [2] : vector<8x10x10xf32> to vector<8x10xf32>
    %277 = vector.shape_cast %276 : vector<8x10xf32> to vector<8x10x1xf32>
    %278 = tpu.reciprocal %277 {approx = true} : vector<8x10x1xf32> -> vector<8x10x1xf32>
    %279 = vector.broadcast %278 : vector<8x10x1xf32> to vector<8x10x10xf32>
    %280 = arith.mulf %275, %279 : vector<8x10x10xf32>
    "tpu.trace_start"() <{level = 10 : i32, message = "nqk,nkd->nqd"}> : () -> ()
    %cst_92 = arith.constant dense<0.000000e+00> : vector<8x10x8xf32>
    %281 = tpu.matmul %280, %267, %cst_92 {dimension_numbers = #tpu.dot_dimension_numbers<[2], [1], [1], [2], [0, 0, 0, 1, 1, 2], [0], [0]>} : vector<8x10x10xf32>, vector<8x10x8xf32>, vector<8x10x8xf32> -> vector<8x10x8xf32>
    "tpu.trace_stop"() : () -> ()
    %282 = vector.extract_strided_slice %281 {offsets = [0, 0, 0], sizes = [1, 10, 8], strides = [1, 1, 1]} : vector<8x10x8xf32> to vector<1x10x8xf32>
    %283 = vector.shape_cast %282 : vector<1x10x8xf32> to vector<10x8xf32>
    %284 = vector.extract_strided_slice %281 {offsets = [1, 0, 0], sizes = [1, 10, 8], strides = [1, 1, 1]} : vector<8x10x8xf32> to vector<1x10x8xf32>
    %285 = vector.shape_cast %284 : vector<1x10x8xf32> to vector<10x8xf32>
    %286 = vector.extract_strided_slice %281 {offsets = [2, 0, 0], sizes = [1, 10, 8], strides = [1, 1, 1]} : vector<8x10x8xf32> to vector<1x10x8xf32>
    %287 = vector.shape_cast %286 : vector<1x10x8xf32> to vector<10x8xf32>
    %288 = vector.extract_strided_slice %281 {offsets = [3, 0, 0], sizes = [1, 10, 8], strides = [1, 1, 1]} : vector<8x10x8xf32> to vector<1x10x8xf32>
    %289 = vector.shape_cast %288 : vector<1x10x8xf32> to vector<10x8xf32>
    %290 = tpu.concatenate %283, %285, %287, %289 in 1 : vector<10x8xf32>, vector<10x8xf32>, vector<10x8xf32>, vector<10x8xf32> -> vector<10x32xf32>
    %291 = vector.extract_strided_slice %281 {offsets = [4, 0, 0], sizes = [1, 10, 8], strides = [1, 1, 1]} : vector<8x10x8xf32> to vector<1x10x8xf32>
    %292 = vector.shape_cast %291 : vector<1x10x8xf32> to vector<10x8xf32>
    %293 = vector.extract_strided_slice %281 {offsets = [5, 0, 0], sizes = [1, 10, 8], strides = [1, 1, 1]} : vector<8x10x8xf32> to vector<1x10x8xf32>
    %294 = vector.shape_cast %293 : vector<1x10x8xf32> to vector<10x8xf32>
    %295 = vector.extract_strided_slice %281 {offsets = [6, 0, 0], sizes = [1, 10, 8], strides = [1, 1, 1]} : vector<8x10x8xf32> to vector<1x10x8xf32>
    %296 = vector.shape_cast %295 : vector<1x10x8xf32> to vector<10x8xf32>
    %297 = vector.extract_strided_slice %281 {offsets = [7, 0, 0], sizes = [1, 10, 8], strides = [1, 1, 1]} : vector<8x10x8xf32> to vector<1x10x8xf32>
    %298 = vector.shape_cast %297 : vector<1x10x8xf32> to vector<10x8xf32>
    %299 = tpu.concatenate %292, %294, %296, %298 in 1 : vector<10x8xf32>, vector<10x8xf32>, vector<10x8xf32>, vector<10x8xf32> -> vector<10x32xf32>
    %300 = tpu.concatenate %290, %299 in 0 : vector<10x32xf32>, vector<10x32xf32> -> vector<20x32xf32>
    %cst_93 = arith.constant dense<0.000000e+00> : vector<20x32xf32>
    %301 = tpu.matmul %300, %179, %cst_93 {dimension_numbers = #tpu.dot_dimension_numbers<[1], [0], [0], [1], [0, 0, 1, 1], [], []>} : vector<20x32xf32>, vector<32x32xf32>, vector<20x32xf32> -> vector<20x32xf32>
    %302 = vector.broadcast %180 : vector<1x32xf32> to vector<20x32xf32>
    %303 = arith.addf %301, %302 : vector<20x32xf32>
    %304 = arith.addf %176, %303 : vector<20x32xf32>
    %cst_94 = arith.constant dense<0.000000e+00> : vector<20xf32>
    %305 = vector.multi_reduction <add>, %304, %cst_94 [1] : vector<20x32xf32> to vector<20xf32>
    %306 = vector.shape_cast %305 : vector<20xf32> to vector<20x1xf32>
    %cst_95 = arith.constant 3.200000e+01 : f32
    %307 = vector.broadcast %cst_95 : f32 to vector<20x1xf32>
    %308 = arith.divf %306, %307 : vector<20x1xf32>
    %309 = vector.broadcast %308 : vector<20x1xf32> to vector<20x32xf32>
    %310 = arith.subf %304, %309 : vector<20x32xf32>
    %311 = arith.mulf %310, %310 : vector<20x32xf32>
    %cst_96 = arith.constant dense<0.000000e+00> : vector<20xf32>
    %312 = vector.multi_reduction <add>, %311, %cst_96 [1] : vector<20x32xf32> to vector<20xf32>
    %313 = vector.shape_cast %312 : vector<20xf32> to vector<20x1xf32>
    %cst_97 = arith.constant 3.200000e+01 : f32
    %314 = vector.broadcast %cst_97 : f32 to vector<20x1xf32>
    %315 = arith.divf %313, %314 : vector<20x1xf32>
    %316 = vector.broadcast %308 : vector<20x1xf32> to vector<20x32xf32>
    %317 = arith.subf %304, %316 : vector<20x32xf32>
    %cst_98 = arith.constant 9.99999974E-6 : f32
    %318 = vector.broadcast %cst_98 : f32 to vector<20x1xf32>
    %319 = arith.addf %315, %318 : vector<20x1xf32>
    %320 = math.rsqrt %319 : vector<20x1xf32>
    %321 = vector.broadcast %320 : vector<20x1xf32> to vector<20x32xf32>
    %322 = arith.mulf %317, %321 : vector<20x32xf32>
    %323 = vector.broadcast %183 : vector<1x32xf32> to vector<20x32xf32>
    %324 = arith.mulf %322, %323 : vector<20x32xf32>
    %325 = vector.broadcast %184 : vector<1x32xf32> to vector<20x32xf32>
    %326 = arith.addf %324, %325 : vector<20x32xf32>
    %cst_99 = arith.constant dense<0.000000e+00> : vector<20x128xf32>
    %327 = tpu.matmul %326, %185, %cst_99 {dimension_numbers = #tpu.dot_dimension_numbers<[1], [0], [0], [1], [0, 0, 1, 1], [], []>} : vector<20x32xf32>, vector<32x128xf32>, vector<20x128xf32> -> vector<20x128xf32>
    %328 = vector.broadcast %186 : vector<1x128xf32> to vector<20x128xf32>
    %329 = arith.addf %327, %328 : vector<20x128xf32>
    %cst_100 = arith.constant 0.000000e+00 : f32
    %330 = vector.broadcast %cst_100 : f32 to vector<20x128xf32>
    %331 = arith.maximumf %329, %330 : vector<20x128xf32>
    %cst_101 = arith.constant dense<0.000000e+00> : vector<20x32xf32>
    %332 = tpu.matmul %331, %187, %cst_101 {dimension_numbers = #tpu.dot_dimension_numbers<[1], [0], [0], [1], [0, 0, 1, 1], [], []>} : vector<20x128xf32>, vector<128x32xf32>, vector<20x32xf32> -> vector<20x32xf32>
    %333 = vector.broadcast %188 : vector<1x32xf32> to vector<20x32xf32>
    %334 = arith.addf %332, %333 : vector<20x32xf32>
    %335 = arith.addf %304, %334 : vector<20x32xf32>
    %336 = vector.extract_strided_slice %335 {offsets = [0, 0], sizes = [1, 32], strides = [1, 1]} : vector<20x32xf32> to vector<1x32xf32>
    %337 = vector.extract_strided_slice %335 {offsets = [1, 0], sizes = [1, 32], strides = [1, 1]} : vector<20x32xf32> to vector<1x32xf32>
    %338 = tpu.concatenate %336, %337 in 1 : vector<1x32xf32>, vector<1x32xf32> -> vector<1x64xf32>
    %339 = vector.extract_strided_slice %335 {offsets = [10, 0], sizes = [1, 32], strides = [1, 1]} : vector<20x32xf32> to vector<1x32xf32>
    %340 = vector.extract_strided_slice %335 {offsets = [11, 0], sizes = [1, 32], strides = [1, 1]} : vector<20x32xf32> to vector<1x32xf32>
    %341 = tpu.concatenate %339, %340 in 1 : vector<1x32xf32>, vector<1x32xf32> -> vector<1x64xf32>
    %342 = tpu.concatenate %338, %341 in 0 : vector<1x64xf32>, vector<1x64xf32> -> vector<2x64xf32>
    %c0_102 = arith.constant 0 : index
    %c0_103 = arith.constant 0 : index
    %343 = vector.load %arg32[%c0_102, %c0_103] : memref<64x16xf32, #tpu.memory_space<vmem>>, vector<64x16xf32>
    %cst_104 = arith.constant dense<0.000000e+00> : vector<2x16xf32>
    %344 = tpu.matmul %342, %343, %cst_104 {dimension_numbers = #tpu.dot_dimension_numbers<[1], [0], [0], [1], [0, 0, 1, 1], [], []>} : vector<2x64xf32>, vector<64x16xf32>, vector<2x16xf32> -> vector<2x16xf32>
    %c0_105 = arith.constant 0 : index
    %c0_106 = arith.constant 0 : index
    %345 = vector.load %arg33[%c0_105, %c0_106] : memref<1x16xf32, #tpu.memory_space<vmem>>, vector<1x16xf32>
    %346 = vector.broadcast %345 : vector<1x16xf32> to vector<2x16xf32>
    %347 = arith.addf %344, %346 : vector<2x16xf32>
    %348 = vector.extract_strided_slice %347 {offsets = [0, 0], sizes = [2, 8], strides = [1, 1]} : vector<2x16xf32> to vector<2x8xf32>
    %349 = vector.extract_strided_slice %347 {offsets = [0, 8], sizes = [2, 8], strides = [1, 1]} : vector<2x16xf32> to vector<2x8xf32>
    %cst_107 = arith.constant 5.000000e-01 : f32
    %350 = vector.broadcast %cst_107 : f32 to vector<2x8xf32>
    %351 = arith.mulf %350, %349 : vector<2x8xf32>
    %352 = math.exp %351 : vector<2x8xf32>
    %c0_108 = arith.constant 0 : index
    %c0_109 = arith.constant 0 : index
    %353 = vector.load %arg34[%c0_108, %c0_109] : memref<2x8xf32, #tpu.memory_space<vmem>>, vector<2x8xf32>
    %354 = arith.mulf %352, %353 : vector<2x8xf32>
    %355 = arith.addf %348, %354 : vector<2x8xf32>
    %cst_110 = arith.constant 0.000000e+00 : f32
    %356 = vector.broadcast %cst_110 : f32 to vector<2x104xf32>
    %357 = tpu.concatenate %355, %348, %352, %356 in 1 : vector<2x8xf32>, vector<2x8xf32>, vector<2x8xf32>, vector<2x104xf32> -> vector<2x128xf32>
    %c0_111 = arith.constant 0 : index
    %c0_112 = arith.constant 0 : index
    %358 = vector.load %arg35[%c0_111, %c0_112] : memref<2x128xf32, #tpu.memory_space<vmem>>, vector<2x128xf32>
    tpu.vector_store %arg35[%c0_111, %c0_112], %357 {strides = array<i32>} : memref<2x128xf32, #tpu.memory_space<vmem>>, vector<2x128xf32>,
    return
  }
  func.func @transform_0(%arg0: i32) -> (i32, i32) {
    %c0_i32 = arith.constant 0 : i32
    %c0_i32_0 = arith.constant 0 : i32
    %c0_i32_1 = arith.constant 0 : i32
    return %c0_i32, %c0_i32_0 : i32, i32
  }
  func.func @transform_1(%arg0: i32) -> (i32, i32) {
    %c0_i32 = arith.constant 0 : i32
    %c0_i32_0 = arith.constant 0 : i32
    %c0_i32_1 = arith.constant 0 : i32
    return %c0_i32, %c0_i32_0 : i32, i32
  }
  func.func @transform_2(%arg0: i32) -> (i32, i32) {
    %c0_i32 = arith.constant 0 : i32
    %c0_i32_0 = arith.constant 0 : i32
    %c0_i32_1 = arith.constant 0 : i32
    return %c0_i32, %c0_i32_0 : i32, i32
  }
  func.func @transform_3(%arg0: i32) -> (i32, i32) {
    %c0_i32 = arith.constant 0 : i32
    %c0_i32_0 = arith.constant 0 : i32
    %c0_i32_1 = arith.constant 0 : i32
    return %c0_i32, %c0_i32_0 : i32, i32
  }
  func.func @transform_4(%arg0: i32) -> (i32, i32) {
    %c0_i32 = arith.constant 0 : i32
    %c0_i32_0 = arith.constant 0 : i32
    %c0_i32_1 = arith.constant 0 : i32
    return %c0_i32, %c0_i32_0 : i32, i32
  }
  func.func @transform_5(%arg0: i32) -> (i32, i32) {
    %c0_i32 = arith.constant 0 : i32
    %c0_i32_0 = arith.constant 0 : i32
    %c0_i32_1 = arith.constant 0 : i32
    return %c0_i32, %c0_i32_0 : i32, i32
  }
  func.func @transform_6(%arg0: i32) -> (i32, i32) {
    %c0_i32 = arith.constant 0 : i32
    %c0_i32_0 = arith.constant 0 : i32
    %c0_i32_1 = arith.constant 0 : i32
    return %c0_i32, %c0_i32_0 : i32, i32
  }
  func.func @transform_7(%arg0: i32) -> (i32, i32) {
    %c0_i32 = arith.constant 0 : i32
    %c0_i32_0 = arith.constant 0 : i32
    %c0_i32_1 = arith.constant 0 : i32
    return %c0_i32, %c0_i32_0 : i32, i32
  }
  func.func @transform_8(%arg0: i32) -> (i32, i32) {
    %c0_i32 = arith.constant 0 : i32
    %c0_i32_0 = arith.constant 0 : i32
    %c0_i32_1 = arith.constant 0 : i32
    return %c0_i32, %c0_i32_0 : i32, i32
  }
  func.func @transform_9(%arg0: i32) -> (i32, i32) {
    %c0_i32 = arith.constant 0 : i32
    %c0_i32_0 = arith.constant 0 : i32
    %c0_i32_1 = arith.constant 0 : i32
    return %c0_i32, %c0_i32_0 : i32, i32
  }
  func.func @transform_10(%arg0: i32) -> (i32, i32) {
    %c0_i32 = arith.constant 0 : i32
    %c0_i32_0 = arith.constant 0 : i32
    %c0_i32_1 = arith.constant 0 : i32
    return %c0_i32, %c0_i32_0 : i32, i32
  }
  func.func @transform_11(%arg0: i32) -> (i32, i32) {
    %c0_i32 = arith.constant 0 : i32
    %c0_i32_0 = arith.constant 0 : i32
    %c0_i32_1 = arith.constant 0 : i32
    return %c0_i32, %c0_i32_0 : i32, i32
  }
  func.func @transform_12(%arg0: i32) -> (i32, i32) {
    %c0_i32 = arith.constant 0 : i32
    %c0_i32_0 = arith.constant 0 : i32
    %c0_i32_1 = arith.constant 0 : i32
    return %c0_i32, %c0_i32_0 : i32, i32
  }
  func.func @transform_13(%arg0: i32) -> (i32, i32) {
    %c0_i32 = arith.constant 0 : i32
    %c0_i32_0 = arith.constant 0 : i32
    %c0_i32_1 = arith.constant 0 : i32
    return %c0_i32, %c0_i32_0 : i32, i32
  }
  func.func @transform_14(%arg0: i32) -> (i32, i32) {
    %c0_i32 = arith.constant 0 : i32
    %c0_i32_0 = arith.constant 0 : i32
    %c0_i32_1 = arith.constant 0 : i32
    return %c0_i32, %c0_i32_0 : i32, i32
  }
  func.func @transform_15(%arg0: i32) -> (i32, i32) {
    %c0_i32 = arith.constant 0 : i32
    %c0_i32_0 = arith.constant 0 : i32
    %c0_i32_1 = arith.constant 0 : i32
    return %c0_i32, %c0_i32_0 : i32, i32
  }
  func.func @transform_16(%arg0: i32) -> (i32, i32) {
    %c0_i32 = arith.constant 0 : i32
    %c0_i32_0 = arith.constant 0 : i32
    %c0_i32_1 = arith.constant 0 : i32
    return %c0_i32, %c0_i32_0 : i32, i32
  }
  func.func @transform_17(%arg0: i32) -> (i32, i32) {
    %c0_i32 = arith.constant 0 : i32
    %c0_i32_0 = arith.constant 0 : i32
    %c0_i32_1 = arith.constant 0 : i32
    return %c0_i32, %c0_i32_0 : i32, i32
  }
  func.func @transform_18(%arg0: i32) -> (i32, i32) {
    %c0_i32 = arith.constant 0 : i32
    %c0_i32_0 = arith.constant 0 : i32
    %c0_i32_1 = arith.constant 0 : i32
    return %c0_i32, %c0_i32_0 : i32, i32
  }
  func.func @transform_19(%arg0: i32) -> (i32, i32) {
    %c0_i32 = arith.constant 0 : i32
    %c0_i32_0 = arith.constant 0 : i32
    %c0_i32_1 = arith.constant 0 : i32
    return %c0_i32, %c0_i32_0 : i32, i32
  }
  func.func @transform_20(%arg0: i32) -> (i32, i32) {
    %c0_i32 = arith.constant 0 : i32
    %c0_i32_0 = arith.constant 0 : i32
    %c0_i32_1 = arith.constant 0 : i32
    return %c0_i32, %c0_i32_0 : i32, i32
  }
  func.func @transform_21(%arg0: i32) -> (i32, i32) {
    %c0_i32 = arith.constant 0 : i32
    %c0_i32_0 = arith.constant 0 : i32
    %c0_i32_1 = arith.constant 0 : i32
    return %c0_i32, %c0_i32_0 : i32, i32
  }
  func.func @transform_22(%arg0: i32) -> (i32, i32) {
    %c0_i32 = arith.constant 0 : i32
    %c0_i32_0 = arith.constant 0 : i32
    %c0_i32_1 = arith.constant 0 : i32
    return %c0_i32, %c0_i32_0 : i32, i32
  }
  func.func @transform_23(%arg0: i32) -> (i32, i32) {
    %c0_i32 = arith.constant 0 : i32
    %c0_i32_0 = arith.constant 0 : i32
    %c0_i32_1 = arith.constant 0 : i32
    return %c0_i32, %c0_i32_0 : i32, i32
  }
  func.func @transform_24(%arg0: i32) -> (i32, i32) {
    %c0_i32 = arith.constant 0 : i32
    %c0_i32_0 = arith.constant 0 : i32
    %c0_i32_1 = arith.constant 0 : i32
    return %c0_i32, %c0_i32_0 : i32, i32
  }
  func.func @transform_25(%arg0: i32) -> (i32, i32) {
    %c0_i32 = arith.constant 0 : i32
    %c0_i32_0 = arith.constant 0 : i32
    %c0_i32_1 = arith.constant 0 : i32
    return %c0_i32, %c0_i32_0 : i32, i32
  }
  func.func @transform_26(%arg0: i32) -> (i32, i32) {
    %c0_i32 = arith.constant 0 : i32
    %c0_i32_0 = arith.constant 0 : i32
    %c0_i32_1 = arith.constant 0 : i32
    return %c0_i32, %c0_i32_0 : i32, i32
  }
  func.func @transform_27(%arg0: i32) -> (i32, i32) {
    %c0_i32 = arith.constant 0 : i32
    %c0_i32_0 = arith.constant 0 : i32
    %c0_i32_1 = arith.constant 0 : i32
    return %c0_i32, %c0_i32_0 : i32, i32
  }
  func.func @transform_28(%arg0: i32) -> (i32, i32) {
    %c0_i32 = arith.constant 0 : i32
    %c0_i32_0 = arith.constant 0 : i32
    %c0_i32_1 = arith.constant 0 : i32
    return %c0_i32, %c0_i32_0 : i32, i32
  }
  func.func @transform_29(%arg0: i32) -> (i32, i32) {
    %c0_i32 = arith.constant 0 : i32
    %c0_i32_0 = arith.constant 0 : i32
    %c0_i32_1 = arith.constant 0 : i32
    return %c0_i32, %c0_i32_0 : i32, i32
  }
  func.func @transform_30(%arg0: i32) -> (i32, i32) {
    %c0_i32 = arith.constant 0 : i32
    %c0_i32_0 = arith.constant 0 : i32
    %c0_i32_1 = arith.constant 0 : i32
    return %c0_i32, %c0_i32_0 : i32, i32
  }
  func.func @transform_31(%arg0: i32) -> (i32, i32) {
    %c0_i32 = arith.constant 0 : i32
    %c0_i32_0 = arith.constant 0 : i32
    %c0_i32_1 = arith.constant 0 : i32
    return %c0_i32, %c0_i32_0 : i32, i32
  }
  func.func @transform_32(%arg0: i32) -> (i32, i32) {
    %c0_i32 = arith.constant 0 : i32
    %c0_i32_0 = arith.constant 0 : i32
    %c0_i32_1 = arith.constant 0 : i32
    return %c0_i32, %c0_i32_0 : i32, i32
  }
  func.func @transform_33(%arg0: i32) -> (i32, i32) {
    %c0_i32 = arith.constant 0 : i32
    %c0_i32_0 = arith.constant 0 : i32
    %c0_i32_1 = arith.constant 0 : i32
    return %c0_i32, %c0_i32_0 : i32, i32
  }
  func.func @transform_34(%arg0: i32) -> (i32, i32) {
    %c0_i32 = arith.constant 0 : i32
    %c0_i32_0 = arith.constant 0 : i32
    %c0_i32_1 = arith.constant 0 : i32
    return %c0_i32, %c0_i32_0 : i32, i32
  }
}

</mosaic_0001>

<llo_original>
// kernel: tpu_custom_call.1
$region0: #{tpu_custom_call.1}
  #allocation0 [shape = 'u32[]', space=smem, size = 0x4, offset = 0x4, fixed_abs, tag = 'smem constant byte address 0x4 - core index']
  #allocation1 [shape = 'u32[144,128]{1,0:T(1,128)}', space=vmem, size = 0x12000, scoped, tag = 'internal scratch']
  %s0 = inlined_call_operand.smem [shape: u32[35], index: -1, kind: input, shape index: {}]
  %s1 = sld [smem:[%s0]]
  %s2 = scalar_lea.smem %s0, 1
  %s3 = sld [smem:[%s2]]
  %s4 = scalar_lea.smem %s0, 2
  %s5 = sld [smem:[%s4]]
  %s6 = scalar_lea.smem %s0, 3
  %s7 = sld [smem:[%s6]]
  %s8 = scalar_lea.smem %s0, 4
  %s9 = sld [smem:[%s8]]
  %s10 = scalar_lea.smem %s0, 5
  %s11 = sld [smem:[%s10]]
  %s12 = scalar_lea.smem %s0, 6
  %s13 = sld [smem:[%s12]]
  %s14 = scalar_lea.smem %s0, 7
  %s15 = sld [smem:[%s14]]
  %s16 = scalar_lea.smem %s0, 8
  %s17 = sld [smem:[%s16]]
  %s18 = scalar_lea.smem %s0, 9
  %s19 = sld [smem:[%s18]]
  %s20 = scalar_lea.smem %s0, 10
  %s21 = sld [smem:[%s20]]
  %s22 = scalar_lea.smem %s0, 11
  %s23 = sld [smem:[%s22]]
  %s24 = scalar_lea.smem %s0, 12
  %s25 = sld [smem:[%s24]]
  %s26 = scalar_lea.smem %s0, 13
  %s27 = sld [smem:[%s26]]
  %s28 = scalar_lea.smem %s0, 14
  %s29 = sld [smem:[%s28]]
  %s30 = scalar_lea.smem %s0, 15
  %s31 = sld [smem:[%s30]]
  %s32 = scalar_lea.smem %s0, 16
  %s33 = sld [smem:[%s32]]
  %s34 = scalar_lea.smem %s0, 17
  %s35 = sld [smem:[%s34]]
  %s36 = scalar_lea.smem %s0, 18
  %s37 = sld [smem:[%s36]]
  %s38 = scalar_lea.smem %s0, 19
  %s39 = sld [smem:[%s38]]
  %s40 = scalar_lea.smem %s0, 20
  %s41 = sld [smem:[%s40]]
  %s42 = scalar_lea.smem %s0, 21
  %s43 = sld [smem:[%s42]]
  %s44 = scalar_lea.smem %s0, 22
  %s45 = sld [smem:[%s44]]
  %s46 = scalar_lea.smem %s0, 23
  %s47 = sld [smem:[%s46]]
  %s48 = scalar_lea.smem %s0, 24
  %s49 = sld [smem:[%s48]]
  %s50 = scalar_lea.smem %s0, 25
  %s51 = sld [smem:[%s50]]
  %s52 = scalar_lea.smem %s0, 26
  %s53 = sld [smem:[%s52]]
  %s54 = scalar_lea.smem %s0, 27
  %s55 = sld [smem:[%s54]]
  %s56 = scalar_lea.smem %s0, 28
  %s57 = sld [smem:[%s56]]
  %s58 = scalar_lea.smem %s0, 29
  %s59 = sld [smem:[%s58]]
  %s60 = scalar_lea.smem %s0, 30
  %s61 = sld [smem:[%s60]]
  %s62 = scalar_lea.smem %s0, 31
  %s63 = sld [smem:[%s62]]
  %s64 = scalar_lea.smem %s0, 32
  %s65 = sld [smem:[%s64]]
  %s66 = scalar_lea.smem %s0, 33
  %s67 = sld [smem:[%s66]]
  %s68 = scalar_lea.smem %s0, 34
  %s69 = sld [smem:[%s68]]
  %s70 = sld [smem:[#allocation0]]
  $region146: #{tpu_custom_call.1} parent=0
    _
  %s72 = ssub.s32 1, %s70
  %s73 = scalar_select 0, %s72, %s70
  $region1: #{tpu_custom_call.1} parent=0
    #allocation2 [shape = 'u8[1024]{0}', space=vmem, size = 0x400, scoped, tag = 'output window, operand 0, single buffered']
    #allocation3 [shape = 's32[1]{0}', space=sflag, size = 0x4, scoped, tag = 'scoped memory for tpu_custom_call.1']
    %74 = vsyncpa [#allocation3], 0
    // Predicated region
    $region2: #{tpu_custom_call.1} parent=1 // pred_check
      _
    $region3: #{tpu_custom_call.1} parent=1 // pred_check_branch
      %76 = sbr.rel (0) target = $region5
    $region4: #{tpu_custom_call.1} parent=1 // pred_region
      _
    $region5: #{tpu_custom_call.1} parent=1 // pred_fallthru
      _
    // Predicated region
    $region6: #{tpu_custom_call.1} parent=1 // pred_check
      _
    $region7: #{tpu_custom_call.1} parent=1 // pred_check_branch
      %78 = sbr.rel (0) target = $region9
    $region8: #{tpu_custom_call.1} parent=1 // pred_region
      _
    $region9: #{tpu_custom_call.1} parent=1 // pred_fallthru
      _
    // Predicated region
    $region10: #{tpu_custom_call.1} parent=1 // pred_check
      _
    $region11: #{tpu_custom_call.1} parent=1 // pred_check_branch
      %80 = sbr.rel (0) target = $region13
    $region12: #{tpu_custom_call.1} parent=1 // pred_region
      _
    $region13: #{tpu_custom_call.1} parent=1 // pred_fallthru
      _
    // Predicated region
    $region14: #{tpu_custom_call.1} parent=1 // pred_check
      _
    $region15: #{tpu_custom_call.1} parent=1 // pred_check_branch
      %82 = sbr.rel (0) target = $region17
    $region16: #{tpu_custom_call.1} parent=1 // pred_region
      _
    $region17: #{tpu_custom_call.1} parent=1 // pred_fallthru
      _
    // Predicated region
    $region18: #{tpu_custom_call.1} parent=1 // pred_check
      _
    $region19: #{tpu_custom_call.1} parent=1 // pred_check_branch
      %84 = sbr.rel (0) target = $region21
    $region20: #{tpu_custom_call.1} parent=1 // pred_region
      _
    $region21: #{tpu_custom_call.1} parent=1 // pred_fallthru
      _
    // Predicated region
    $region22: #{tpu_custom_call.1} parent=1 // pred_check
      _
    $region23: #{tpu_custom_call.1} parent=1 // pred_check_branch
      %86 = sbr.rel (0) target = $region25
    $region24: #{tpu_custom_call.1} parent=1 // pred_region
      _
    $region25: #{tpu_custom_call.1} parent=1 // pred_fallthru
      _
    // Predicated region
    $region26: #{tpu_custom_call.1} parent=1 // pred_check
      _
    $region27: #{tpu_custom_call.1} parent=1 // pred_check_branch
      %88 = sbr.rel (0) target = $region29
    $region28: #{tpu_custom_call.1} parent=1 // pred_region
      _
    $region29: #{tpu_custom_call.1} parent=1 // pred_fallthru
      _
    // Predicated region
    $region30: #{tpu_custom_call.1} parent=1 // pred_check
      _
    $region31: #{tpu_custom_call.1} parent=1 // pred_check_branch
      %90 = sbr.rel (0) target = $region33
    $region32: #{tpu_custom_call.1} parent=1 // pred_region
      _
    $region33: #{tpu_custom_call.1} parent=1 // pred_fallthru
      _
    // Predicated region
    $region34: #{tpu_custom_call.1} parent=1 // pred_check
      _
    $region35: #{tpu_custom_call.1} parent=1 // pred_check_branch
      %92 = sbr.rel (0) target = $region37
    $region36: #{tpu_custom_call.1} parent=1 // pred_region
      _
    $region37: #{tpu_custom_call.1} parent=1 // pred_fallthru
      _
    // Predicated region
    $region38: #{tpu_custom_call.1} parent=1 // pred_check
      _
    $region39: #{tpu_custom_call.1} parent=1 // pred_check_branch
      %94 = sbr.rel (0) target = $region41
    $region40: #{tpu_custom_call.1} parent=1 // pred_region
      _
    $region41: #{tpu_custom_call.1} parent=1 // pred_fallthru
      _
    // Predicated region
    $region42: #{tpu_custom_call.1} parent=1 // pred_check
      _
    $region43: #{tpu_custom_call.1} parent=1 // pred_check_branch
      %96 = sbr.rel (0) target = $region45
    $region44: #{tpu_custom_call.1} parent=1 // pred_region
      _
    $region45: #{tpu_custom_call.1} parent=1 // pred_fallthru
      _
    // Predicated region
    $region46: #{tpu_custom_call.1} parent=1 // pred_check
      _
    $region47: #{tpu_custom_call.1} parent=1 // pred_check_branch
      %98 = sbr.rel (0) target = $region49
    $region48: #{tpu_custom_call.1} parent=1 // pred_region
      _
    $region49: #{tpu_custom_call.1} parent=1 // pred_fallthru
      _
    // Predicated region
    $region50: #{tpu_custom_call.1} parent=1 // pred_check
      _
    $region51: #{tpu_custom_call.1} parent=1 // pred_check_branch
      %100 = sbr.rel (0) target = $region53
    $region52: #{tpu_custom_call.1} parent=1 // pred_region
      _
    $region53: #{tpu_custom_call.1} parent=1 // pred_fallthru
      _
    // Predicated region
    $region54: #{tpu_custom_call.1} parent=1 // pred_check
      _
    $region55: #{tpu_custom_call.1} parent=1 // pred_check_branch
      %102 = sbr.rel (0) target = $region57
    $region56: #{tpu_custom_call.1} parent=1 // pred_region
      _
    $region57: #{tpu_custom_call.1} parent=1 // pred_fallthru
      _
    // Predicated region
    $region58: #{tpu_custom_call.1} parent=1 // pred_check
      _
    $region59: #{tpu_custom_call.1} parent=1 // pred_check_branch
      %104 = sbr.rel (0) target = $region61
    $region60: #{tpu_custom_call.1} parent=1 // pred_region
      _
    $region61: #{tpu_custom_call.1} parent=1 // pred_fallthru
      _
    // Predicated region
    $region62: #{tpu_custom_call.1} parent=1 // pred_check
      _
    $region63: #{tpu_custom_call.1} parent=1 // pred_check_branch
      %106 = sbr.rel (0) target = $region65
    $region64: #{tpu_custom_call.1} parent=1 // pred_region
      _
    $region65: #{tpu_custom_call.1} parent=1 // pred_fallthru
      _
    // Predicated region
    $region66: #{tpu_custom_call.1} parent=1 // pred_check
      _
    $region67: #{tpu_custom_call.1} parent=1 // pred_check_branch
      %108 = sbr.rel (0) target = $region69
    $region68: #{tpu_custom_call.1} parent=1 // pred_region
      _
    $region69: #{tpu_custom_call.1} parent=1 // pred_fallthru
      _
    // Predicated region
    $region70: #{tpu_custom_call.1} parent=1 // pred_check
      _
    $region71: #{tpu_custom_call.1} parent=1 // pred_check_branch
      %110 = sbr.rel (0) target = $region73
    $region72: #{tpu_custom_call.1} parent=1 // pred_region
      _
    $region73: #{tpu_custom_call.1} parent=1 // pred_fallthru
      _
    // Predicated region
    $region74: #{tpu_custom_call.1} parent=1 // pred_check
      _
    $region75: #{tpu_custom_call.1} parent=1 // pred_check_branch
      %112 = sbr.rel (0) target = $region77
    $region76: #{tpu_custom_call.1} parent=1 // pred_region
      _
    $region77: #{tpu_custom_call.1} parent=1 // pred_fallthru
      _
    // Predicated region
    $region78: #{tpu_custom_call.1} parent=1 // pred_check
      _
    $region79: #{tpu_custom_call.1} parent=1 // pred_check_branch
      %114 = sbr.rel (0) target = $region81
    $region80: #{tpu_custom_call.1} parent=1 // pred_region
      _
    $region81: #{tpu_custom_call.1} parent=1 // pred_fallthru
      _
    // Predicated region
    $region82: #{tpu_custom_call.1} parent=1 // pred_check
      _
    $region83: #{tpu_custom_call.1} parent=1 // pred_check_branch
      %116 = sbr.rel (0) target = $region85
    $region84: #{tpu_custom_call.1} parent=1 // pred_region
      _
    $region85: #{tpu_custom_call.1} parent=1 // pred_fallthru
      _
    // Predicated region
    $region86: #{tpu_custom_call.1} parent=1 // pred_check
      _
    $region87: #{tpu_custom_call.1} parent=1 // pred_check_branch
      %118 = sbr.rel (0) target = $region89
    $region88: #{tpu_custom_call.1} parent=1 // pred_region
      _
    $region89: #{tpu_custom_call.1} parent=1 // pred_fallthru
      _
    // Predicated region
    $region90: #{tpu_custom_call.1} parent=1 // pred_check
      _
    $region91: #{tpu_custom_call.1} parent=1 // pred_check_branch
      %120 = sbr.rel (0) target = $region93
    $region92: #{tpu_custom_call.1} parent=1 // pred_region
      _
    $region93: #{tpu_custom_call.1} parent=1 // pred_fallthru
      _
    // Predicated region
    $region94: #{tpu_custom_call.1} parent=1 // pred_check
      _
    $region95: #{tpu_custom_call.1} parent=1 // pred_check_branch
      %122 = sbr.rel (0) target = $region97
    $region96: #{tpu_custom_call.1} parent=1 // pred_region
      _
    $region97: #{tpu_custom_call.1} parent=1 // pred_fallthru
      _
    // Predicated region
    $region98: #{tpu_custom_call.1} parent=1 // pred_check
      _
    $region99: #{tpu_custom_call.1} parent=1 // pred_check_branch
      %124 = sbr.rel (0) target = $region101
    $region100: #{tpu_custom_call.1} parent=1 // pred_region
      _
    $region101: #{tpu_custom_call.1} parent=1 // pred_fallthru
      _
    // Predicated region
    $region102: #{tpu_custom_call.1} parent=1 // pred_check
      _
    $region103: #{tpu_custom_call.1} parent=1 // pred_check_branch
      %126 = sbr.rel (0) target = $region105
    $region104: #{tpu_custom_call.1} parent=1 // pred_region
      _
    $region105: #{tpu_custom_call.1} parent=1 // pred_fallthru
      _
    // Predicated region
    $region106: #{tpu_custom_call.1} parent=1 // pred_check
      _
    $region107: #{tpu_custom_call.1} parent=1 // pred_check_branch
      %128 = sbr.rel (0) target = $region109
    $region108: #{tpu_custom_call.1} parent=1 // pred_region
      _
    $region109: #{tpu_custom_call.1} parent=1 // pred_fallthru
      _
    // Predicated region
    $region110: #{tpu_custom_call.1} parent=1 // pred_check
      _
    $region111: #{tpu_custom_call.1} parent=1 // pred_check_branch
      %130 = sbr.rel (0) target = $region113
    $region112: #{tpu_custom_call.1} parent=1 // pred_region
      _
    $region113: #{tpu_custom_call.1} parent=1 // pred_fallthru
      _
    // Predicated region
    $region114: #{tpu_custom_call.1} parent=1 // pred_check
      _
    $region115: #{tpu_custom_call.1} parent=1 // pred_check_branch
      %132 = sbr.rel (0) target = $region117
    $region116: #{tpu_custom_call.1} parent=1 // pred_region
      _
    $region117: #{tpu_custom_call.1} parent=1 // pred_fallthru
      _
    // Predicated region
    $region118: #{tpu_custom_call.1} parent=1 // pred_check
      _
    $region119: #{tpu_custom_call.1} parent=1 // pred_check_branch
      %134 = sbr.rel (0) target = $region121
    $region120: #{tpu_custom_call.1} parent=1 // pred_region
      _
    $region121: #{tpu_custom_call.1} parent=1 // pred_fallthru
      _
    // Predicated region
    $region122: #{tpu_custom_call.1} parent=1 // pred_check
      _
    $region123: #{tpu_custom_call.1} parent=1 // pred_check_branch
      %136 = sbr.rel (0) target = $region125
    $region124: #{tpu_custom_call.1} parent=1 // pred_region
      _
    $region125: #{tpu_custom_call.1} parent=1 // pred_fallthru
      _
    // Predicated region
    $region126: #{tpu_custom_call.1} parent=1 // pred_check
      _
    $region127: #{tpu_custom_call.1} parent=1 // pred_check_branch
      %138 = sbr.rel (0) target = $region129
    $region128: #{tpu_custom_call.1} parent=1 // pred_region
      _
    $region129: #{tpu_custom_call.1} parent=1 // pred_fallthru
      _
    // Predicated region
    $region130: #{tpu_custom_call.1} parent=1 // pred_check
      _
    $region131: #{tpu_custom_call.1} parent=1 // pred_check_branch
      %140 = sbr.rel (0) target = $region133
    $region132: #{tpu_custom_call.1} parent=1 // pred_region
      _
    $region133: #{tpu_custom_call.1} parent=1 // pred_fallthru
      _
    // Predicated region
    $region134: #{tpu_custom_call.1} parent=1 // pred_check
      _
    $region135: #{tpu_custom_call.1} parent=1 // pred_check_branch
      %142 = sbr.rel (0) target = $region137
    $region136: #{tpu_custom_call.1} parent=1 // pred_region
      _
    $region137: #{tpu_custom_call.1} parent=1 // pred_fallthru
      _
    %v143 = vld [vmem:[%s1] sm:$0xff]
    %v144 = vld [vmem:[%s1 + $0x8] sm:$0xff]
    %v145 = vld [vmem:[%s3] sm:$0xff]
    %v146 = vld [vmem:[%s3 + $0x8] sm:$0xff]
    %v147 = vld [vmem:[%s5] sm:$0xff]
    %v148 = vld [vmem:[%s5 + $0x8] sm:$0xff]
    %v149 = vld [vmem:[%s7] sm:$0x1]
    %v151 = vlaneseq
    %v152 = vshrl.u32 %v151, 7
    %v153 = vsub.s32 0, %v152
    %v154 = vrot.slane %v149, %v153
    %vm156 = vcmask 130048
    %v158 = vsel %vm156, %v143, 0
    %v161 = vsel %vm156, %v144, 0
    %163 = vmatprep.subr.mxu0 0.0
    %164 = vmatpush1.msra.mxu0 %v147
    %165 = vmatprep.subr.mxu0 0.0
    %166 = vmatpush1.msra.mxu0 %v148
    %167 = vmatprep.subr.mxu0 0.0
    %168 = vmatpush1.msra.mxu0 0.0
    %169 = vmatprep.subr.mxu0 0.0
    %170 = vmatpush1.msra.mxu0 0.0
    %171 = vmatprep.subr.mxu0 0.0
    %172 = vmatpush1.msra.mxu0 0.0
    %173 = vmatprep.subr.mxu0 0.0
    %174 = vmatpush1.msra.mxu0 0.0
    %175 = vmatprep.subr.mxu0 0.0
    %176 = vmatpush1.msra.mxu0 0.0
    %177 = vmatprep.subr.mxu0 0.0
    %178 = vmatpush1.msra.mxu0 0.0
    %179 = vmatprep.subr.mxu0 0.0
    %180 = vmatpush1.msra.mxu0 0.0
    %181 = vmatprep.subr.mxu0 0.0
    %182 = vmatpush1.msra.mxu0 0.0
    %183 = vmatprep.subr.mxu0 0.0
    %184 = vmatpush1.msra.mxu0 0.0
    %185 = vmatprep.subr.mxu0 0.0
    %186 = vmatpush1.msra.mxu0 0.0
    %187 = vmatprep.subr.mxu0 0.0
    %188 = vmatpush1.msra.mxu0 0.0
    %189 = vmatprep.subr.mxu0 0.0
    %190 = vmatpush1.msra.mxu0 0.0
    %191 = vmatprep.subr.mxu0 0.0
    %192 = vmatpush1.msra.mxu0 0.0
    %193 = vmatprep.subr.mxu0 0.0
    %194 = vmatpush1.msra.mxu0 0.0
    %195 = vmatprep.subr.mxu0 0.0
    %196 = vmatpush1.msra.mxu0 0.0
    %197 = vmatprep.subr.mxu0 0.0
    %198 = vmatpush1.msra.mxu0 0.0
    %199 = vmatprep.subr.mxu0 0.0
    %200 = vmatpush1.msra.mxu0 0.0
    %201 = vmatprep.subr.mxu0 0.0
    %202 = vmatpush1.msra.mxu0 0.0
    %203 = vmatprep.subr.mxu0 0.0
    %204 = vmatpush1.msra.mxu0 0.0
    %205 = vmatprep.subr.mxu0 0.0
    %206 = vmatpush1.msra.mxu0 0.0
    %207 = vmatprep.subr.mxu0 0.0
    %208 = vmatpush1.msra.mxu0 0.0
    %209 = vmatprep.subr.mxu0 0.0
    %210 = vmatpush1.msra.mxu0 0.0
    %211 = vmatprep.subr.mxu0 0.0
    %212 = vmatpush1.msra.mxu0 0.0
    %213 = vmatprep.subr.mxu0 0.0
    %214 = vmatpush1.msra.mxu0 0.0
    %215 = vmatprep.subr.mxu0 0.0
    %216 = vmatpush1.msra.mxu0 0.0
    %217 = vmatprep.subr.mxu0 0.0
    %218 = vmatpush1.msra.mxu0 0.0
    %219 = vmatprep.subr.mxu0 0.0
    %220 = vmatpush1.msra.mxu0 0.0
    %221 = vmatprep.subr.mxu0 0.0
    %222 = vmatpush1.msra.mxu0 0.0
    %223 = vmatprep.subr.mxu0 0.0
    %224 = vmatpush1.msra.mxu0 0.0
    %225 = vmatprep.subr.mxu0 0.0
    %226 = vmatpush1.msra.mxu0 0.0
    %227 = vmatprep.mubr.f32.mxu0 0.0
    %228 = vmatmul.mubr.f32.gmra.mrb[0].mxu0 %v158
    %v229 = vpop.f32.mrb[0].mxu0
    %v230 = vadd.f32 %v154, %v229
    %v231 = vpop.f32.mrb[0].mxu0
    %232 = vmatprep.mubr.f32.mxu0 0.0
    %233 = vmatmul.mubr.f32.gmra.mrb[0].mxu0 %v161
    %v234 = vpop.f32.mrb[0].mxu0
    %v235 = vadd.f32 %v154, %v234
    %v236 = vpop.f32.mrb[0].mxu0
    %237 = vdwg.mxu0
    %v238 = vld [vmem:[%s9] sm:$0xff]
    %v239 = vld [vmem:[%s9 + $0x8] sm:$0xff]
    %v240 = vld [vmem:[%s9 + $0x10] sm:$0xff]
    %v241 = vld [vmem:[%s9 + $0x18] sm:$0xff]
    %v242 = vld [vmem:[%s11] sm:$0x1]
    %v243 = vld [vmem:[%s13] sm:$0xff]
    %v244 = vld [vmem:[%s13 + $0x8] sm:$0xff]
    %v245 = vld [vmem:[%s13 + $0x10] sm:$0xff]
    %v246 = vld [vmem:[%s13 + $0x18] sm:$0xff]
    %v247 = vld [vmem:[%s15] sm:$0x1]
    %v248 = vld [vmem:[%s17] sm:$0x1]
    %v249 = vld [vmem:[%s19] sm:$0x1]
    %v250 = vld [vmem:[%s21] sm:$0x1]
    %v251 = vld [vmem:[%s23] sm:$0x1]
    %v252 = vld [vmem:[%s25] sm:$0xff]
    %v253 = vld [vmem:[%s25 + $0x8] sm:$0xff]
    %v254 = vld [vmem:[%s25 + $0x10] sm:$0xff]
    %v255 = vld [vmem:[%s25 + $0x18] sm:$0xff]
    %v256 = vld [vmem:[%s27] sm:$0x1]
    %v257 = vld [vmem:[%s29] sm:$0xff]
    %v258 = vld [vmem:[%s29 + $0x8] sm:$0xff]
    %v259 = vld [vmem:[%s29 + $0x10] sm:$0xff]
    %v260 = vld [vmem:[%s29 + $0x18] sm:$0xff]
    %v261 = vld [vmem:[%s29 + $0x20] sm:$0xff]
    %v262 = vld [vmem:[%s29 + $0x28] sm:$0xff]
    %v263 = vld [vmem:[%s29 + $0x30] sm:$0xff]
    %v264 = vld [vmem:[%s29 + $0x38] sm:$0xff]
    %v265 = vld [vmem:[%s29 + $0x40] sm:$0xff]
    %v266 = vld [vmem:[%s29 + $0x48] sm:$0xff]
    %v267 = vld [vmem:[%s29 + $0x50] sm:$0xff]
    %v268 = vld [vmem:[%s29 + $0x58] sm:$0xff]
    %v269 = vld [vmem:[%s29 + $0x60] sm:$0xff]
    %v270 = vld [vmem:[%s29 + $0x68] sm:$0xff]
    %v271 = vld [vmem:[%s29 + $0x70] sm:$0xff]
    %v272 = vld [vmem:[%s29 + $0x78] sm:$0xff]
    %v273 = vld [vmem:[%s31] sm:$0x1]
    %v274 = vadd.f32 %v230, %v145
    %v275 = vadd.f32 %v235, %v146
    %vm276 = vcmask 261120
    %v277 = vsel %vm276, %v274, 0.0
    %278 = vadd.xlane.f32.xlu0 %v277
    %v279 = vpop.xlane.xlu0 %278
    %v280 = vsel %vm276, %v275, 0.0
    %281 = vadd.xlane.f32.xlu0 %v280
    %v282 = vpop.xlane.xlu0 %281
    %v283 = vrcp.pop 32.0
    %v284 = vmul.f32 %v279, %v283
    %v285 = vmul.f32 %v282, %v283
    %v286 = vsub.f32 %v274, %v284
    %v287 = vsub.f32 %v275, %v285
    %v288 = vmul.f32 %v286, %v286
    %v289 = vmul.f32 %v287, %v287
    %v290 = vsel %vm276, %v288, 0.0
    %291 = vadd.xlane.f32.xlu0 %v290
    %v292 = vpop.xlane.xlu0 %291
    %v293 = vsel %vm276, %v289, 0.0
    %294 = vadd.xlane.f32.xlu0 %v293
    %v295 = vpop.xlane.xlu0 %294
    %v296 = vmul.f32 %v292, %v283
    %v297 = vmul.f32 %v295, %v283
    %v298 = vadd.f32 %v296, 1e-05
    %v299 = vadd.f32 %v297, 1e-05
    %v300 = vrsqrt.pop %v298
    %v301 = vrsqrt.pop %v299
    %v302 = vmul.f32 %v286, %v300
    %v303 = vmul.f32 %v287, %v301
    %v305 = vlaneseq
    %v306 = vshrl.u32 %v305, 7
    %v307 = vsub.s32 0, %v306
    %v308 = vrot.slane %v248, %v307
    %v310 = vmul.f32 %v302, %v308
    %v311 = vmul.f32 %v303, %v308
    %v313 = vlaneseq
    %v314 = vshrl.u32 %v313, 7
    %v315 = vsub.s32 0, %v314
    %v316 = vrot.slane %v249, %v315
    %v318 = vadd.f32 %v310, %v316
    %v319 = vadd.f32 %v311, %v316
    %v321 = vlaneseq
    %v322 = vshrl.u32 %v321, 7
    %v323 = vsub.s32 0, %v322
    %v324 = vrot.slane %v242, %v323
    %v327 = vsel %vm276, %v318, 0
    %v330 = vsel %vm276, %v319, 0
    %332 = vmatprep.subr.mxu0 0.0
    %333 = vmatpush1.msra.mxu0 %v238
    %334 = vmatprep.subr.mxu0 0.0
    %335 = vmatpush1.msra.mxu0 %v239
    %336 = vmatprep.subr.mxu0 0.0
    %337 = vmatpush1.msra.mxu0 %v240
    %338 = vmatprep.subr.mxu0 0.0
    %339 = vmatpush1.msra.mxu0 %v241
    %340 = vmatprep.subr.mxu0 0.0
    %341 = vmatpush1.msra.mxu0 0.0
    %342 = vmatprep.subr.mxu0 0.0
    %343 = vmatpush1.msra.mxu0 0.0
    %344 = vmatprep.subr.mxu0 0.0
    %345 = vmatpush1.msra.mxu0 0.0
    %346 = vmatprep.subr.mxu0 0.0
    %347 = vmatpush1.msra.mxu0 0.0
    %348 = vmatprep.subr.mxu0 0.0
    %349 = vmatpush1.msra.mxu0 0.0
    %350 = vmatprep.subr.mxu0 0.0
    %351 = vmatpush1.msra.mxu0 0.0
    %352 = vmatprep.subr.mxu0 0.0
    %353 = vmatpush1.msra.mxu0 0.0
    %354 = vmatprep.subr.mxu0 0.0
    %355 = vmatpush1.msra.mxu0 0.0
    %356 = vmatprep.subr.mxu0 0.0
    %357 = vmatpush1.msra.mxu0 0.0
    %358 = vmatprep.subr.mxu0 0.0
    %359 = vmatpush1.msra.mxu0 0.0
    %360 = vmatprep.subr.mxu0 0.0
    %361 = vmatpush1.msra.mxu0 0.0
    %362 = vmatprep.subr.mxu0 0.0
    %363 = vmatpush1.msra.mxu0 0.0
    %364 = vmatprep.subr.mxu0 0.0
    %365 = vmatpush1.msra.mxu0 0.0
    %366 = vmatprep.subr.mxu0 0.0
    %367 = vmatpush1.msra.mxu0 0.0
    %368 = vmatprep.subr.mxu0 0.0
    %369 = vmatpush1.msra.mxu0 0.0
    %370 = vmatprep.subr.mxu0 0.0
    %371 = vmatpush1.msra.mxu0 0.0
    %372 = vmatprep.subr.mxu0 0.0
    %373 = vmatpush1.msra.mxu0 0.0
    %374 = vmatprep.subr.mxu0 0.0
    %375 = vmatpush1.msra.mxu0 0.0
    %376 = vmatprep.subr.mxu0 0.0
    %377 = vmatpush1.msra.mxu0 0.0
    %378 = vmatprep.subr.mxu0 0.0
    %379 = vmatpush1.msra.mxu0 0.0
    %380 = vmatprep.subr.mxu0 0.0
    %381 = vmatpush1.msra.mxu0 0.0
    %382 = vmatprep.subr.mxu0 0.0
    %383 = vmatpush1.msra.mxu0 0.0
    %384 = vmatprep.subr.mxu0 0.0
    %385 = vmatpush1.msra.mxu0 0.0
    %386 = vmatprep.subr.mxu0 0.0
    %387 = vmatpush1.msra.mxu0 0.0
    %388 = vmatprep.subr.mxu0 0.0
    %389 = vmatpush1.msra.mxu0 0.0
    %390 = vmatprep.subr.mxu0 0.0
    %391 = vmatpush1.msra.mxu0 0.0
    %392 = vmatprep.subr.mxu0 0.0
    %393 = vmatpush1.msra.mxu0 0.0
    %394 = vmatprep.subr.mxu0 0.0
    %395 = vmatpush1.msra.mxu0 0.0
    %396 = vmatprep.mubr.f32.mxu0 0.0
    %397 = vmatmul.mubr.f32.gmra.mrb[0].mxu0 %v327
    %v398 = vpop.f32.mrb[0].mxu0
    %v399 = vadd.f32 %v324, %v398
    %v400 = vpop.f32.mrb[0].mxu0
    %401 = vmatprep.mubr.f32.mxu0 0.0
    %402 = vmatmul.mubr.f32.gmra.mrb[0].mxu0 %v330
    %v403 = vpop.f32.mrb[0].mxu0
    %v404 = vadd.f32 %v324, %v403
    %v405 = vpop.f32.mrb[0].mxu0
    %406 = vdwg.mxu0
    %408 = vrot.lane.b32.xlu0 %v399, 120
    %v409 = vpop.permute.xlu0 %408
    %410 = vrot.lane.b32.xlu0 %v399, 112
    %v411 = vpop.permute.xlu0 %410
    %412 = vrot.lane.b32.xlu0 %v399, 104
    %v413 = vpop.permute.xlu0 %412
    %415 = vrot.lane.b32.xlu0 %v404, 120
    %v416 = vpop.permute.xlu0 %415
    %417 = vrot.lane.b32.xlu0 %v404, 112
    %v418 = vpop.permute.xlu0 %417
    %419 = vrot.lane.b32.xlu0 %v404, 104
    %v420 = vpop.permute.xlu0 %419
    %421 = vrot.lane.b32.xlu0 %v399, 96
    %v422 = vpop.permute.xlu0 %421
    %vm423 = vcmask 64512
    %v424 = vsel %vm423, %v399, 0
    %v426 = vsel %vm423, %v422, 0
    %428 = vmatprep.subr.mxu0 0.0
    %429 = vmatpush1.xpose.msra.mxu0 %v426
    %430 = vmatprep.subr.mxu0 0.0
    %431 = vmatpush1.xpose.msra.mxu0 0.0
    %432 = vmatprep.subr.mxu0 0.0
    %433 = vmatpush1.xpose.msra.mxu0 0.0
    %434 = vmatprep.subr.mxu0 0.0
    %435 = vmatpush1.xpose.msra.mxu0 0.0
    %436 = vmatprep.subr.mxu0 0.0
    %437 = vmatpush1.xpose.msra.mxu0 0.0
    %438 = vmatprep.subr.mxu0 0.0
    %439 = vmatpush1.xpose.msra.mxu0 0.0
    %440 = vmatprep.subr.mxu0 0.0
    %441 = vmatpush1.xpose.msra.mxu0 0.0
    %442 = vmatprep.subr.mxu0 0.0
    %443 = vmatpush1.xpose.msra.mxu0 0.0
    %444 = vmatprep.subr.mxu0 0.0
    %445 = vmatpush1.xpose.msra.mxu0 0.0
    %446 = vmatprep.subr.mxu0 0.0
    %447 = vmatpush1.xpose.msra.mxu0 0.0
    %448 = vmatprep.subr.mxu0 0.0
    %449 = vmatpush1.xpose.msra.mxu0 0.0
    %450 = vmatprep.subr.mxu0 0.0
    %451 = vmatpush1.xpose.msra.mxu0 0.0
    %452 = vmatprep.subr.mxu0 0.0
    %453 = vmatpush1.xpose.msra.mxu0 0.0
    %454 = vmatprep.subr.mxu0 0.0
    %455 = vmatpush1.xpose.msra.mxu0 0.0
    %456 = vmatprep.subr.mxu0 0.0
    %457 = vmatpush1.xpose.msra.mxu0 0.0
    %458 = vmatprep.subr.mxu0 0.0
    %459 = vmatpush1.xpose.msra.mxu0 0.0
    %460 = vmatprep.subr.mxu0 0.0
    %461 = vmatpush1.xpose.msra.mxu0 0.0
    %462 = vmatprep.subr.mxu0 0.0
    %463 = vmatpush1.xpose.msra.mxu0 0.0
    %464 = vmatprep.subr.mxu0 0.0
    %465 = vmatpush1.xpose.msra.mxu0 0.0
    %466 = vmatprep.subr.mxu0 0.0
    %467 = vmatpush1.xpose.msra.mxu0 0.0
    %468 = vmatprep.subr.mxu0 0.0
    %469 = vmatpush1.xpose.msra.mxu0 0.0
    %470 = vmatprep.subr.mxu0 0.0
    %471 = vmatpush1.xpose.msra.mxu0 0.0
    %472 = vmatprep.subr.mxu0 0.0
    %473 = vmatpush1.xpose.msra.mxu0 0.0
    %474 = vmatprep.subr.mxu0 0.0
    %475 = vmatpush1.xpose.msra.mxu0 0.0
    %476 = vmatprep.subr.mxu0 0.0
    %477 = vmatpush1.xpose.msra.mxu0 0.0
    %478 = vmatprep.subr.mxu0 0.0
    %479 = vmatpush1.xpose.msra.mxu0 0.0
    %480 = vmatprep.subr.mxu0 0.0
    %481 = vmatpush1.xpose.msra.mxu0 0.0
    %482 = vmatprep.subr.mxu0 0.0
    %483 = vmatpush1.xpose.msra.mxu0 0.0
    %484 = vmatprep.subr.mxu0 0.0
    %485 = vmatpush1.xpose.msra.mxu0 0.0
    %486 = vmatprep.subr.mxu0 0.0
    %487 = vmatpush1.xpose.msra.mxu0 0.0
    %488 = vmatprep.subr.mxu0 0.0
    %489 = vmatpush1.xpose.msra.mxu0 0.0
    %490 = vmatprep.subr.mxu0 0.0
    %491 = vmatpush1.xpose.msra.mxu0 0.0
    %492 = vmatprep.mubr.f32.mxu0 0.0
    %493 = vmatmul.mubr.f32.gmra.mrb[0].mxu0 %v424
    %v494 = vpop.f32.mrb[0].mxu0
    %v495 = vadd.f32 0.0, %v494
    %v496 = vpop.f32.mrb[0].mxu0
    %497 = vdwg.mxu0
    %498 = vrot.lane.b32.xlu0 %v409, 96
    %v499 = vpop.permute.xlu0 %498
    %v500 = vsel %vm423, %v409, 0
    %v502 = vsel %vm423, %v499, 0
    %504 = vmatprep.subr.mxu0 0.0
    %505 = vmatpush1.xpose.msra.mxu0 %v502
    %506 = vmatprep.subr.mxu0 0.0
    %507 = vmatpush1.xpose.msra.mxu0 0.0
    %508 = vmatprep.subr.mxu0 0.0
    %509 = vmatpush1.xpose.msra.mxu0 0.0
    %510 = vmatprep.subr.mxu0 0.0
    %511 = vmatpush1.xpose.msra.mxu0 0.0
    %512 = vmatprep.subr.mxu0 0.0
    %513 = vmatpush1.xpose.msra.mxu0 0.0
    %514 = vmatprep.subr.mxu0 0.0
    %515 = vmatpush1.xpose.msra.mxu0 0.0
    %516 = vmatprep.subr.mxu0 0.0
    %517 = vmatpush1.xpose.msra.mxu0 0.0
    %518 = vmatprep.subr.mxu0 0.0
    %519 = vmatpush1.xpose.msra.mxu0 0.0
    %520 = vmatprep.subr.mxu0 0.0
    %521 = vmatpush1.xpose.msra.mxu0 0.0
    %522 = vmatprep.subr.mxu0 0.0
    %523 = vmatpush1.xpose.msra.mxu0 0.0
    %524 = vmatprep.subr.mxu0 0.0
    %525 = vmatpush1.xpose.msra.mxu0 0.0
    %526 = vmatprep.subr.mxu0 0.0
    %527 = vmatpush1.xpose.msra.mxu0 0.0
    %528 = vmatprep.subr.mxu0 0.0
    %529 = vmatpush1.xpose.msra.mxu0 0.0
    %530 = vmatprep.subr.mxu0 0.0
    %531 = vmatpush1.xpose.msra.mxu0 0.0
    %532 = vmatprep.subr.mxu0 0.0
    %533 = vmatpush1.xpose.msra.mxu0 0.0
    %534 = vmatprep.subr.mxu0 0.0
    %535 = vmatpush1.xpose.msra.mxu0 0.0
    %536 = vmatprep.subr.mxu0 0.0
    %537 = vmatpush1.xpose.msra.mxu0 0.0
    %538 = vmatprep.subr.mxu0 0.0
    %539 = vmatpush1.xpose.msra.mxu0 0.0
    %540 = vmatprep.subr.mxu0 0.0
    %541 = vmatpush1.xpose.msra.mxu0 0.0
    %542 = vmatprep.subr.mxu0 0.0
    %543 = vmatpush1.xpose.msra.mxu0 0.0
    %544 = vmatprep.subr.mxu0 0.0
    %545 = vmatpush1.xpose.msra.mxu0 0.0
    %546 = vmatprep.subr.mxu0 0.0
    %547 = vmatpush1.xpose.msra.mxu0 0.0
    %548 = vmatprep.subr.mxu0 0.0
    %549 = vmatpush1.xpose.msra.mxu0 0.0
    %550 = vmatprep.subr.mxu0 0.0
    %551 = vmatpush1.xpose.msra.mxu0 0.0
    %552 = vmatprep.subr.mxu0 0.0
    %553 = vmatpush1.xpose.msra.mxu0 0.0
    %554 = vmatprep.subr.mxu0 0.0
    %555 = vmatpush1.xpose.msra.mxu0 0.0
    %556 = vmatprep.subr.mxu0 0.0
    %557 = vmatpush1.xpose.msra.mxu0 0.0
    %558 = vmatprep.subr.mxu0 0.0
    %559 = vmatpush1.xpose.msra.mxu0 0.0
    %560 = vmatprep.subr.mxu0 0.0
    %561 = vmatpush1.xpose.msra.mxu0 0.0
    %562 = vmatprep.subr.mxu0 0.0
    %563 = vmatpush1.xpose.msra.mxu0 0.0
    %564 = vmatprep.subr.mxu0 0.0
    %565 = vmatpush1.xpose.msra.mxu0 0.0
    %566 = vmatprep.subr.mxu0 0.0
    %567 = vmatpush1.xpose.msra.mxu0 0.0
    %568 = vmatprep.mubr.f32.mxu0 0.0
    %569 = vmatmul.mubr.f32.gmra.mrb[0].mxu0 %v500
    %v570 = vpop.f32.mrb[0].mxu0
    %v571 = vadd.f32 0.0, %v570
    %v572 = vpop.f32.mrb[0].mxu0
    %573 = vdwg.mxu0
    %574 = vrot.lane.b32.xlu0 %v411, 96
    %v575 = vpop.permute.xlu0 %574
    %v576 = vsel %vm423, %v411, 0
    %v578 = vsel %vm423, %v575, 0
    %580 = vmatprep.subr.mxu0 0.0
    %581 = vmatpush1.xpose.msra.mxu0 %v578
    %582 = vmatprep.subr.mxu0 0.0
    %583 = vmatpush1.xpose.msra.mxu0 0.0
    %584 = vmatprep.subr.mxu0 0.0
    %585 = vmatpush1.xpose.msra.mxu0 0.0
    %586 = vmatprep.subr.mxu0 0.0
    %587 = vmatpush1.xpose.msra.mxu0 0.0
    %588 = vmatprep.subr.mxu0 0.0
    %589 = vmatpush1.xpose.msra.mxu0 0.0
    %590 = vmatprep.subr.mxu0 0.0
    %591 = vmatpush1.xpose.msra.mxu0 0.0
    %592 = vmatprep.subr.mxu0 0.0
    %593 = vmatpush1.xpose.msra.mxu0 0.0
    %594 = vmatprep.subr.mxu0 0.0
    %595 = vmatpush1.xpose.msra.mxu0 0.0
    %596 = vmatprep.subr.mxu0 0.0
    %597 = vmatpush1.xpose.msra.mxu0 0.0
    %598 = vmatprep.subr.mxu0 0.0
    %599 = vmatpush1.xpose.msra.mxu0 0.0
    %600 = vmatprep.subr.mxu0 0.0
    %601 = vmatpush1.xpose.msra.mxu0 0.0
    %602 = vmatprep.subr.mxu0 0.0
    %603 = vmatpush1.xpose.msra.mxu0 0.0
    %604 = vmatprep.subr.mxu0 0.0
    %605 = vmatpush1.xpose.msra.mxu0 0.0
    %606 = vmatprep.subr.mxu0 0.0
    %607 = vmatpush1.xpose.msra.mxu0 0.0
    %608 = vmatprep.subr.mxu0 0.0
    %609 = vmatpush1.xpose.msra.mxu0 0.0
    %610 = vmatprep.subr.mxu0 0.0
    %611 = vmatpush1.xpose.msra.mxu0 0.0
    %612 = vmatprep.subr.mxu0 0.0
    %613 = vmatpush1.xpose.msra.mxu0 0.0
    %614 = vmatprep.subr.mxu0 0.0
    %615 = vmatpush1.xpose.msra.mxu0 0.0
    %616 = vmatprep.subr.mxu0 0.0
    %617 = vmatpush1.xpose.msra.mxu0 0.0
    %618 = vmatprep.subr.mxu0 0.0
    %619 = vmatpush1.xpose.msra.mxu0 0.0
    %620 = vmatprep.subr.mxu0 0.0
    %621 = vmatpush1.xpose.msra.mxu0 0.0
    %622 = vmatprep.subr.mxu0 0.0
    %623 = vmatpush1.xpose.msra.mxu0 0.0
    %624 = vmatprep.subr.mxu0 0.0
    %625 = vmatpush1.xpose.msra.mxu0 0.0
    %626 = vmatprep.subr.mxu0 0.0
    %627 = vmatpush1.xpose.msra.mxu0 0.0
    %628 = vmatprep.subr.mxu0 0.0
    %629 = vmatpush1.xpose.msra.mxu0 0.0
    %630 = vmatprep.subr.mxu0 0.0
    %631 = vmatpush1.xpose.msra.mxu0 0.0
    %632 = vmatprep.subr.mxu0 0.0
    %633 = vmatpush1.xpose.msra.mxu0 0.0
    %634 = vmatprep.subr.mxu0 0.0
    %635 = vmatpush1.xpose.msra.mxu0 0.0
    %636 = vmatprep.subr.mxu0 0.0
    %637 = vmatpush1.xpose.msra.mxu0 0.0
    %638 = vmatprep.subr.mxu0 0.0
    %639 = vmatpush1.xpose.msra.mxu0 0.0
    %640 = vmatprep.subr.mxu0 0.0
    %641 = vmatpush1.xpose.msra.mxu0 0.0
    %642 = vmatprep.subr.mxu0 0.0
    %643 = vmatpush1.xpose.msra.mxu0 0.0
    %644 = vmatprep.mubr.f32.mxu0 0.0
    %645 = vmatmul.mubr.f32.gmra.mrb[0].mxu0 %v576
    %v646 = vpop.f32.mrb[0].mxu0
    %v647 = vadd.f32 0.0, %v646
    %v648 = vpop.f32.mrb[0].mxu0
    %649 = vdwg.mxu0
    %650 = vrot.lane.b32.xlu0 %v413, 96
    %v651 = vpop.permute.xlu0 %650
    %v652 = vsel %vm423, %v413, 0
    %v654 = vsel %vm423, %v651, 0
    %656 = vmatprep.subr.mxu0 0.0
    %657 = vmatpush1.xpose.msra.mxu0 %v654
    %658 = vmatprep.subr.mxu0 0.0
    %659 = vmatpush1.xpose.msra.mxu0 0.0
    %660 = vmatprep.subr.mxu0 0.0
    %661 = vmatpush1.xpose.msra.mxu0 0.0
    %662 = vmatprep.subr.mxu0 0.0
    %663 = vmatpush1.xpose.msra.mxu0 0.0
    %664 = vmatprep.subr.mxu0 0.0
    %665 = vmatpush1.xpose.msra.mxu0 0.0
    %666 = vmatprep.subr.mxu0 0.0
    %667 = vmatpush1.xpose.msra.mxu0 0.0
    %668 = vmatprep.subr.mxu0 0.0
    %669 = vmatpush1.xpose.msra.mxu0 0.0
    %670 = vmatprep.subr.mxu0 0.0
    %671 = vmatpush1.xpose.msra.mxu0 0.0
    %672 = vmatprep.subr.mxu0 0.0
    %673 = vmatpush1.xpose.msra.mxu0 0.0
    %674 = vmatprep.subr.mxu0 0.0
    %675 = vmatpush1.xpose.msra.mxu0 0.0
    %676 = vmatprep.subr.mxu0 0.0
    %677 = vmatpush1.xpose.msra.mxu0 0.0
    %678 = vmatprep.subr.mxu0 0.0
    %679 = vmatpush1.xpose.msra.mxu0 0.0
    %680 = vmatprep.subr.mxu0 0.0
    %681 = vmatpush1.xpose.msra.mxu0 0.0
    %682 = vmatprep.subr.mxu0 0.0
    %683 = vmatpush1.xpose.msra.mxu0 0.0
    %684 = vmatprep.subr.mxu0 0.0
    %685 = vmatpush1.xpose.msra.mxu0 0.0
    %686 = vmatprep.subr.mxu0 0.0
    %687 = vmatpush1.xpose.msra.mxu0 0.0
    %688 = vmatprep.subr.mxu0 0.0
    %689 = vmatpush1.xpose.msra.mxu0 0.0
    %690 = vmatprep.subr.mxu0 0.0
    %691 = vmatpush1.xpose.msra.mxu0 0.0
    %692 = vmatprep.subr.mxu0 0.0
    %693 = vmatpush1.xpose.msra.mxu0 0.0
    %694 = vmatprep.subr.mxu0 0.0
    %695 = vmatpush1.xpose.msra.mxu0 0.0
    %696 = vmatprep.subr.mxu0 0.0
    %697 = vmatpush1.xpose.msra.mxu0 0.0
    %698 = vmatprep.subr.mxu0 0.0
    %699 = vmatpush1.xpose.msra.mxu0 0.0
    %700 = vmatprep.subr.mxu0 0.0
    %701 = vmatpush1.xpose.msra.mxu0 0.0
    %702 = vmatprep.subr.mxu0 0.0
    %703 = vmatpush1.xpose.msra.mxu0 0.0
    %704 = vmatprep.subr.mxu0 0.0
    %705 = vmatpush1.xpose.msra.mxu0 0.0
    %706 = vmatprep.subr.mxu0 0.0
    %707 = vmatpush1.xpose.msra.mxu0 0.0
    %708 = vmatprep.subr.mxu0 0.0
    %709 = vmatpush1.xpose.msra.mxu0 0.0
    %710 = vmatprep.subr.mxu0 0.0
    %711 = vmatpush1.xpose.msra.mxu0 0.0
    %712 = vmatprep.subr.mxu0 0.0
    %713 = vmatpush1.xpose.msra.mxu0 0.0
    %714 = vmatprep.subr.mxu0 0.0
    %715 = vmatpush1.xpose.msra.mxu0 0.0
    %716 = vmatprep.subr.mxu0 0.0
    %717 = vmatpush1.xpose.msra.mxu0 0.0
    %718 = vmatprep.subr.mxu0 0.0
    %719 = vmatpush1.xpose.msra.mxu0 0.0
    %720 = vmatprep.mubr.f32.mxu0 0.0
    %721 = vmatmul.mubr.f32.gmra.mrb[0].mxu0 %v652
    %v722 = vpop.f32.mrb[0].mxu0
    %v723 = vadd.f32 0.0, %v722
    %v724 = vpop.f32.mrb[0].mxu0
    %725 = vdwg.mxu0
    %726 = vrot.lane.b32.xlu0 %v404, 96
    %v727 = vpop.permute.xlu0 %726
    %v728 = vsel %vm423, %v404, 0
    %v730 = vsel %vm423, %v727, 0
    %732 = vmatprep.subr.mxu0 0.0
    %733 = vmatpush1.xpose.msra.mxu0 %v730
    %734 = vmatprep.subr.mxu0 0.0
    %735 = vmatpush1.xpose.msra.mxu0 0.0
    %736 = vmatprep.subr.mxu0 0.0
    %737 = vmatpush1.xpose.msra.mxu0 0.0
    %738 = vmatprep.subr.mxu0 0.0
    %739 = vmatpush1.xpose.msra.mxu0 0.0
    %740 = vmatprep.subr.mxu0 0.0
    %741 = vmatpush1.xpose.msra.mxu0 0.0
    %742 = vmatprep.subr.mxu0 0.0
    %743 = vmatpush1.xpose.msra.mxu0 0.0
    %744 = vmatprep.subr.mxu0 0.0
    %745 = vmatpush1.xpose.msra.mxu0 0.0
    %746 = vmatprep.subr.mxu0 0.0
    %747 = vmatpush1.xpose.msra.mxu0 0.0
    %748 = vmatprep.subr.mxu0 0.0
    %749 = vmatpush1.xpose.msra.mxu0 0.0
    %750 = vmatprep.subr.mxu0 0.0
    %751 = vmatpush1.xpose.msra.mxu0 0.0
    %752 = vmatprep.subr.mxu0 0.0
    %753 = vmatpush1.xpose.msra.mxu0 0.0
    %754 = vmatprep.subr.mxu0 0.0
    %755 = vmatpush1.xpose.msra.mxu0 0.0
    %756 = vmatprep.subr.mxu0 0.0
    %757 = vmatpush1.xpose.msra.mxu0 0.0
    %758 = vmatprep.subr.mxu0 0.0
    %759 = vmatpush1.xpose.msra.mxu0 0.0
    %760 = vmatprep.subr.mxu0 0.0
    %761 = vmatpush1.xpose.msra.mxu0 0.0
    %762 = vmatprep.subr.mxu0 0.0
    %763 = vmatpush1.xpose.msra.mxu0 0.0
    %764 = vmatprep.subr.mxu0 0.0
    %765 = vmatpush1.xpose.msra.mxu0 0.0
    %766 = vmatprep.subr.mxu0 0.0
    %767 = vmatpush1.xpose.msra.mxu0 0.0
    %768 = vmatprep.subr.mxu0 0.0
    %769 = vmatpush1.xpose.msra.mxu0 0.0
    %770 = vmatprep.subr.mxu0 0.0
    %771 = vmatpush1.xpose.msra.mxu0 0.0
    %772 = vmatprep.subr.mxu0 0.0
    %773 = vmatpush1.xpose.msra.mxu0 0.0
    %774 = vmatprep.subr.mxu0 0.0
    %775 = vmatpush1.xpose.msra.mxu0 0.0
    %776 = vmatprep.subr.mxu0 0.0
    %777 = vmatpush1.xpose.msra.mxu0 0.0
    %778 = vmatprep.subr.mxu0 0.0
    %779 = vmatpush1.xpose.msra.mxu0 0.0
    %780 = vmatprep.subr.mxu0 0.0
    %781 = vmatpush1.xpose.msra.mxu0 0.0
    %782 = vmatprep.subr.mxu0 0.0
    %783 = vmatpush1.xpose.msra.mxu0 0.0
    %784 = vmatprep.subr.mxu0 0.0
    %785 = vmatpush1.xpose.msra.mxu0 0.0
    %786 = vmatprep.subr.mxu0 0.0
    %787 = vmatpush1.xpose.msra.mxu0 0.0
    %788 = vmatprep.subr.mxu0 0.0
    %789 = vmatpush1.xpose.msra.mxu0 0.0
    %790 = vmatprep.subr.mxu0 0.0
    %791 = vmatpush1.xpose.msra.mxu0 0.0
    %792 = vmatprep.subr.mxu0 0.0
    %793 = vmatpush1.xpose.msra.mxu0 0.0
    %794 = vmatprep.subr.mxu0 0.0
    %795 = vmatpush1.xpose.msra.mxu0 0.0
    %796 = vmatprep.mubr.f32.mxu0 0.0
    %797 = vmatmul.mubr.f32.gmra.mrb[0].mxu0 %v728
    %v798 = vpop.f32.mrb[0].mxu0
    %v799 = vadd.f32 0.0, %v798
    %v800 = vpop.f32.mrb[0].mxu0
    %801 = vdwg.mxu0
    %802 = vrot.lane.b32.xlu0 %v416, 96
    %v803 = vpop.permute.xlu0 %802
    %v804 = vsel %vm423, %v416, 0
    %v806 = vsel %vm423, %v803, 0
    %808 = vmatprep.subr.mxu0 0.0
    %809 = vmatpush1.xpose.msra.mxu0 %v806
    %810 = vmatprep.subr.mxu0 0.0
    %811 = vmatpush1.xpose.msra.mxu0 0.0
    %812 = vmatprep.subr.mxu0 0.0
    %813 = vmatpush1.xpose.msra.mxu0 0.0
    %814 = vmatprep.subr.mxu0 0.0
    %815 = vmatpush1.xpose.msra.mxu0 0.0
    %816 = vmatprep.subr.mxu0 0.0
    %817 = vmatpush1.xpose.msra.mxu0 0.0
    %818 = vmatprep.subr.mxu0 0.0
    %819 = vmatpush1.xpose.msra.mxu0 0.0
    %820 = vmatprep.subr.mxu0 0.0
    %821 = vmatpush1.xpose.msra.mxu0 0.0
    %822 = vmatprep.subr.mxu0 0.0
    %823 = vmatpush1.xpose.msra.mxu0 0.0
    %824 = vmatprep.subr.mxu0 0.0
    %825 = vmatpush1.xpose.msra.mxu0 0.0
    %826 = vmatprep.subr.mxu0 0.0
    %827 = vmatpush1.xpose.msra.mxu0 0.0
    %828 = vmatprep.subr.mxu0 0.0
    %829 = vmatpush1.xpose.msra.mxu0 0.0
    %830 = vmatprep.subr.mxu0 0.0
    %831 = vmatpush1.xpose.msra.mxu0 0.0
    %832 = vmatprep.subr.mxu0 0.0
    %833 = vmatpush1.xpose.msra.mxu0 0.0
    %834 = vmatprep.subr.mxu0 0.0
    %835 = vmatpush1.xpose.msra.mxu0 0.0
    %836 = vmatprep.subr.mxu0 0.0
    %837 = vmatpush1.xpose.msra.mxu0 0.0
    %838 = vmatprep.subr.mxu0 0.0
    %839 = vmatpush1.xpose.msra.mxu0 0.0
    %840 = vmatprep.subr.mxu0 0.0
    %841 = vmatpush1.xpose.msra.mxu0 0.0
    %842 = vmatprep.subr.mxu0 0.0
    %843 = vmatpush1.xpose.msra.mxu0 0.0
    %844 = vmatprep.subr.mxu0 0.0
    %845 = vmatpush1.xpose.msra.mxu0 0.0
    %846 = vmatprep.subr.mxu0 0.0
    %847 = vmatpush1.xpose.msra.mxu0 0.0
    %848 = vmatprep.subr.mxu0 0.0
    %849 = vmatpush1.xpose.msra.mxu0 0.0
    %850 = vmatprep.subr.mxu0 0.0
    %851 = vmatpush1.xpose.msra.mxu0 0.0
    %852 = vmatprep.subr.mxu0 0.0
    %853 = vmatpush1.xpose.msra.mxu0 0.0
    %854 = vmatprep.subr.mxu0 0.0
    %855 = vmatpush1.xpose.msra.mxu0 0.0
    %856 = vmatprep.subr.mxu0 0.0
    %857 = vmatpush1.xpose.msra.mxu0 0.0
    %858 = vmatprep.subr.mxu0 0.0
    %859 = vmatpush1.xpose.msra.mxu0 0.0
    %860 = vmatprep.subr.mxu0 0.0
    %861 = vmatpush1.xpose.msra.mxu0 0.0
    %862 = vmatprep.subr.mxu0 0.0
    %863 = vmatpush1.xpose.msra.mxu0 0.0
    %864 = vmatprep.subr.mxu0 0.0
    %865 = vmatpush1.xpose.msra.mxu0 0.0
    %866 = vmatprep.subr.mxu0 0.0
    %867 = vmatpush1.xpose.msra.mxu0 0.0
    %868 = vmatprep.subr.mxu0 0.0
    %869 = vmatpush1.xpose.msra.mxu0 0.0
    %870 = vmatprep.subr.mxu0 0.0
    %871 = vmatpush1.xpose.msra.mxu0 0.0
    %872 = vmatprep.mubr.f32.mxu0 0.0
    %873 = vmatmul.mubr.f32.gmra.mrb[0].mxu0 %v804
    %v874 = vpop.f32.mrb[0].mxu0
    %v875 = vadd.f32 0.0, %v874
    %v876 = vpop.f32.mrb[0].mxu0
    %877 = vdwg.mxu0
    %878 = vrot.lane.b32.xlu0 %v418, 96
    %v879 = vpop.permute.xlu0 %878
    %v880 = vsel %vm423, %v418, 0
    %v882 = vsel %vm423, %v879, 0
    %884 = vmatprep.subr.mxu0 0.0
    %885 = vmatpush1.xpose.msra.mxu0 %v882
    %886 = vmatprep.subr.mxu0 0.0
    %887 = vmatpush1.xpose.msra.mxu0 0.0
    %888 = vmatprep.subr.mxu0 0.0
    %889 = vmatpush1.xpose.msra.mxu0 0.0
    %890 = vmatprep.subr.mxu0 0.0
    %891 = vmatpush1.xpose.msra.mxu0 0.0
    %892 = vmatprep.subr.mxu0 0.0
    %893 = vmatpush1.xpose.msra.mxu0 0.0
    %894 = vmatprep.subr.mxu0 0.0
    %895 = vmatpush1.xpose.msra.mxu0 0.0
    %896 = vmatprep.subr.mxu0 0.0
    %897 = vmatpush1.xpose.msra.mxu0 0.0
    %898 = vmatprep.subr.mxu0 0.0
    %899 = vmatpush1.xpose.msra.mxu0 0.0
    %900 = vmatprep.subr.mxu0 0.0
    %901 = vmatpush1.xpose.msra.mxu0 0.0
    %902 = vmatprep.subr.mxu0 0.0
    %903 = vmatpush1.xpose.msra.mxu0 0.0
    %904 = vmatprep.subr.mxu0 0.0
    %905 = vmatpush1.xpose.msra.mxu0 0.0
    %906 = vmatprep.subr.mxu0 0.0
    %907 = vmatpush1.xpose.msra.mxu0 0.0
    %908 = vmatprep.subr.mxu0 0.0
    %909 = vmatpush1.xpose.msra.mxu0 0.0
    %910 = vmatprep.subr.mxu0 0.0
    %911 = vmatpush1.xpose.msra.mxu0 0.0
    %912 = vmatprep.subr.mxu0 0.0
    %913 = vmatpush1.xpose.msra.mxu0 0.0
    %914 = vmatprep.subr.mxu0 0.0
    %915 = vmatpush1.xpose.msra.mxu0 0.0
    %916 = vmatprep.subr.mxu0 0.0
    %917 = vmatpush1.xpose.msra.mxu0 0.0
    %918 = vmatprep.subr.mxu0 0.0
    %919 = vmatpush1.xpose.msra.mxu0 0.0
    %920 = vmatprep.subr.mxu0 0.0
    %921 = vmatpush1.xpose.msra.mxu0 0.0
    %922 = vmatprep.subr.mxu0 0.0
    %923 = vmatpush1.xpose.msra.mxu0 0.0
    %924 = vmatprep.subr.mxu0 0.0
    %925 = vmatpush1.xpose.msra.mxu0 0.0
    %926 = vmatprep.subr.mxu0 0.0
    %927 = vmatpush1.xpose.msra.mxu0 0.0
    %928 = vmatprep.subr.mxu0 0.0
    %929 = vmatpush1.xpose.msra.mxu0 0.0
    %930 = vmatprep.subr.mxu0 0.0
    %931 = vmatpush1.xpose.msra.mxu0 0.0
    %932 = vmatprep.subr.mxu0 0.0
    %933 = vmatpush1.xpose.msra.mxu0 0.0
    %934 = vmatprep.subr.mxu0 0.0
    %935 = vmatpush1.xpose.msra.mxu0 0.0
    %936 = vmatprep.subr.mxu0 0.0
    %937 = vmatpush1.xpose.msra.mxu0 0.0
    %938 = vmatprep.subr.mxu0 0.0
    %939 = vmatpush1.xpose.msra.mxu0 0.0
    %940 = vmatprep.subr.mxu0 0.0
    %941 = vmatpush1.xpose.msra.mxu0 0.0
    %942 = vmatprep.subr.mxu0 0.0
    %943 = vmatpush1.xpose.msra.mxu0 0.0
    %944 = vmatprep.subr.mxu0 0.0
    %945 = vmatpush1.xpose.msra.mxu0 0.0
    %946 = vmatprep.subr.mxu0 0.0
    %947 = vmatpush1.xpose.msra.mxu0 0.0
    %948 = vmatprep.mubr.f32.mxu0 0.0
    %949 = vmatmul.mubr.f32.gmra.mrb[0].mxu0 %v880
    %v950 = vpop.f32.mrb[0].mxu0
    %v951 = vadd.f32 0.0, %v950
    %v952 = vpop.f32.mrb[0].mxu0
    %953 = vdwg.mxu0
    %954 = vrot.lane.b32.xlu0 %v420, 96
    %v955 = vpop.permute.xlu0 %954
    %v956 = vsel %vm423, %v420, 0
    %v958 = vsel %vm423, %v955, 0
    %960 = vmatprep.subr.mxu0 0.0
    %961 = vmatpush1.xpose.msra.mxu0 %v958
    %962 = vmatprep.subr.mxu0 0.0
    %963 = vmatpush1.xpose.msra.mxu0 0.0
    %964 = vmatprep.subr.mxu0 0.0
    %965 = vmatpush1.xpose.msra.mxu0 0.0
    %966 = vmatprep.subr.mxu0 0.0
    %967 = vmatpush1.xpose.msra.mxu0 0.0
    %968 = vmatprep.subr.mxu0 0.0
    %969 = vmatpush1.xpose.msra.mxu0 0.0
    %970 = vmatprep.subr.mxu0 0.0
    %971 = vmatpush1.xpose.msra.mxu0 0.0
    %972 = vmatprep.subr.mxu0 0.0
    %973 = vmatpush1.xpose.msra.mxu0 0.0
    %974 = vmatprep.subr.mxu0 0.0
    %975 = vmatpush1.xpose.msra.mxu0 0.0
    %976 = vmatprep.subr.mxu0 0.0
    %977 = vmatpush1.xpose.msra.mxu0 0.0
    %978 = vmatprep.subr.mxu0 0.0
    %979 = vmatpush1.xpose.msra.mxu0 0.0
    %980 = vmatprep.subr.mxu0 0.0
    %981 = vmatpush1.xpose.msra.mxu0 0.0
    %982 = vmatprep.subr.mxu0 0.0
    %983 = vmatpush1.xpose.msra.mxu0 0.0
    %984 = vmatprep.subr.mxu0 0.0
    %985 = vmatpush1.xpose.msra.mxu0 0.0
    %986 = vmatprep.subr.mxu0 0.0
    %987 = vmatpush1.xpose.msra.mxu0 0.0
    %988 = vmatprep.subr.mxu0 0.0
    %989 = vmatpush1.xpose.msra.mxu0 0.0
    %990 = vmatprep.subr.mxu0 0.0
    %991 = vmatpush1.xpose.msra.mxu0 0.0
    %992 = vmatprep.subr.mxu0 0.0
    %993 = vmatpush1.xpose.msra.mxu0 0.0
    %994 = vmatprep.subr.mxu0 0.0
    %995 = vmatpush1.xpose.msra.mxu0 0.0
    %996 = vmatprep.subr.mxu0 0.0
    %997 = vmatpush1.xpose.msra.mxu0 0.0
    %998 = vmatprep.subr.mxu0 0.0
    %999 = vmatpush1.xpose.msra.mxu0 0.0
    %1000 = vmatprep.subr.mxu0 0.0
    %1001 = vmatpush1.xpose.msra.mxu0 0.0
    %1002 = vmatprep.subr.mxu0 0.0
    %1003 = vmatpush1.xpose.msra.mxu0 0.0
    %1004 = vmatprep.subr.mxu0 0.0
    %1005 = vmatpush1.xpose.msra.mxu0 0.0
    %1006 = vmatprep.subr.mxu0 0.0
    %1007 = vmatpush1.xpose.msra.mxu0 0.0
    %1008 = vmatprep.subr.mxu0 0.0
    %1009 = vmatpush1.xpose.msra.mxu0 0.0
    %1010 = vmatprep.subr.mxu0 0.0
    %1011 = vmatpush1.xpose.msra.mxu0 0.0
    %1012 = vmatprep.subr.mxu0 0.0
    %1013 = vmatpush1.xpose.msra.mxu0 0.0
    %1014 = vmatprep.subr.mxu0 0.0
    %1015 = vmatpush1.xpose.msra.mxu0 0.0
    %1016 = vmatprep.subr.mxu0 0.0
    %1017 = vmatpush1.xpose.msra.mxu0 0.0
    %1018 = vmatprep.subr.mxu0 0.0
    %1019 = vmatpush1.xpose.msra.mxu0 0.0
    %1020 = vmatprep.subr.mxu0 0.0
    %1021 = vmatpush1.xpose.msra.mxu0 0.0
    %1022 = vmatprep.subr.mxu0 0.0
    %1023 = vmatpush1.xpose.msra.mxu0 0.0
    %1024 = vmatprep.mubr.f32.mxu0 0.0
    %1025 = vmatmul.mubr.f32.gmra.mrb[0].mxu0 %v956
    %v1026 = vpop.f32.mrb[0].mxu0
    %v1027 = vadd.f32 0.0, %v1026
    %v1028 = vpop.f32.mrb[0].mxu0
    %1029 = vdwg.mxu0
    %v1030 = vmul.f32 %v495, 0.35355338
    %v1031 = vmul.f32 %v571, 0.35355338
    %v1032 = vmul.f32 %v647, 0.35355338
    %v1033 = vmul.f32 %v723, 0.35355338
    %v1034 = vmul.f32 %v799, 0.35355338
    %v1035 = vmul.f32 %v875, 0.35355338
    %v1036 = vmul.f32 %v951, 0.35355338
    %v1037 = vmul.f32 %v1027, 0.35355338
    %v1038 = vsel %vm423, %v1030, -inf
    %1039 = vmax.xlane.f32.xlu0 %v1038
    %v1040 = vpop.xlane.xlu0 %1039
    %v1041 = vsel %vm423, %v1031, -inf
    %1042 = vmax.xlane.f32.xlu0 %v1041
    %v1043 = vpop.xlane.xlu0 %1042
    %v1044 = vsel %vm423, %v1032, -inf
    %1045 = vmax.xlane.f32.xlu0 %v1044
    %v1046 = vpop.xlane.xlu0 %1045
    %v1047 = vsel %vm423, %v1033, -inf
    %1048 = vmax.xlane.f32.xlu0 %v1047
    %v1049 = vpop.xlane.xlu0 %1048
    %v1050 = vsel %vm423, %v1034, -inf
    %1051 = vmax.xlane.f32.xlu0 %v1050
    %v1052 = vpop.xlane.xlu0 %1051
    %v1053 = vsel %vm423, %v1035, -inf
    %1054 = vmax.xlane.f32.xlu0 %v1053
    %v1055 = vpop.xlane.xlu0 %1054
    %v1056 = vsel %vm423, %v1036, -inf
    %1057 = vmax.xlane.f32.xlu0 %v1056
    %v1058 = vpop.xlane.xlu0 %1057
    %v1059 = vsel %vm423, %v1037, -inf
    %1060 = vmax.xlane.f32.xlu0 %v1059
    %v1061 = vpop.xlane.xlu0 %1060
    %v1062 = vsub.f32 %v1030, %v1040
    %v1063 = vsub.f32 %v1031, %v1043
    %v1064 = vsub.f32 %v1032, %v1046
    %v1065 = vsub.f32 %v1033, %v1049
    %v1066 = vsub.f32 %v1034, %v1052
    %v1067 = vsub.f32 %v1035, %v1055
    %v1068 = vsub.f32 %v1036, %v1058
    %v1069 = vsub.f32 %v1037, %v1061
    %v1070 = vmul.f32 %v1062, 1.442695
    %v1071 = vpow.pop %v1070
    %v1072 = vmul.f32 %v1063, 1.442695
    %v1073 = vpow.pop %v1072
    %v1074 = vmul.f32 %v1064, 1.442695
    %v1075 = vpow.pop %v1074
    %v1076 = vmul.f32 %v1065, 1.442695
    %v1077 = vpow.pop %v1076
    %v1078 = vmul.f32 %v1066, 1.442695
    %v1079 = vpow.pop %v1078
    %v1080 = vmul.f32 %v1067, 1.442695
    %v1081 = vpow.pop %v1080
    %v1082 = vmul.f32 %v1068, 1.442695
    %v1083 = vpow.pop %v1082
    %v1084 = vmul.f32 %v1069, 1.442695
    %v1085 = vpow.pop %v1084
    %v1086 = vsel %vm423, %v1071, 0.0
    %1087 = vadd.xlane.f32.xlu0 %v1086
    %v1088 = vpop.xlane.xlu0 %1087
    %v1089 = vsel %vm423, %v1073, 0.0
    %1090 = vadd.xlane.f32.xlu0 %v1089
    %v1091 = vpop.xlane.xlu0 %1090
    %v1092 = vsel %vm423, %v1075, 0.0
    %1093 = vadd.xlane.f32.xlu0 %v1092
    %v1094 = vpop.xlane.xlu0 %1093
    %v1095 = vsel %vm423, %v1077, 0.0
    %1096 = vadd.xlane.f32.xlu0 %v1095
    %v1097 = vpop.xlane.xlu0 %1096
    %v1098 = vsel %vm423, %v1079, 0.0
    %1099 = vadd.xlane.f32.xlu0 %v1098
    %v1100 = vpop.xlane.xlu0 %1099
    %v1101 = vsel %vm423, %v1081, 0.0
    %1102 = vadd.xlane.f32.xlu0 %v1101
    %v1103 = vpop.xlane.xlu0 %1102
    %v1104 = vsel %vm423, %v1083, 0.0
    %1105 = vadd.xlane.f32.xlu0 %v1104
    %v1106 = vpop.xlane.xlu0 %1105
    %v1107 = vsel %vm423, %v1085, 0.0
    %1108 = vadd.xlane.f32.xlu0 %v1107
    %v1109 = vpop.xlane.xlu0 %1108
    %v1110 = vrcp.pop %v1088
    %v1111 = vrcp.pop %v1091
    %v1112 = vrcp.pop %v1094
    %v1113 = vrcp.pop %v1097
    %v1114 = vrcp.pop %v1100
    %v1115 = vrcp.pop %v1103
    %v1116 = vrcp.pop %v1106
    %v1117 = vrcp.pop %v1109
    %v1118 = vmul.f32 %v1071, %v1110
    %v1119 = vmul.f32 %v1073, %v1111
    %v1120 = vmul.f32 %v1075, %v1112
    %v1121 = vmul.f32 %v1077, %v1113
    %v1122 = vmul.f32 %v1079, %v1114
    %v1123 = vmul.f32 %v1081, %v1115
    %v1124 = vmul.f32 %v1083, %v1116
    %v1125 = vmul.f32 %v1085, %v1117
    %1126 = vrot.lane.b32.xlu0 %v399, 64
    %v1127 = vpop.permute.xlu0 %1126
    %v1130 = vsel %vm423, %v1118, 0
    %1132 = vmatprep.subr.mxu0 0.0
    %1133 = vmatpush1.msra.mxu0 %v1127
    %1134 = vmatprep.subr.mxu0 0.0
    %1135 = vmatpush1.msra.mxu0 0.0
    %1136 = vmatprep.subr.mxu0 0.0
    %1137 = vmatpush1.msra.mxu0 0.0
    %1138 = vmatprep.subr.mxu0 0.0
    %1139 = vmatpush1.msra.mxu0 0.0
    %1140 = vmatprep.subr.mxu0 0.0
    %1141 = vmatpush1.msra.mxu0 0.0
    %1142 = vmatprep.subr.mxu0 0.0
    %1143 = vmatpush1.msra.mxu0 0.0
    %1144 = vmatprep.subr.mxu0 0.0
    %1145 = vmatpush1.msra.mxu0 0.0
    %1146 = vmatprep.subr.mxu0 0.0
    %1147 = vmatpush1.msra.mxu0 0.0
    %1148 = vmatprep.subr.mxu0 0.0
    %1149 = vmatpush1.msra.mxu0 0.0
    %1150 = vmatprep.subr.mxu0 0.0
    %1151 = vmatpush1.msra.mxu0 0.0
    %1152 = vmatprep.subr.mxu0 0.0
    %1153 = vmatpush1.msra.mxu0 0.0
    %1154 = vmatprep.subr.mxu0 0.0
    %1155 = vmatpush1.msra.mxu0 0.0
    %1156 = vmatprep.subr.mxu0 0.0
    %1157 = vmatpush1.msra.mxu0 0.0
    %1158 = vmatprep.subr.mxu0 0.0
    %1159 = vmatpush1.msra.mxu0 0.0
    %1160 = vmatprep.subr.mxu0 0.0
    %1161 = vmatpush1.msra.mxu0 0.0
    %1162 = vmatprep.subr.mxu0 0.0
    %1163 = vmatpush1.msra.mxu0 0.0
    %1164 = vmatprep.subr.mxu0 0.0
    %1165 = vmatpush1.msra.mxu0 0.0
    %1166 = vmatprep.subr.mxu0 0.0
    %1167 = vmatpush1.msra.mxu0 0.0
    %1168 = vmatprep.subr.mxu0 0.0
    %1169 = vmatpush1.msra.mxu0 0.0
    %1170 = vmatprep.subr.mxu0 0.0
    %1171 = vmatpush1.msra.mxu0 0.0
    %1172 = vmatprep.subr.mxu0 0.0
    %1173 = vmatpush1.msra.mxu0 0.0
    %1174 = vmatprep.subr.mxu0 0.0
    %1175 = vmatpush1.msra.mxu0 0.0
    %1176 = vmatprep.subr.mxu0 0.0
    %1177 = vmatpush1.msra.mxu0 0.0
    %1178 = vmatprep.subr.mxu0 0.0
    %1179 = vmatpush1.msra.mxu0 0.0
    %1180 = vmatprep.subr.mxu0 0.0
    %1181 = vmatpush1.msra.mxu0 0.0
    %1182 = vmatprep.subr.mxu0 0.0
    %1183 = vmatpush1.msra.mxu0 0.0
    %1184 = vmatprep.subr.mxu0 0.0
    %1185 = vmatpush1.msra.mxu0 0.0
    %1186 = vmatprep.subr.mxu0 0.0
    %1187 = vmatpush1.msra.mxu0 0.0
    %1188 = vmatprep.subr.mxu0 0.0
    %1189 = vmatpush1.msra.mxu0 0.0
    %1190 = vmatprep.subr.mxu0 0.0
    %1191 = vmatpush1.msra.mxu0 0.0
    %1192 = vmatprep.subr.mxu0 0.0
    %1193 = vmatpush1.msra.mxu0 0.0
    %1194 = vmatprep.subr.mxu0 0.0
    %1195 = vmatpush1.msra.mxu0 0.0
    %1196 = vmatprep.mubr.f32.mxu0 0.0
    %1197 = vmatmul.mubr.f32.gmra.mrb[0].mxu0 %v1130
    %v1198 = vpop.f32.mrb[0].mxu0
    %v1199 = vadd.f32 0.0, %v1198
    %v1200 = vpop.f32.mrb[0].mxu0
    %1201 = vdwg.mxu0
    %1202 = vrot.lane.b32.xlu0 %v409, 64
    %v1203 = vpop.permute.xlu0 %1202
    %v1206 = vsel %vm423, %v1119, 0
    %1208 = vmatprep.subr.mxu0 0.0
    %1209 = vmatpush1.msra.mxu0 %v1203
    %1210 = vmatprep.subr.mxu0 0.0
    %1211 = vmatpush1.msra.mxu0 0.0
    %1212 = vmatprep.subr.mxu0 0.0
    %1213 = vmatpush1.msra.mxu0 0.0
    %1214 = vmatprep.subr.mxu0 0.0
    %1215 = vmatpush1.msra.mxu0 0.0
    %1216 = vmatprep.subr.mxu0 0.0
    %1217 = vmatpush1.msra.mxu0 0.0
    %1218 = vmatprep.subr.mxu0 0.0
    %1219 = vmatpush1.msra.mxu0 0.0
    %1220 = vmatprep.subr.mxu0 0.0
    %1221 = vmatpush1.msra.mxu0 0.0
    %1222 = vmatprep.subr.mxu0 0.0
    %1223 = vmatpush1.msra.mxu0 0.0
    %1224 = vmatprep.subr.mxu0 0.0
    %1225 = vmatpush1.msra.mxu0 0.0
    %1226 = vmatprep.subr.mxu0 0.0
    %1227 = vmatpush1.msra.mxu0 0.0
    %1228 = vmatprep.subr.mxu0 0.0
    %1229 = vmatpush1.msra.mxu0 0.0
    %1230 = vmatprep.subr.mxu0 0.0
    %1231 = vmatpush1.msra.mxu0 0.0
    %1232 = vmatprep.subr.mxu0 0.0
    %1233 = vmatpush1.msra.mxu0 0.0
    %1234 = vmatprep.subr.mxu0 0.0
    %1235 = vmatpush1.msra.mxu0 0.0
    %1236 = vmatprep.subr.mxu0 0.0
    %1237 = vmatpush1.msra.mxu0 0.0
    %1238 = vmatprep.subr.mxu0 0.0
    %1239 = vmatpush1.msra.mxu0 0.0
    %1240 = vmatprep.subr.mxu0 0.0
    %1241 = vmatpush1.msra.mxu0 0.0
    %1242 = vmatprep.subr.mxu0 0.0
    %1243 = vmatpush1.msra.mxu0 0.0
    %1244 = vmatprep.subr.mxu0 0.0
    %1245 = vmatpush1.msra.mxu0 0.0
    %1246 = vmatprep.subr.mxu0 0.0
    %1247 = vmatpush1.msra.mxu0 0.0
    %1248 = vmatprep.subr.mxu0 0.0
    %1249 = vmatpush1.msra.mxu0 0.0
    %1250 = vmatprep.subr.mxu0 0.0
    %1251 = vmatpush1.msra.mxu0 0.0
    %1252 = vmatprep.subr.mxu0 0.0
    %1253 = vmatpush1.msra.mxu0 0.0
    %1254 = vmatprep.subr.mxu0 0.0
    %1255 = vmatpush1.msra.mxu0 0.0
    %1256 = vmatprep.subr.mxu0 0.0
    %1257 = vmatpush1.msra.mxu0 0.0
    %1258 = vmatprep.subr.mxu0 0.0
    %1259 = vmatpush1.msra.mxu0 0.0
    %1260 = vmatprep.subr.mxu0 0.0
    %1261 = vmatpush1.msra.mxu0 0.0
    %1262 = vmatprep.subr.mxu0 0.0
    %1263 = vmatpush1.msra.mxu0 0.0
    %1264 = vmatprep.subr.mxu0 0.0
    %1265 = vmatpush1.msra.mxu0 0.0
    %1266 = vmatprep.subr.mxu0 0.0
    %1267 = vmatpush1.msra.mxu0 0.0
    %1268 = vmatprep.subr.mxu0 0.0
    %1269 = vmatpush1.msra.mxu0 0.0
    %1270 = vmatprep.subr.mxu0 0.0
    %1271 = vmatpush1.msra.mxu0 0.0
    %1272 = vmatprep.mubr.f32.mxu0 0.0
    %1273 = vmatmul.mubr.f32.gmra.mrb[0].mxu0 %v1206
    %v1274 = vpop.f32.mrb[0].mxu0
    %v1275 = vadd.f32 0.0, %v1274
    %v1276 = vpop.f32.mrb[0].mxu0
    %1277 = vdwg.mxu0
    %1278 = vrot.lane.b32.xlu0 %v411, 64
    %v1279 = vpop.permute.xlu0 %1278
    %v1282 = vsel %vm423, %v1120, 0
    %1284 = vmatprep.subr.mxu0 0.0
    %1285 = vmatpush1.msra.mxu0 %v1279
    %1286 = vmatprep.subr.mxu0 0.0
    %1287 = vmatpush1.msra.mxu0 0.0
    %1288 = vmatprep.subr.mxu0 0.0
    %1289 = vmatpush1.msra.mxu0 0.0
    %1290 = vmatprep.subr.mxu0 0.0
    %1291 = vmatpush1.msra.mxu0 0.0
    %1292 = vmatprep.subr.mxu0 0.0
    %1293 = vmatpush1.msra.mxu0 0.0
    %1294 = vmatprep.subr.mxu0 0.0
    %1295 = vmatpush1.msra.mxu0 0.0
    %1296 = vmatprep.subr.mxu0 0.0
    %1297 = vmatpush1.msra.mxu0 0.0
    %1298 = vmatprep.subr.mxu0 0.0
    %1299 = vmatpush1.msra.mxu0 0.0
    %1300 = vmatprep.subr.mxu0 0.0
    %1301 = vmatpush1.msra.mxu0 0.0
    %1302 = vmatprep.subr.mxu0 0.0
    %1303 = vmatpush1.msra.mxu0 0.0
    %1304 = vmatprep.subr.mxu0 0.0
    %1305 = vmatpush1.msra.mxu0 0.0
    %1306 = vmatprep.subr.mxu0 0.0
    %1307 = vmatpush1.msra.mxu0 0.0
    %1308 = vmatprep.subr.mxu0 0.0
    %1309 = vmatpush1.msra.mxu0 0.0
    %1310 = vmatprep.subr.mxu0 0.0
    %1311 = vmatpush1.msra.mxu0 0.0
    %1312 = vmatprep.subr.mxu0 0.0
    %1313 = vmatpush1.msra.mxu0 0.0
    %1314 = vmatprep.subr.mxu0 0.0
    %1315 = vmatpush1.msra.mxu0 0.0
    %1316 = vmatprep.subr.mxu0 0.0
    %1317 = vmatpush1.msra.mxu0 0.0
    %1318 = vmatprep.subr.mxu0 0.0
    %1319 = vmatpush1.msra.mxu0 0.0
    %1320 = vmatprep.subr.mxu0 0.0
    %1321 = vmatpush1.msra.mxu0 0.0
    %1322 = vmatprep.subr.mxu0 0.0
    %1323 = vmatpush1.msra.mxu0 0.0
    %1324 = vmatprep.subr.mxu0 0.0
    %1325 = vmatpush1.msra.mxu0 0.0
    %1326 = vmatprep.subr.mxu0 0.0
    %1327 = vmatpush1.msra.mxu0 0.0
    %1328 = vmatprep.subr.mxu0 0.0
    %1329 = vmatpush1.msra.mxu0 0.0
    %1330 = vmatprep.subr.mxu0 0.0
    %1331 = vmatpush1.msra.mxu0 0.0
    %1332 = vmatprep.subr.mxu0 0.0
    %1333 = vmatpush1.msra.mxu0 0.0
    %1334 = vmatprep.subr.mxu0 0.0
    %1335 = vmatpush1.msra.mxu0 0.0
    %1336 = vmatprep.subr.mxu0 0.0
    %1337 = vmatpush1.msra.mxu0 0.0
    %1338 = vmatprep.subr.mxu0 0.0
    %1339 = vmatpush1.msra.mxu0 0.0
    %1340 = vmatprep.subr.mxu0 0.0
    %1341 = vmatpush1.msra.mxu0 0.0
    %1342 = vmatprep.subr.mxu0 0.0
    %1343 = vmatpush1.msra.mxu0 0.0
    %1344 = vmatprep.subr.mxu0 0.0
    %1345 = vmatpush1.msra.mxu0 0.0
    %1346 = vmatprep.subr.mxu0 0.0
    %1347 = vmatpush1.msra.mxu0 0.0
    %1348 = vmatprep.mubr.f32.mxu0 0.0
    %1349 = vmatmul.mubr.f32.gmra.mrb[0].mxu0 %v1282
    %v1350 = vpop.f32.mrb[0].mxu0
    %v1351 = vadd.f32 0.0, %v1350
    %v1352 = vpop.f32.mrb[0].mxu0
    %1353 = vdwg.mxu0
    %1354 = vrot.lane.b32.xlu0 %v413, 64
    %v1355 = vpop.permute.xlu0 %1354
    %v1358 = vsel %vm423, %v1121, 0
    %1360 = vmatprep.subr.mxu0 0.0
    %1361 = vmatpush1.msra.mxu0 %v1355
    %1362 = vmatprep.subr.mxu0 0.0
    %1363 = vmatpush1.msra.mxu0 0.0
    %1364 = vmatprep.subr.mxu0 0.0
    %1365 = vmatpush1.msra.mxu0 0.0
    %1366 = vmatprep.subr.mxu0 0.0
    %1367 = vmatpush1.msra.mxu0 0.0
    %1368 = vmatprep.subr.mxu0 0.0
    %1369 = vmatpush1.msra.mxu0 0.0
    %1370 = vmatprep.subr.mxu0 0.0
    %1371 = vmatpush1.msra.mxu0 0.0
    %1372 = vmatprep.subr.mxu0 0.0
    %1373 = vmatpush1.msra.mxu0 0.0
    %1374 = vmatprep.subr.mxu0 0.0
    %1375 = vmatpush1.msra.mxu0 0.0
    %1376 = vmatprep.subr.mxu0 0.0
    %1377 = vmatpush1.msra.mxu0 0.0
    %1378 = vmatprep.subr.mxu0 0.0
    %1379 = vmatpush1.msra.mxu0 0.0
    %1380 = vmatprep.subr.mxu0 0.0
    %1381 = vmatpush1.msra.mxu0 0.0
    %1382 = vmatprep.subr.mxu0 0.0
    %1383 = vmatpush1.msra.mxu0 0.0
    %1384 = vmatprep.subr.mxu0 0.0
    %1385 = vmatpush1.msra.mxu0 0.0
    %1386 = vmatprep.subr.mxu0 0.0
    %1387 = vmatpush1.msra.mxu0 0.0
    %1388 = vmatprep.subr.mxu0 0.0
    %1389 = vmatpush1.msra.mxu0 0.0
    %1390 = vmatprep.subr.mxu0 0.0
    %1391 = vmatpush1.msra.mxu0 0.0
    %1392 = vmatprep.subr.mxu0 0.0
    %1393 = vmatpush1.msra.mxu0 0.0
    %1394 = vmatprep.subr.mxu0 0.0
    %1395 = vmatpush1.msra.mxu0 0.0
    %1396 = vmatprep.subr.mxu0 0.0
    %1397 = vmatpush1.msra.mxu0 0.0
    %1398 = vmatprep.subr.mxu0 0.0
    %1399 = vmatpush1.msra.mxu0 0.0
    %1400 = vmatprep.subr.mxu0 0.0
    %1401 = vmatpush1.msra.mxu0 0.0
    %1402 = vmatprep.subr.mxu0 0.0
    %1403 = vmatpush1.msra.mxu0 0.0
    %1404 = vmatprep.subr.mxu0 0.0
    %1405 = vmatpush1.msra.mxu0 0.0
    %1406 = vmatprep.subr.mxu0 0.0
    %1407 = vmatpush1.msra.mxu0 0.0
    %1408 = vmatprep.subr.mxu0 0.0
    %1409 = vmatpush1.msra.mxu0 0.0
    %1410 = vmatprep.subr.mxu0 0.0
    %1411 = vmatpush1.msra.mxu0 0.0
    %1412 = vmatprep.subr.mxu0 0.0
    %1413 = vmatpush1.msra.mxu0 0.0
    %1414 = vmatprep.subr.mxu0 0.0
    %1415 = vmatpush1.msra.mxu0 0.0
    %1416 = vmatprep.subr.mxu0 0.0
    %1417 = vmatpush1.msra.mxu0 0.0
    %1418 = vmatprep.subr.mxu0 0.0
    %1419 = vmatpush1.msra.mxu0 0.0
    %1420 = vmatprep.subr.mxu0 0.0
    %1421 = vmatpush1.msra.mxu0 0.0
    %1422 = vmatprep.subr.mxu0 0.0
    %1423 = vmatpush1.msra.mxu0 0.0
    %1424 = vmatprep.mubr.f32.mxu0 0.0
    %1425 = vmatmul.mubr.f32.gmra.mrb[0].mxu0 %v1358
    %v1426 = vpop.f32.mrb[0].mxu0
    %v1427 = vadd.f32 0.0, %v1426
    %v1428 = vpop.f32.mrb[0].mxu0
    %1429 = vdwg.mxu0
    %1430 = vrot.lane.b32.xlu0 %v404, 64
    %v1431 = vpop.permute.xlu0 %1430
    %v1434 = vsel %vm423, %v1122, 0
    %1436 = vmatprep.subr.mxu0 0.0
    %1437 = vmatpush1.msra.mxu0 %v1431
    %1438 = vmatprep.subr.mxu0 0.0
    %1439 = vmatpush1.msra.mxu0 0.0
    %1440 = vmatprep.subr.mxu0 0.0
    %1441 = vmatpush1.msra.mxu0 0.0
    %1442 = vmatprep.subr.mxu0 0.0
    %1443 = vmatpush1.msra.mxu0 0.0
    %1444 = vmatprep.subr.mxu0 0.0
    %1445 = vmatpush1.msra.mxu0 0.0
    %1446 = vmatprep.subr.mxu0 0.0
    %1447 = vmatpush1.msra.mxu0 0.0
    %1448 = vmatprep.subr.mxu0 0.0
    %1449 = vmatpush1.msra.mxu0 0.0
    %1450 = vmatprep.subr.mxu0 0.0
    %1451 = vmatpush1.msra.mxu0 0.0
    %1452 = vmatprep.subr.mxu0 0.0
    %1453 = vmatpush1.msra.mxu0 0.0
    %1454 = vmatprep.subr.mxu0 0.0
    %1455 = vmatpush1.msra.mxu0 0.0
    %1456 = vmatprep.subr.mxu0 0.0
    %1457 = vmatpush1.msra.mxu0 0.0
    %1458 = vmatprep.subr.mxu0 0.0
    %1459 = vmatpush1.msra.mxu0 0.0
    %1460 = vmatprep.subr.mxu0 0.0
    %1461 = vmatpush1.msra.mxu0 0.0
    %1462 = vmatprep.subr.mxu0 0.0
    %1463 = vmatpush1.msra.mxu0 0.0
    %1464 = vmatprep.subr.mxu0 0.0
    %1465 = vmatpush1.msra.mxu0 0.0
    %1466 = vmatprep.subr.mxu0 0.0
    %1467 = vmatpush1.msra.mxu0 0.0
    %1468 = vmatprep.subr.mxu0 0.0
    %1469 = vmatpush1.msra.mxu0 0.0
    %1470 = vmatprep.subr.mxu0 0.0
    %1471 = vmatpush1.msra.mxu0 0.0
    %1472 = vmatprep.subr.mxu0 0.0
    %1473 = vmatpush1.msra.mxu0 0.0
    %1474 = vmatprep.subr.mxu0 0.0
    %1475 = vmatpush1.msra.mxu0 0.0
    %1476 = vmatprep.subr.mxu0 0.0
    %1477 = vmatpush1.msra.mxu0 0.0
    %1478 = vmatprep.subr.mxu0 0.0
    %1479 = vmatpush1.msra.mxu0 0.0
    %1480 = vmatprep.subr.mxu0 0.0
    %1481 = vmatpush1.msra.mxu0 0.0
    %1482 = vmatprep.subr.mxu0 0.0
    %1483 = vmatpush1.msra.mxu0 0.0
    %1484 = vmatprep.subr.mxu0 0.0
    %1485 = vmatpush1.msra.mxu0 0.0
    %1486 = vmatprep.subr.mxu0 0.0
    %1487 = vmatpush1.msra.mxu0 0.0
    %1488 = vmatprep.subr.mxu0 0.0
    %1489 = vmatpush1.msra.mxu0 0.0
    %1490 = vmatprep.subr.mxu0 0.0
    %1491 = vmatpush1.msra.mxu0 0.0
    %1492 = vmatprep.subr.mxu0 0.0
    %1493 = vmatpush1.msra.mxu0 0.0
    %1494 = vmatprep.subr.mxu0 0.0
    %1495 = vmatpush1.msra.mxu0 0.0
    %1496 = vmatprep.subr.mxu0 0.0
    %1497 = vmatpush1.msra.mxu0 0.0
    %1498 = vmatprep.subr.mxu0 0.0
    %1499 = vmatpush1.msra.mxu0 0.0
    %1500 = vmatprep.mubr.f32.mxu0 0.0
    %1501 = vmatmul.mubr.f32.gmra.mrb[0].mxu0 %v1434
    %v1502 = vpop.f32.mrb[0].mxu0
    %v1503 = vadd.f32 0.0, %v1502
    %v1504 = vpop.f32.mrb[0].mxu0
    %1505 = vdwg.mxu0
    %1506 = vrot.lane.b32.xlu0 %v416, 64
    %v1507 = vpop.permute.xlu0 %1506
    %v1510 = vsel %vm423, %v1123, 0
    %1512 = vmatprep.subr.mxu0 0.0
    %1513 = vmatpush1.msra.mxu0 %v1507
    %1514 = vmatprep.subr.mxu0 0.0
    %1515 = vmatpush1.msra.mxu0 0.0
    %1516 = vmatprep.subr.mxu0 0.0
    %1517 = vmatpush1.msra.mxu0 0.0
    %1518 = vmatprep.subr.mxu0 0.0
    %1519 = vmatpush1.msra.mxu0 0.0
    %1520 = vmatprep.subr.mxu0 0.0
    %1521 = vmatpush1.msra.mxu0 0.0
    %1522 = vmatprep.subr.mxu0 0.0
    %1523 = vmatpush1.msra.mxu0 0.0
    %1524 = vmatprep.subr.mxu0 0.0
    %1525 = vmatpush1.msra.mxu0 0.0
    %1526 = vmatprep.subr.mxu0 0.0
    %1527 = vmatpush1.msra.mxu0 0.0
    %1528 = vmatprep.subr.mxu0 0.0
    %1529 = vmatpush1.msra.mxu0 0.0
    %1530 = vmatprep.subr.mxu0 0.0
    %1531 = vmatpush1.msra.mxu0 0.0
    %1532 = vmatprep.subr.mxu0 0.0
    %1533 = vmatpush1.msra.mxu0 0.0
    %1534 = vmatprep.subr.mxu0 0.0
    %1535 = vmatpush1.msra.mxu0 0.0
    %1536 = vmatprep.subr.mxu0 0.0
    %1537 = vmatpush1.msra.mxu0 0.0
    %1538 = vmatprep.subr.mxu0 0.0
    %1539 = vmatpush1.msra.mxu0 0.0
    %1540 = vmatprep.subr.mxu0 0.0
    %1541 = vmatpush1.msra.mxu0 0.0
    %1542 = vmatprep.subr.mxu0 0.0
    %1543 = vmatpush1.msra.mxu0 0.0
    %1544 = vmatprep.subr.mxu0 0.0
    %1545 = vmatpush1.msra.mxu0 0.0
    %1546 = vmatprep.subr.mxu0 0.0
    %1547 = vmatpush1.msra.mxu0 0.0
    %1548 = vmatprep.subr.mxu0 0.0
    %1549 = vmatpush1.msra.mxu0 0.0
    %1550 = vmatprep.subr.mxu0 0.0
    %1551 = vmatpush1.msra.mxu0 0.0
    %1552 = vmatprep.subr.mxu0 0.0
    %1553 = vmatpush1.msra.mxu0 0.0
    %1554 = vmatprep.subr.mxu0 0.0
    %1555 = vmatpush1.msra.mxu0 0.0
    %1556 = vmatprep.subr.mxu0 0.0
    %1557 = vmatpush1.msra.mxu0 0.0
    %1558 = vmatprep.subr.mxu0 0.0
    %1559 = vmatpush1.msra.mxu0 0.0
    %1560 = vmatprep.subr.mxu0 0.0
    %1561 = vmatpush1.msra.mxu0 0.0
    %1562 = vmatprep.subr.mxu0 0.0
    %1563 = vmatpush1.msra.mxu0 0.0
    %1564 = vmatprep.subr.mxu0 0.0
    %1565 = vmatpush1.msra.mxu0 0.0
    %1566 = vmatprep.subr.mxu0 0.0
    %1567 = vmatpush1.msra.mxu0 0.0
    %1568 = vmatprep.subr.mxu0 0.0
    %1569 = vmatpush1.msra.mxu0 0.0
    %1570 = vmatprep.subr.mxu0 0.0
    %1571 = vmatpush1.msra.mxu0 0.0
    %1572 = vmatprep.subr.mxu0 0.0
    %1573 = vmatpush1.msra.mxu0 0.0
    %1574 = vmatprep.subr.mxu0 0.0
    %1575 = vmatpush1.msra.mxu0 0.0
    %1576 = vmatprep.mubr.f32.mxu0 0.0
    %1577 = vmatmul.mubr.f32.gmra.mrb[0].mxu0 %v1510
    %v1578 = vpop.f32.mrb[0].mxu0
    %v1579 = vadd.f32 0.0, %v1578
    %v1580 = vpop.f32.mrb[0].mxu0
    %1581 = vdwg.mxu0
    %1582 = vrot.lane.b32.xlu0 %v418, 64
    %v1583 = vpop.permute.xlu0 %1582
    %v1586 = vsel %vm423, %v1124, 0
    %1588 = vmatprep.subr.mxu0 0.0
    %1589 = vmatpush1.msra.mxu0 %v1583
    %1590 = vmatprep.subr.mxu0 0.0
    %1591 = vmatpush1.msra.mxu0 0.0
    %1592 = vmatprep.subr.mxu0 0.0
    %1593 = vmatpush1.msra.mxu0 0.0
    %1594 = vmatprep.subr.mxu0 0.0
    %1595 = vmatpush1.msra.mxu0 0.0
    %1596 = vmatprep.subr.mxu0 0.0
    %1597 = vmatpush1.msra.mxu0 0.0
    %1598 = vmatprep.subr.mxu0 0.0
    %1599 = vmatpush1.msra.mxu0 0.0
    %1600 = vmatprep.subr.mxu0 0.0
    %1601 = vmatpush1.msra.mxu0 0.0
    %1602 = vmatprep.subr.mxu0 0.0
    %1603 = vmatpush1.msra.mxu0 0.0
    %1604 = vmatprep.subr.mxu0 0.0
    %1605 = vmatpush1.msra.mxu0 0.0
    %1606 = vmatprep.subr.mxu0 0.0
    %1607 = vmatpush1.msra.mxu0 0.0
    %1608 = vmatprep.subr.mxu0 0.0
    %1609 = vmatpush1.msra.mxu0 0.0
    %1610 = vmatprep.subr.mxu0 0.0
    %1611 = vmatpush1.msra.mxu0 0.0
    %1612 = vmatprep.subr.mxu0 0.0
    %1613 = vmatpush1.msra.mxu0 0.0
    %1614 = vmatprep.subr.mxu0 0.0
    %1615 = vmatpush1.msra.mxu0 0.0
    %1616 = vmatprep.subr.mxu0 0.0
    %1617 = vmatpush1.msra.mxu0 0.0
    %1618 = vmatprep.subr.mxu0 0.0
    %1619 = vmatpush1.msra.mxu0 0.0
    %1620 = vmatprep.subr.mxu0 0.0
    %1621 = vmatpush1.msra.mxu0 0.0
    %1622 = vmatprep.subr.mxu0 0.0
    %1623 = vmatpush1.msra.mxu0 0.0
    %1624 = vmatprep.subr.mxu0 0.0
    %1625 = vmatpush1.msra.mxu0 0.0
    %1626 = vmatprep.subr.mxu0 0.0
    %1627 = vmatpush1.msra.mxu0 0.0
    %1628 = vmatprep.subr.mxu0 0.0
    %1629 = vmatpush1.msra.mxu0 0.0
    %1630 = vmatprep.subr.mxu0 0.0
    %1631 = vmatpush1.msra.mxu0 0.0
    %1632 = vmatprep.subr.mxu0 0.0
    %1633 = vmatpush1.msra.mxu0 0.0
    %1634 = vmatprep.subr.mxu0 0.0
    %1635 = vmatpush1.msra.mxu0 0.0
    %1636 = vmatprep.subr.mxu0 0.0
    %1637 = vmatpush1.msra.mxu0 0.0
    %1638 = vmatprep.subr.mxu0 0.0
    %1639 = vmatpush1.msra.mxu0 0.0
    %1640 = vmatprep.subr.mxu0 0.0
    %1641 = vmatpush1.msra.mxu0 0.0
    %1642 = vmatprep.subr.mxu0 0.0
    %1643 = vmatpush1.msra.mxu0 0.0
    %1644 = vmatprep.subr.mxu0 0.0
    %1645 = vmatpush1.msra.mxu0 0.0
    %1646 = vmatprep.subr.mxu0 0.0
    %1647 = vmatpush1.msra.mxu0 0.0
    %1648 = vmatprep.subr.mxu0 0.0
    %1649 = vmatpush1.msra.mxu0 0.0
    %1650 = vmatprep.subr.mxu0 0.0
    %1651 = vmatpush1.msra.mxu0 0.0
    %1652 = vmatprep.mubr.f32.mxu0 0.0
    %1653 = vmatmul.mubr.f32.gmra.mrb[0].mxu0 %v1586
    %v1654 = vpop.f32.mrb[0].mxu0
    %v1655 = vadd.f32 0.0, %v1654
    %v1656 = vpop.f32.mrb[0].mxu0
    %1657 = vdwg.mxu0
    %1658 = vrot.lane.b32.xlu0 %v420, 64
    %v1659 = vpop.permute.xlu0 %1658
    %v1662 = vsel %vm423, %v1125, 0
    %1664 = vmatprep.subr.mxu0 0.0
    %1665 = vmatpush1.msra.mxu0 %v1659
    %1666 = vmatprep.subr.mxu0 0.0
    %1667 = vmatpush1.msra.mxu0 0.0
    %1668 = vmatprep.subr.mxu0 0.0
    %1669 = vmatpush1.msra.mxu0 0.0
    %1670 = vmatprep.subr.mxu0 0.0
    %1671 = vmatpush1.msra.mxu0 0.0
    %1672 = vmatprep.subr.mxu0 0.0
    %1673 = vmatpush1.msra.mxu0 0.0
    %1674 = vmatprep.subr.mxu0 0.0
    %1675 = vmatpush1.msra.mxu0 0.0
    %1676 = vmatprep.subr.mxu0 0.0
    %1677 = vmatpush1.msra.mxu0 0.0
    %1678 = vmatprep.subr.mxu0 0.0
    %1679 = vmatpush1.msra.mxu0 0.0
    %1680 = vmatprep.subr.mxu0 0.0
    %1681 = vmatpush1.msra.mxu0 0.0
    %1682 = vmatprep.subr.mxu0 0.0
    %1683 = vmatpush1.msra.mxu0 0.0
    %1684 = vmatprep.subr.mxu0 0.0
    %1685 = vmatpush1.msra.mxu0 0.0
    %1686 = vmatprep.subr.mxu0 0.0
    %1687 = vmatpush1.msra.mxu0 0.0
    %1688 = vmatprep.subr.mxu0 0.0
    %1689 = vmatpush1.msra.mxu0 0.0
    %1690 = vmatprep.subr.mxu0 0.0
    %1691 = vmatpush1.msra.mxu0 0.0
    %1692 = vmatprep.subr.mxu0 0.0
    %1693 = vmatpush1.msra.mxu0 0.0
    %1694 = vmatprep.subr.mxu0 0.0
    %1695 = vmatpush1.msra.mxu0 0.0
    %1696 = vmatprep.subr.mxu0 0.0
    %1697 = vmatpush1.msra.mxu0 0.0
    %1698 = vmatprep.subr.mxu0 0.0
    %1699 = vmatpush1.msra.mxu0 0.0
    %1700 = vmatprep.subr.mxu0 0.0
    %1701 = vmatpush1.msra.mxu0 0.0
    %1702 = vmatprep.subr.mxu0 0.0
    %1703 = vmatpush1.msra.mxu0 0.0
    %1704 = vmatprep.subr.mxu0 0.0
    %1705 = vmatpush1.msra.mxu0 0.0
    %1706 = vmatprep.subr.mxu0 0.0
    %1707 = vmatpush1.msra.mxu0 0.0
    %1708 = vmatprep.subr.mxu0 0.0
    %1709 = vmatpush1.msra.mxu0 0.0
    %1710 = vmatprep.subr.mxu0 0.0
    %1711 = vmatpush1.msra.mxu0 0.0
    %1712 = vmatprep.subr.mxu0 0.0
    %1713 = vmatpush1.msra.mxu0 0.0
    %1714 = vmatprep.subr.mxu0 0.0
    %1715 = vmatpush1.msra.mxu0 0.0
    %1716 = vmatprep.subr.mxu0 0.0
    %1717 = vmatpush1.msra.mxu0 0.0
    %1718 = vmatprep.subr.mxu0 0.0
    %1719 = vmatpush1.msra.mxu0 0.0
    %1720 = vmatprep.subr.mxu0 0.0
    %1721 = vmatpush1.msra.mxu0 0.0
    %1722 = vmatprep.subr.mxu0 0.0
    %1723 = vmatpush1.msra.mxu0 0.0
    %1724 = vmatprep.subr.mxu0 0.0
    %1725 = vmatpush1.msra.mxu0 0.0
    %1726 = vmatprep.subr.mxu0 0.0
    %1727 = vmatpush1.msra.mxu0 0.0
    %1728 = vmatprep.mubr.f32.mxu0 0.0
    %1729 = vmatmul.mubr.f32.gmra.mrb[0].mxu0 %v1662
    %v1730 = vpop.f32.mrb[0].mxu0
    %v1731 = vadd.f32 0.0, %v1730
    %v1732 = vpop.f32.mrb[0].mxu0
    %1733 = vdwg.mxu0
    %1735 = vrot.lane.b32.xlu0 %v1275, 8
    %v1736 = vpop.permute.xlu0 %1735
    %1739 = vrot.lane.b32.xlu0 %v1351, 16
    %v1740 = vpop.permute.xlu0 %1739
    %1743 = vrot.lane.b32.xlu0 %v1427, 24
    %v1744 = vpop.permute.xlu0 %1743
    %v1746 = vsel %vm423, %v1199, %v1736
    %v1747 = vsel %vm156, %v1746, %v1740
    %vm1748 = vcmask 195584
    %v1749 = vsel %vm1748, %v1747, %v1744
    %1751 = vrot.lane.b32.xlu0 %v1579, 8
    %v1752 = vpop.permute.xlu0 %1751
    %1755 = vrot.lane.b32.xlu0 %v1655, 16
    %v1756 = vpop.permute.xlu0 %1755
    %1759 = vrot.lane.b32.xlu0 %v1731, 24
    %v1760 = vpop.permute.xlu0 %1759
    %v1762 = vsel %vm423, %v1503, %v1752
    %v1763 = vsel %vm156, %v1762, %v1756
    %v1764 = vsel %vm1748, %v1763, %v1760
    %v1766 = vlaneseq
    %v1767 = vshrl.u32 %v1766, 7
    %v1768 = vsub.s32 0, %v1767
    %v1769 = vrot.slane %v247, %v1768
    %v1772 = vsel %vm276, %v1749, 0
    %v1775 = vsel %vm276, %v1764, 0
    %1777 = vmatprep.subr.mxu0 0.0
    %1778 = vmatpush1.msra.mxu0 %v243
    %1779 = vmatprep.subr.mxu0 0.0
    %1780 = vmatpush1.msra.mxu0 %v244
    %1781 = vmatprep.subr.mxu0 0.0
    %1782 = vmatpush1.msra.mxu0 %v245
    %1783 = vmatprep.subr.mxu0 0.0
    %1784 = vmatpush1.msra.mxu0 %v246
    %1785 = vmatprep.subr.mxu0 0.0
    %1786 = vmatpush1.msra.mxu0 0.0
    %1787 = vmatprep.subr.mxu0 0.0
    %1788 = vmatpush1.msra.mxu0 0.0
    %1789 = vmatprep.subr.mxu0 0.0
    %1790 = vmatpush1.msra.mxu0 0.0
    %1791 = vmatprep.subr.mxu0 0.0
    %1792 = vmatpush1.msra.mxu0 0.0
    %1793 = vmatprep.subr.mxu0 0.0
    %1794 = vmatpush1.msra.mxu0 0.0
    %1795 = vmatprep.subr.mxu0 0.0
    %1796 = vmatpush1.msra.mxu0 0.0
    %1797 = vmatprep.subr.mxu0 0.0
    %1798 = vmatpush1.msra.mxu0 0.0
    %1799 = vmatprep.subr.mxu0 0.0
    %1800 = vmatpush1.msra.mxu0 0.0
    %1801 = vmatprep.subr.mxu0 0.0
    %1802 = vmatpush1.msra.mxu0 0.0
    %1803 = vmatprep.subr.mxu0 0.0
    %1804 = vmatpush1.msra.mxu0 0.0
    %1805 = vmatprep.subr.mxu0 0.0
    %1806 = vmatpush1.msra.mxu0 0.0
    %1807 = vmatprep.subr.mxu0 0.0
    %1808 = vmatpush1.msra.mxu0 0.0
    %1809 = vmatprep.subr.mxu0 0.0
    %1810 = vmatpush1.msra.mxu0 0.0
    %1811 = vmatprep.subr.mxu0 0.0
    %1812 = vmatpush1.msra.mxu0 0.0
    %1813 = vmatprep.subr.mxu0 0.0
    %1814 = vmatpush1.msra.mxu0 0.0
    %1815 = vmatprep.subr.mxu0 0.0
    %1816 = vmatpush1.msra.mxu0 0.0
    %1817 = vmatprep.subr.mxu0 0.0
    %1818 = vmatpush1.msra.mxu0 0.0
    %1819 = vmatprep.subr.mxu0 0.0
    %1820 = vmatpush1.msra.mxu0 0.0
    %1821 = vmatprep.subr.mxu0 0.0
    %1822 = vmatpush1.msra.mxu0 0.0
    %1823 = vmatprep.subr.mxu0 0.0
    %1824 = vmatpush1.msra.mxu0 0.0
    %1825 = vmatprep.subr.mxu0 0.0
    %1826 = vmatpush1.msra.mxu0 0.0
    %1827 = vmatprep.subr.mxu0 0.0
    %1828 = vmatpush1.msra.mxu0 0.0
    %1829 = vmatprep.subr.mxu0 0.0
    %1830 = vmatpush1.msra.mxu0 0.0
    %1831 = vmatprep.subr.mxu0 0.0
    %1832 = vmatpush1.msra.mxu0 0.0
    %1833 = vmatprep.subr.mxu0 0.0
    %1834 = vmatpush1.msra.mxu0 0.0
    %1835 = vmatprep.subr.mxu0 0.0
    %1836 = vmatpush1.msra.mxu0 0.0
    %1837 = vmatprep.subr.mxu0 0.0
    %1838 = vmatpush1.msra.mxu0 0.0
    %1839 = vmatprep.subr.mxu0 0.0
    %1840 = vmatpush1.msra.mxu0 0.0
    %1841 = vmatprep.mubr.f32.mxu0 0.0
    %1842 = vmatmul.mubr.f32.gmra.mrb[0].mxu0 %v1772
    %v1843 = vpop.f32.mrb[0].mxu0
    %v1844 = vadd.f32 %v1769, %v1843
    %v1845 = vpop.f32.mrb[0].mxu0
    %1846 = vmatprep.mubr.f32.mxu0 0.0
    %1847 = vmatmul.mubr.f32.gmra.mrb[0].mxu0 %v1775
    %v1848 = vpop.f32.mrb[0].mxu0
    %v1849 = vadd.f32 %v1769, %v1848
    %v1850 = vpop.f32.mrb[0].mxu0
    %1851 = vdwg.mxu0
    %v1852 = vadd.f32 %v274, %v1844
    %v1853 = vadd.f32 %v275, %v1849
    %v1854 = vsel %vm276, %v1852, 0.0
    %1855 = vadd.xlane.f32.xlu0 %v1854
    %v1856 = vpop.xlane.xlu0 %1855
    %v1857 = vsel %vm276, %v1853, 0.0
    %1858 = vadd.xlane.f32.xlu0 %v1857
    %v1859 = vpop.xlane.xlu0 %1858
    %v1860 = vmul.f32 %v1856, %v283
    %v1861 = vmul.f32 %v1859, %v283
    %v1862 = vsub.f32 %v1852, %v1860
    %v1863 = vsub.f32 %v1853, %v1861
    %v1864 = vmul.f32 %v1862, %v1862
    %v1865 = vmul.f32 %v1863, %v1863
    %v1866 = vsel %vm276, %v1864, 0.0
    %1867 = vadd.xlane.f32.xlu0 %v1866
    %v1868 = vpop.xlane.xlu0 %1867
    %v1869 = vsel %vm276, %v1865, 0.0
    %1870 = vadd.xlane.f32.xlu0 %v1869
    %v1871 = vpop.xlane.xlu0 %1870
    %v1872 = vmul.f32 %v1868, %v283
    %v1873 = vmul.f32 %v1871, %v283
    %v1874 = vadd.f32 %v1872, 1e-05
    %v1875 = vadd.f32 %v1873, 1e-05
    %v1876 = vrsqrt.pop %v1874
    %v1877 = vrsqrt.pop %v1875
    %v1878 = vmul.f32 %v1862, %v1876
    %v1879 = vmul.f32 %v1863, %v1877
    %v1881 = vlaneseq
    %v1882 = vshrl.u32 %v1881, 7
    %v1883 = vsub.s32 0, %v1882
    %v1884 = vrot.slane %v250, %v1883
    %v1886 = vmul.f32 %v1878, %v1884
    %v1887 = vmul.f32 %v1879, %v1884
    %v1889 = vlaneseq
    %v1890 = vshrl.u32 %v1889, 7
    %v1891 = vsub.s32 0, %v1890
    %v1892 = vrot.slane %v251, %v1891
    %v1894 = vadd.f32 %v1886, %v1892
    %v1895 = vadd.f32 %v1887, %v1892
    %v1897 = vlaneseq
    %v1898 = vshrl.u32 %v1897, 7
    %v1899 = vsub.s32 0, %v1898
    %v1900 = vrot.slane %v256, %v1899
    %v1903 = vsel %vm276, %v1894, 0
    %v1906 = vsel %vm276, %v1895, 0
    %1908 = vmatprep.subr.mxu0 0.0
    %1909 = vmatpush1.msra.mxu0 %v252
    %1910 = vmatprep.subr.mxu0 0.0
    %1911 = vmatpush1.msra.mxu0 %v253
    %1912 = vmatprep.subr.mxu0 0.0
    %1913 = vmatpush1.msra.mxu0 %v254
    %1914 = vmatprep.subr.mxu0 0.0
    %1915 = vmatpush1.msra.mxu0 %v255
    %1916 = vmatprep.subr.mxu0 0.0
    %1917 = vmatpush1.msra.mxu0 0.0
    %1918 = vmatprep.subr.mxu0 0.0
    %1919 = vmatpush1.msra.mxu0 0.0
    %1920 = vmatprep.subr.mxu0 0.0
    %1921 = vmatpush1.msra.mxu0 0.0
    %1922 = vmatprep.subr.mxu0 0.0
    %1923 = vmatpush1.msra.mxu0 0.0
    %1924 = vmatprep.subr.mxu0 0.0
    %1925 = vmatpush1.msra.mxu0 0.0
    %1926 = vmatprep.subr.mxu0 0.0
    %1927 = vmatpush1.msra.mxu0 0.0
    %1928 = vmatprep.subr.mxu0 0.0
    %1929 = vmatpush1.msra.mxu0 0.0
    %1930 = vmatprep.subr.mxu0 0.0
    %1931 = vmatpush1.msra.mxu0 0.0
    %1932 = vmatprep.subr.mxu0 0.0
    %1933 = vmatpush1.msra.mxu0 0.0
    %1934 = vmatprep.subr.mxu0 0.0
    %1935 = vmatpush1.msra.mxu0 0.0
    %1936 = vmatprep.subr.mxu0 0.0
    %1937 = vmatpush1.msra.mxu0 0.0
    %1938 = vmatprep.subr.mxu0 0.0
    %1939 = vmatpush1.msra.mxu0 0.0
    %1940 = vmatprep.subr.mxu0 0.0
    %1941 = vmatpush1.msra.mxu0 0.0
    %1942 = vmatprep.subr.mxu0 0.0
    %1943 = vmatpush1.msra.mxu0 0.0
    %1944 = vmatprep.subr.mxu0 0.0
    %1945 = vmatpush1.msra.mxu0 0.0
    %1946 = vmatprep.subr.mxu0 0.0
    %1947 = vmatpush1.msra.mxu0 0.0
    %1948 = vmatprep.subr.mxu0 0.0
    %1949 = vmatpush1.msra.mxu0 0.0
    %1950 = vmatprep.subr.mxu0 0.0
    %1951 = vmatpush1.msra.mxu0 0.0
    %1952 = vmatprep.subr.mxu0 0.0
    %1953 = vmatpush1.msra.mxu0 0.0
    %1954 = vmatprep.subr.mxu0 0.0
    %1955 = vmatpush1.msra.mxu0 0.0
    %1956 = vmatprep.subr.mxu0 0.0
    %1957 = vmatpush1.msra.mxu0 0.0
    %1958 = vmatprep.subr.mxu0 0.0
    %1959 = vmatpush1.msra.mxu0 0.0
    %1960 = vmatprep.subr.mxu0 0.0
    %1961 = vmatpush1.msra.mxu0 0.0
    %1962 = vmatprep.subr.mxu0 0.0
    %1963 = vmatpush1.msra.mxu0 0.0
    %1964 = vmatprep.subr.mxu0 0.0
    %1965 = vmatpush1.msra.mxu0 0.0
    %1966 = vmatprep.subr.mxu0 0.0
    %1967 = vmatpush1.msra.mxu0 0.0
    %1968 = vmatprep.subr.mxu0 0.0
    %1969 = vmatpush1.msra.mxu0 0.0
    %1970 = vmatprep.subr.mxu0 0.0
    %1971 = vmatpush1.msra.mxu0 0.0
    %1972 = vmatprep.mubr.f32.mxu0 0.0
    %1973 = vmatmul.mubr.f32.gmra.mrb[0].mxu0 %v1903
    %v1974 = vpop.f32.mrb[0].mxu0
    %v1975 = vadd.f32 %v1900, %v1974
    %v1976 = vpop.f32.mrb[0].mxu0
    %1977 = vmatprep.mubr.f32.mxu0 0.0
    %1978 = vmatmul.mubr.f32.gmra.mrb[0].mxu0 %v1906
    %v1979 = vpop.f32.mrb[0].mxu0
    %v1980 = vadd.f32 %v1900, %v1979
    %v1981 = vpop.f32.mrb[0].mxu0
    %1982 = vdwg.mxu0
    %v1983 = vmax.f32 %v1975, 0.0
    %v1984 = vmax.f32 %v1980, 0.0
    %v1986 = vlaneseq
    %v1987 = vshrl.u32 %v1986, 7
    %v1988 = vsub.s32 0, %v1987
    %v1989 = vrot.slane %v273, %v1988
    %1991 = vmatprep.subr.mxu0 0.0
    %1992 = vmatpush1.msra.mxu0 %v257
    %1993 = vmatprep.subr.mxu0 0.0
    %1994 = vmatpush1.msra.mxu0 %v258
    %1995 = vmatprep.subr.mxu0 0.0
    %1996 = vmatpush1.msra.mxu0 %v259
    %1997 = vmatprep.subr.mxu0 0.0
    %1998 = vmatpush1.msra.mxu0 %v260
    %1999 = vmatprep.subr.mxu0 0.0
    %2000 = vmatpush1.msra.mxu0 %v261
    %2001 = vmatprep.subr.mxu0 0.0
    %2002 = vmatpush1.msra.mxu0 %v262
    %2003 = vmatprep.subr.mxu0 0.0
    %2004 = vmatpush1.msra.mxu0 %v263
    %2005 = vmatprep.subr.mxu0 0.0
    %2006 = vmatpush1.msra.mxu0 %v264
    %2007 = vmatprep.subr.mxu0 0.0
    %2008 = vmatpush1.msra.mxu0 %v265
    %2009 = vmatprep.subr.mxu0 0.0
    %2010 = vmatpush1.msra.mxu0 %v266
    %2011 = vmatprep.subr.mxu0 0.0
    %2012 = vmatpush1.msra.mxu0 %v267
    %2013 = vmatprep.subr.mxu0 0.0
    %2014 = vmatpush1.msra.mxu0 %v268
    %2015 = vmatprep.subr.mxu0 0.0
    %2016 = vmatpush1.msra.mxu0 %v269
    %2017 = vmatprep.subr.mxu0 0.0
    %2018 = vmatpush1.msra.mxu0 %v270
    %2019 = vmatprep.subr.mxu0 0.0
    %2020 = vmatpush1.msra.mxu0 %v271
    %2021 = vmatprep.subr.mxu0 0.0
    %2022 = vmatpush1.msra.mxu0 %v272
    %2023 = vmatprep.subr.mxu0 0.0
    %2024 = vmatpush1.msra.mxu0 0.0
    %2025 = vmatprep.subr.mxu0 0.0
    %2026 = vmatpush1.msra.mxu0 0.0
    %2027 = vmatprep.subr.mxu0 0.0
    %2028 = vmatpush1.msra.mxu0 0.0
    %2029 = vmatprep.subr.mxu0 0.0
    %2030 = vmatpush1.msra.mxu0 0.0
    %2031 = vmatprep.subr.mxu0 0.0
    %2032 = vmatpush1.msra.mxu0 0.0
    %2033 = vmatprep.subr.mxu0 0.0
    %2034 = vmatpush1.msra.mxu0 0.0
    %2035 = vmatprep.subr.mxu0 0.0
    %2036 = vmatpush1.msra.mxu0 0.0
    %2037 = vmatprep.subr.mxu0 0.0
    %2038 = vmatpush1.msra.mxu0 0.0
    %2039 = vmatprep.subr.mxu0 0.0
    %2040 = vmatpush1.msra.mxu0 0.0
    %2041 = vmatprep.subr.mxu0 0.0
    %2042 = vmatpush1.msra.mxu0 0.0
    %2043 = vmatprep.subr.mxu0 0.0
    %2044 = vmatpush1.msra.mxu0 0.0
    %2045 = vmatprep.subr.mxu0 0.0
    %2046 = vmatpush1.msra.mxu0 0.0
    %2047 = vmatprep.subr.mxu0 0.0
    %2048 = vmatpush1.msra.mxu0 0.0
    %2049 = vmatprep.subr.mxu0 0.0
    %2050 = vmatpush1.msra.mxu0 0.0
    %2051 = vmatprep.subr.mxu0 0.0
    %2052 = vmatpush1.msra.mxu0 0.0
    %2053 = vmatprep.subr.mxu0 0.0
    %2054 = vmatpush1.msra.mxu0 0.0
    %2055 = vmatprep.mubr.f32.mxu0 0.0
    %2056 = vmatmul.mubr.f32.gmra.mrb[0].mxu0 %v1983
    %v2057 = vpop.f32.mrb[0].mxu0
    %v2058 = vadd.f32 %v1989, %v2057
    %v2059 = vpop.f32.mrb[0].mxu0
    %2060 = vmatprep.mubr.f32.mxu0 0.0
    %2061 = vmatmul.mubr.f32.gmra.mrb[0].mxu0 %v1984
    %v2062 = vpop.f32.mrb[0].mxu0
    %v2063 = vadd.f32 %v1989, %v2062
    %v2064 = vpop.f32.mrb[0].mxu0
    %2065 = vdwg.mxu0
    %v2066 = vadd.f32 %v1852, %v2058
    %v2067 = vadd.f32 %v1853, %v2063
    %v2068 = vadd.f32 %v2066, %v145
    %v2069 = vadd.f32 %v2067, %v146
    %v2070 = vld [vmem:[%s33] sm:$0xff]
    %v2071 = vld [vmem:[%s33 + $0x8] sm:$0xff]
    %v2072 = vld [vmem:[%s33 + $0x10] sm:$0xff]
    %v2073 = vld [vmem:[%s33 + $0x18] sm:$0xff]
    %v2074 = vld [vmem:[%s35] sm:$0x1]
    %v2076 = vlaneseq
    %v2077 = vshrl.u32 %v2076, 7
    %v2078 = vsub.s32 0, %v2077
    %v2079 = vrot.slane %v2074, %v2078
    %v2082 = vsel %vm276, %v2068, 0
    %v2085 = vsel %vm276, %v2069, 0
    %2087 = vmatprep.subr.mxu0 0.0
    %2088 = vmatpush1.msra.mxu0 %v2070
    %2089 = vmatprep.subr.mxu0 0.0
    %2090 = vmatpush1.msra.mxu0 %v2071
    %2091 = vmatprep.subr.mxu0 0.0
    %2092 = vmatpush1.msra.mxu0 %v2072
    %2093 = vmatprep.subr.mxu0 0.0
    %2094 = vmatpush1.msra.mxu0 %v2073
    %2095 = vmatprep.subr.mxu0 0.0
    %2096 = vmatpush1.msra.mxu0 0.0
    %2097 = vmatprep.subr.mxu0 0.0
    %2098 = vmatpush1.msra.mxu0 0.0
    %2099 = vmatprep.subr.mxu0 0.0
    %2100 = vmatpush1.msra.mxu0 0.0
    %2101 = vmatprep.subr.mxu0 0.0
    %2102 = vmatpush1.msra.mxu0 0.0
    %2103 = vmatprep.subr.mxu0 0.0
    %2104 = vmatpush1.msra.mxu0 0.0
    %2105 = vmatprep.subr.mxu0 0.0
    %2106 = vmatpush1.msra.mxu0 0.0
    %2107 = vmatprep.subr.mxu0 0.0
    %2108 = vmatpush1.msra.mxu0 0.0
    %2109 = vmatprep.subr.mxu0 0.0
    %2110 = vmatpush1.msra.mxu0 0.0
    %2111 = vmatprep.subr.mxu0 0.0
    %2112 = vmatpush1.msra.mxu0 0.0
    %2113 = vmatprep.subr.mxu0 0.0
    %2114 = vmatpush1.msra.mxu0 0.0
    %2115 = vmatprep.subr.mxu0 0.0
    %2116 = vmatpush1.msra.mxu0 0.0
    %2117 = vmatprep.subr.mxu0 0.0
    %2118 = vmatpush1.msra.mxu0 0.0
    %2119 = vmatprep.subr.mxu0 0.0
    %2120 = vmatpush1.msra.mxu0 0.0
    %2121 = vmatprep.subr.mxu0 0.0
    %2122 = vmatpush1.msra.mxu0 0.0
    %2123 = vmatprep.subr.mxu0 0.0
    %2124 = vmatpush1.msra.mxu0 0.0
    %2125 = vmatprep.subr.mxu0 0.0
    %2126 = vmatpush1.msra.mxu0 0.0
    %2127 = vmatprep.subr.mxu0 0.0
    %2128 = vmatpush1.msra.mxu0 0.0
    %2129 = vmatprep.subr.mxu0 0.0
    %2130 = vmatpush1.msra.mxu0 0.0
    %2131 = vmatprep.subr.mxu0 0.0
    %2132 = vmatpush1.msra.mxu0 0.0
    %2133 = vmatprep.subr.mxu0 0.0
    %2134 = vmatpush1.msra.mxu0 0.0
    %2135 = vmatprep.subr.mxu0 0.0
    %2136 = vmatpush1.msra.mxu0 0.0
    %2137 = vmatprep.subr.mxu0 0.0
    %2138 = vmatpush1.msra.mxu0 0.0
    %2139 = vmatprep.subr.mxu0 0.0
    %2140 = vmatpush1.msra.mxu0 0.0
    %2141 = vmatprep.subr.mxu0 0.0
    %2142 = vmatpush1.msra.mxu0 0.0
    %2143 = vmatprep.subr.mxu0 0.0
    %2144 = vmatpush1.msra.mxu0 0.0
    %2145 = vmatprep.subr.mxu0 0.0
    %2146 = vmatpush1.msra.mxu0 0.0
    %2147 = vmatprep.subr.mxu0 0.0
    %2148 = vmatpush1.msra.mxu0 0.0
    %2149 = vmatprep.subr.mxu0 0.0
    %2150 = vmatpush1.msra.mxu0 0.0
    %2151 = vmatprep.mubr.f32.mxu0 0.0
    %2152 = vmatmul.mubr.f32.gmra.mrb[0].mxu0 %v2082
    %v2153 = vpop.f32.mrb[0].mxu0
    %v2154 = vadd.f32 %v2079, %v2153
    %v2155 = vpop.f32.mrb[0].mxu0
    %2156 = vmatprep.mubr.f32.mxu0 0.0
    %2157 = vmatmul.mubr.f32.gmra.mrb[0].mxu0 %v2085
    %v2158 = vpop.f32.mrb[0].mxu0
    %v2159 = vadd.f32 %v2079, %v2158
    %v2160 = vpop.f32.mrb[0].mxu0
    %2161 = vdwg.mxu0
    %v2162 = vld [vmem:[%s37] sm:$0x3]
    %v2164 = vrot.slane %v2154, 6
    %v2167 = vrot.slane %v2162, 6
    %v2170 = vrot.slane %v2159, 4
    %vm2172 = vcmask 1041408
    %v2173 = vsel %vm2172, %v2162, %v2164
    %v2174 = vsel %vm2172, %v2164, %v2167
    %vm2175 = vcmask 1043456
    %v2176 = vsel %vm2175, %v2174, %v2170
    %v2177 = vld [vmem:[%s39] sm:$0xff]
    %v2178 = vld [vmem:[%s39 + $0x8] sm:$0xff]
    %v2179 = vld [vmem:[%s39 + $0x10] sm:$0xff]
    %v2180 = vld [vmem:[%s39 + $0x18] sm:$0xff]
    %v2181 = vld [vmem:[%s41] sm:$0x1]
    %v2182 = vld [vmem:[%s43] sm:$0xff]
    %v2183 = vld [vmem:[%s43 + $0x8] sm:$0xff]
    %v2184 = vld [vmem:[%s43 + $0x10] sm:$0xff]
    %v2185 = vld [vmem:[%s43 + $0x18] sm:$0xff]
    %v2186 = vld [vmem:[%s45] sm:$0x1]
    %v2187 = vld [vmem:[%s47] sm:$0x1]
    %v2188 = vld [vmem:[%s49] sm:$0x1]
    %v2189 = vld [vmem:[%s51] sm:$0x1]
    %v2190 = vld [vmem:[%s53] sm:$0x1]
    %v2191 = vld [vmem:[%s55] sm:$0xff]
    %v2192 = vld [vmem:[%s55 + $0x8] sm:$0xff]
    %v2193 = vld [vmem:[%s55 + $0x10] sm:$0xff]
    %v2194 = vld [vmem:[%s55 + $0x18] sm:$0xff]
    %v2195 = vld [vmem:[%s57] sm:$0x1]
    %v2196 = vld [vmem:[%s59] sm:$0xff]
    %v2197 = vld [vmem:[%s59 + $0x8] sm:$0xff]
    %v2198 = vld [vmem:[%s59 + $0x10] sm:$0xff]
    %v2199 = vld [vmem:[%s59 + $0x18] sm:$0xff]
    %v2200 = vld [vmem:[%s59 + $0x20] sm:$0xff]
    %v2201 = vld [vmem:[%s59 + $0x28] sm:$0xff]
    %v2202 = vld [vmem:[%s59 + $0x30] sm:$0xff]
    %v2203 = vld [vmem:[%s59 + $0x38] sm:$0xff]
    %v2204 = vld [vmem:[%s59 + $0x40] sm:$0xff]
    %v2205 = vld [vmem:[%s59 + $0x48] sm:$0xff]
    %v2206 = vld [vmem:[%s59 + $0x50] sm:$0xff]
    %v2207 = vld [vmem:[%s59 + $0x58] sm:$0xff]
    %v2208 = vld [vmem:[%s59 + $0x60] sm:$0xff]
    %v2209 = vld [vmem:[%s59 + $0x68] sm:$0xff]
    %v2210 = vld [vmem:[%s59 + $0x70] sm:$0xff]
    %v2211 = vld [vmem:[%s59 + $0x78] sm:$0xff]
    %v2212 = vld [vmem:[%s61] sm:$0x1]
    %v2213 = vsel %vm276, %v2173, 0.0
    %2214 = vadd.xlane.f32.xlu0 %v2213
    %v2215 = vpop.xlane.xlu0 %2214
    %v2216 = vsel %vm276, %v2176, 0.0
    %2217 = vadd.xlane.f32.xlu0 %v2216
    %v2218 = vpop.xlane.xlu0 %2217
    %vm2219 = vcmask 257024
    %v2220 = vsel %vm2219, %v2170, 0.0
    %2221 = vadd.xlane.f32.xlu0 %v2220
    %v2222 = vpop.xlane.xlu0 %2221
    %v2223 = vmul.f32 %v2215, %v283
    %v2224 = vmul.f32 %v2218, %v283
    %v2225 = vmul.f32 %v2222, %v283
    %v2226 = vsub.f32 %v2173, %v2223
    %v2227 = vsub.f32 %v2176, %v2224
    %v2228 = vsub.f32 %v2170, %v2225
    %v2229 = vmul.f32 %v2226, %v2226
    %v2230 = vmul.f32 %v2227, %v2227
    %v2231 = vmul.f32 %v2228, %v2228
    %v2232 = vsel %vm276, %v2229, 0.0
    %2233 = vadd.xlane.f32.xlu0 %v2232
    %v2234 = vpop.xlane.xlu0 %2233
    %v2235 = vsel %vm276, %v2230, 0.0
    %2236 = vadd.xlane.f32.xlu0 %v2235
    %v2237 = vpop.xlane.xlu0 %2236
    %v2238 = vsel %vm2219, %v2231, 0.0
    %2239 = vadd.xlane.f32.xlu0 %v2238
    %v2240 = vpop.xlane.xlu0 %2239
    %v2241 = vmul.f32 %v2234, %v283
    %v2242 = vmul.f32 %v2237, %v283
    %v2243 = vmul.f32 %v2240, %v283
    %v2244 = vadd.f32 %v2241, 1e-05
    %v2245 = vadd.f32 %v2242, 1e-05
    %v2246 = vadd.f32 %v2243, 1e-05
    %v2247 = vrsqrt.pop %v2244
    %v2248 = vrsqrt.pop %v2245
    %v2249 = vrsqrt.pop %v2246
    %v2250 = vmul.f32 %v2226, %v2247
    %v2251 = vmul.f32 %v2227, %v2248
    %v2252 = vmul.f32 %v2228, %v2249
    %v2254 = vlaneseq
    %v2255 = vshrl.u32 %v2254, 7
    %v2256 = vsub.s32 0, %v2255
    %v2257 = vrot.slane %v2187, %v2256
    %v2259 = vmul.f32 %v2250, %v2257
    %v2260 = vmul.f32 %v2251, %v2257
    %v2261 = vmul.f32 %v2252, %v2257
    %v2263 = vlaneseq
    %v2264 = vshrl.u32 %v2263, 7
    %v2265 = vsub.s32 0, %v2264
    %v2266 = vrot.slane %v2188, %v2265
    %v2268 = vadd.f32 %v2259, %v2266
    %v2269 = vadd.f32 %v2260, %v2266
    %v2270 = vadd.f32 %v2261, %v2266
    %v2272 = vlaneseq
    %v2273 = vshrl.u32 %v2272, 7
    %v2274 = vsub.s32 0, %v2273
    %v2275 = vrot.slane %v2181, %v2274
    %v2278 = vsel %vm276, %v2268, 0
    %v2281 = vsel %vm276, %v2269, 0
    %v2284 = vsel %vm276, %v2270, 0
    %2286 = vmatprep.subr.mxu0 0.0
    %2287 = vmatpush1.msra.mxu0 %v2177
    %2288 = vmatprep.subr.mxu0 0.0
    %2289 = vmatpush1.msra.mxu0 %v2178
    %2290 = vmatprep.subr.mxu0 0.0
    %2291 = vmatpush1.msra.mxu0 %v2179
    %2292 = vmatprep.subr.mxu0 0.0
    %2293 = vmatpush1.msra.mxu0 %v2180
    %2294 = vmatprep.subr.mxu0 0.0
    %2295 = vmatpush1.msra.mxu0 0.0
    %2296 = vmatprep.subr.mxu0 0.0
    %2297 = vmatpush1.msra.mxu0 0.0
    %2298 = vmatprep.subr.mxu0 0.0
    %2299 = vmatpush1.msra.mxu0 0.0
    %2300 = vmatprep.subr.mxu0 0.0
    %2301 = vmatpush1.msra.mxu0 0.0
    %2302 = vmatprep.subr.mxu0 0.0
    %2303 = vmatpush1.msra.mxu0 0.0
    %2304 = vmatprep.subr.mxu0 0.0
    %2305 = vmatpush1.msra.mxu0 0.0
    %2306 = vmatprep.subr.mxu0 0.0
    %2307 = vmatpush1.msra.mxu0 0.0
    %2308 = vmatprep.subr.mxu0 0.0
    %2309 = vmatpush1.msra.mxu0 0.0
    %2310 = vmatprep.subr.mxu0 0.0
    %2311 = vmatpush1.msra.mxu0 0.0
    %2312 = vmatprep.subr.mxu0 0.0
    %2313 = vmatpush1.msra.mxu0 0.0
    %2314 = vmatprep.subr.mxu0 0.0
    %2315 = vmatpush1.msra.mxu0 0.0
    %2316 = vmatprep.subr.mxu0 0.0
    %2317 = vmatpush1.msra.mxu0 0.0
    %2318 = vmatprep.subr.mxu0 0.0
    %2319 = vmatpush1.msra.mxu0 0.0
    %2320 = vmatprep.subr.mxu0 0.0
    %2321 = vmatpush1.msra.mxu0 0.0
    %2322 = vmatprep.subr.mxu0 0.0
    %2323 = vmatpush1.msra.mxu0 0.0
    %2324 = vmatprep.subr.mxu0 0.0
    %2325 = vmatpush1.msra.mxu0 0.0
    %2326 = vmatprep.subr.mxu0 0.0
    %2327 = vmatpush1.msra.mxu0 0.0
    %2328 = vmatprep.subr.mxu0 0.0
    %2329 = vmatpush1.msra.mxu0 0.0
    %2330 = vmatprep.subr.mxu0 0.0
    %2331 = vmatpush1.msra.mxu0 0.0
    %2332 = vmatprep.subr.mxu0 0.0
    %2333 = vmatpush1.msra.mxu0 0.0
    %2334 = vmatprep.subr.mxu0 0.0
    %2335 = vmatpush1.msra.mxu0 0.0
    %2336 = vmatprep.subr.mxu0 0.0
    %2337 = vmatpush1.msra.mxu0 0.0
    %2338 = vmatprep.subr.mxu0 0.0
    %2339 = vmatpush1.msra.mxu0 0.0
    %2340 = vmatprep.subr.mxu0 0.0
    %2341 = vmatpush1.msra.mxu0 0.0
    %2342 = vmatprep.subr.mxu0 0.0
    %2343 = vmatpush1.msra.mxu0 0.0
    %2344 = vmatprep.subr.mxu0 0.0
    %2345 = vmatpush1.msra.mxu0 0.0
    %2346 = vmatprep.subr.mxu0 0.0
    %2347 = vmatpush1.msra.mxu0 0.0
    %2348 = vmatprep.subr.mxu0 0.0
    %2349 = vmatpush1.msra.mxu0 0.0
    %2350 = vmatprep.mubr.f32.mxu0 0.0
    %2351 = vmatmul.mubr.f32.gmra.mrb[0].mxu0 %v2278
    %v2352 = vpop.f32.mrb[0].mxu0
    %v2353 = vadd.f32 %v2275, %v2352
    %v2354 = vpop.f32.mrb[0].mxu0
    %2355 = vmatprep.mubr.f32.mxu0 0.0
    %2356 = vmatmul.mubr.f32.gmra.mrb[0].mxu0 %v2281
    %v2357 = vpop.f32.mrb[0].mxu0
    %v2358 = vadd.f32 %v2275, %v2357
    %v2359 = vpop.f32.mrb[0].mxu0
    %2360 = vmatprep.mubr.f32.mxu0 0.0
    %2361 = vmatmul.mubr.f32.gmra.mrb[0].mxu0 %v2284
    %v2362 = vpop.f32.mrb[0].mxu0
    %v2363 = vadd.f32 %v2275, %v2362
    %v2364 = vpop.f32.mrb[0].mxu0
    %2365 = vdwg.mxu0
    %2368 = vrot.lane.b32.xlu0 %v2353, 120
    %v2369 = vpop.permute.xlu0 %2368
    %2370 = vrot.lane.b32.xlu0 %v2358, 120
    %v2371 = vpop.permute.xlu0 %2370
    %2372 = vrot.lane.b32.xlu0 %v2353, 112
    %v2373 = vpop.permute.xlu0 %2372
    %2374 = vrot.lane.b32.xlu0 %v2358, 112
    %v2375 = vpop.permute.xlu0 %2374
    %2376 = vrot.lane.b32.xlu0 %v2353, 104
    %v2377 = vpop.permute.xlu0 %2376
    %2378 = vrot.lane.b32.xlu0 %v2358, 104
    %v2379 = vpop.permute.xlu0 %2378
    %vm2381 = vcmask 1045504
    %v2382 = vrot.slane %v2358, 2
    %v2383 = vrot.slane %v2363, 2
    %v2384 = vsel %vm2381, %v2382, %v2383
    %2385 = vrot.lane.b32.xlu0 %v2384, 120
    %v2386 = vpop.permute.xlu0 %2385
    %2387 = vrot.lane.b32.xlu0 %v2383, 120
    %v2388 = vpop.permute.xlu0 %2387
    %2389 = vrot.lane.b32.xlu0 %v2384, 112
    %v2390 = vpop.permute.xlu0 %2389
    %2391 = vrot.lane.b32.xlu0 %v2383, 112
    %v2392 = vpop.permute.xlu0 %2391
    %2393 = vrot.lane.b32.xlu0 %v2384, 104
    %v2394 = vpop.permute.xlu0 %2393
    %2395 = vrot.lane.b32.xlu0 %v2383, 104
    %v2396 = vpop.permute.xlu0 %2395
    %2397 = vrot.lane.b32.xlu0 %v2353, 96
    %v2398 = vpop.permute.xlu0 %2397
    %2399 = vrot.lane.b32.xlu0 %v2358, 96
    %v2400 = vpop.permute.xlu0 %2399
    %v2401 = vsel %vm423, %v2353, 0
    %v2403 = vsel %vm423, %v2358, 0
    %v2405 = vsel %vm423, %v2398, 0
    %v2407 = vsel %vm423, %v2400, 0
    %2409 = vmatprep.subr.mxu0 0.0
    %2410 = vmatpush1.xpose.msra.mxu0 %v2405
    %2411 = vmatprep.subr.mxu0 0.0
    %2412 = vmatpush1.xpose.msra.mxu0 %v2407
    %2413 = vmatprep.subr.mxu0 0.0
    %2414 = vmatpush1.xpose.msra.mxu0 0.0
    %2415 = vmatprep.subr.mxu0 0.0
    %2416 = vmatpush1.xpose.msra.mxu0 0.0
    %2417 = vmatprep.subr.mxu0 0.0
    %2418 = vmatpush1.xpose.msra.mxu0 0.0
    %2419 = vmatprep.subr.mxu0 0.0
    %2420 = vmatpush1.xpose.msra.mxu0 0.0
    %2421 = vmatprep.subr.mxu0 0.0
    %2422 = vmatpush1.xpose.msra.mxu0 0.0
    %2423 = vmatprep.subr.mxu0 0.0
    %2424 = vmatpush1.xpose.msra.mxu0 0.0
    %2425 = vmatprep.subr.mxu0 0.0
    %2426 = vmatpush1.xpose.msra.mxu0 0.0
    %2427 = vmatprep.subr.mxu0 0.0
    %2428 = vmatpush1.xpose.msra.mxu0 0.0
    %2429 = vmatprep.subr.mxu0 0.0
    %2430 = vmatpush1.xpose.msra.mxu0 0.0
    %2431 = vmatprep.subr.mxu0 0.0
    %2432 = vmatpush1.xpose.msra.mxu0 0.0
    %2433 = vmatprep.subr.mxu0 0.0
    %2434 = vmatpush1.xpose.msra.mxu0 0.0
    %2435 = vmatprep.subr.mxu0 0.0
    %2436 = vmatpush1.xpose.msra.mxu0 0.0
    %2437 = vmatprep.subr.mxu0 0.0
    %2438 = vmatpush1.xpose.msra.mxu0 0.0
    %2439 = vmatprep.subr.mxu0 0.0
    %2440 = vmatpush1.xpose.msra.mxu0 0.0
    %2441 = vmatprep.subr.mxu0 0.0
    %2442 = vmatpush1.xpose.msra.mxu0 0.0
    %2443 = vmatprep.subr.mxu0 0.0
    %2444 = vmatpush1.xpose.msra.mxu0 0.0
    %2445 = vmatprep.subr.mxu0 0.0
    %2446 = vmatpush1.xpose.msra.mxu0 0.0
    %2447 = vmatprep.subr.mxu0 0.0
    %2448 = vmatpush1.xpose.msra.mxu0 0.0
    %2449 = vmatprep.subr.mxu0 0.0
    %2450 = vmatpush1.xpose.msra.mxu0 0.0
    %2451 = vmatprep.subr.mxu0 0.0
    %2452 = vmatpush1.xpose.msra.mxu0 0.0
    %2453 = vmatprep.subr.mxu0 0.0
    %2454 = vmatpush1.xpose.msra.mxu0 0.0
    %2455 = vmatprep.subr.mxu0 0.0
    %2456 = vmatpush1.xpose.msra.mxu0 0.0
    %2457 = vmatprep.subr.mxu0 0.0
    %2458 = vmatpush1.xpose.msra.mxu0 0.0
    %2459 = vmatprep.subr.mxu0 0.0
    %2460 = vmatpush1.xpose.msra.mxu0 0.0
    %2461 = vmatprep.subr.mxu0 0.0
    %2462 = vmatpush1.xpose.msra.mxu0 0.0
    %2463 = vmatprep.subr.mxu0 0.0
    %2464 = vmatpush1.xpose.msra.mxu0 0.0
    %2465 = vmatprep.subr.mxu0 0.0
    %2466 = vmatpush1.xpose.msra.mxu0 0.0
    %2467 = vmatprep.subr.mxu0 0.0
    %2468 = vmatpush1.xpose.msra.mxu0 0.0
    %2469 = vmatprep.subr.mxu0 0.0
    %2470 = vmatpush1.xpose.msra.mxu0 0.0
    %2471 = vmatprep.subr.mxu0 0.0
    %2472 = vmatpush1.xpose.msra.mxu0 0.0
    %2473 = vmatprep.mubr.f32.mxu0 0.0
    %2474 = vmatmul.mubr.f32.gmra.mrb[0].mxu0 %v2401
    %v2475 = vpop.f32.mrb[0].mxu0
    %v2476 = vadd.f32 0.0, %v2475
    %v2477 = vpop.f32.mrb[0].mxu0
    %2478 = vmatprep.mubr.f32.mxu0 0.0
    %2479 = vmatmul.mubr.f32.gmra.mrb[0].mxu0 %v2403
    %v2480 = vpop.f32.mrb[0].mxu0
    %v2481 = vadd.f32 0.0, %v2480
    %v2482 = vpop.f32.mrb[0].mxu0
    %2483 = vdwg.mxu0
    %2484 = vrot.lane.b32.xlu0 %v2369, 96
    %v2485 = vpop.permute.xlu0 %2484
    %2486 = vrot.lane.b32.xlu0 %v2371, 96
    %v2487 = vpop.permute.xlu0 %2486
    %v2488 = vsel %vm423, %v2369, 0
    %v2490 = vsel %vm423, %v2371, 0
    %v2492 = vsel %vm423, %v2485, 0
    %v2494 = vsel %vm423, %v2487, 0
    %2496 = vmatprep.subr.mxu0 0.0
    %2497 = vmatpush1.xpose.msra.mxu0 %v2492
    %2498 = vmatprep.subr.mxu0 0.0
    %2499 = vmatpush1.xpose.msra.mxu0 %v2494
    %2500 = vmatprep.subr.mxu0 0.0
    %2501 = vmatpush1.xpose.msra.mxu0 0.0
    %2502 = vmatprep.subr.mxu0 0.0
    %2503 = vmatpush1.xpose.msra.mxu0 0.0
    %2504 = vmatprep.subr.mxu0 0.0
    %2505 = vmatpush1.xpose.msra.mxu0 0.0
    %2506 = vmatprep.subr.mxu0 0.0
    %2507 = vmatpush1.xpose.msra.mxu0 0.0
    %2508 = vmatprep.subr.mxu0 0.0
    %2509 = vmatpush1.xpose.msra.mxu0 0.0
    %2510 = vmatprep.subr.mxu0 0.0
    %2511 = vmatpush1.xpose.msra.mxu0 0.0
    %2512 = vmatprep.subr.mxu0 0.0
    %2513 = vmatpush1.xpose.msra.mxu0 0.0
    %2514 = vmatprep.subr.mxu0 0.0
    %2515 = vmatpush1.xpose.msra.mxu0 0.0
    %2516 = vmatprep.subr.mxu0 0.0
    %2517 = vmatpush1.xpose.msra.mxu0 0.0
    %2518 = vmatprep.subr.mxu0 0.0
    %2519 = vmatpush1.xpose.msra.mxu0 0.0
    %2520 = vmatprep.subr.mxu0 0.0
    %2521 = vmatpush1.xpose.msra.mxu0 0.0
    %2522 = vmatprep.subr.mxu0 0.0
    %2523 = vmatpush1.xpose.msra.mxu0 0.0
    %2524 = vmatprep.subr.mxu0 0.0
    %2525 = vmatpush1.xpose.msra.mxu0 0.0
    %2526 = vmatprep.subr.mxu0 0.0
    %2527 = vmatpush1.xpose.msra.mxu0 0.0
    %2528 = vmatprep.subr.mxu0 0.0
    %2529 = vmatpush1.xpose.msra.mxu0 0.0
    %2530 = vmatprep.subr.mxu0 0.0
    %2531 = vmatpush1.xpose.msra.mxu0 0.0
    %2532 = vmatprep.subr.mxu0 0.0
    %2533 = vmatpush1.xpose.msra.mxu0 0.0
    %2534 = vmatprep.subr.mxu0 0.0
    %2535 = vmatpush1.xpose.msra.mxu0 0.0
    %2536 = vmatprep.subr.mxu0 0.0
    %2537 = vmatpush1.xpose.msra.mxu0 0.0
    %2538 = vmatprep.subr.mxu0 0.0
    %2539 = vmatpush1.xpose.msra.mxu0 0.0
    %2540 = vmatprep.subr.mxu0 0.0
    %2541 = vmatpush1.xpose.msra.mxu0 0.0
    %2542 = vmatprep.subr.mxu0 0.0
    %2543 = vmatpush1.xpose.msra.mxu0 0.0
    %2544 = vmatprep.subr.mxu0 0.0
    %2545 = vmatpush1.xpose.msra.mxu0 0.0
    %2546 = vmatprep.subr.mxu0 0.0
    %2547 = vmatpush1.xpose.msra.mxu0 0.0
    %2548 = vmatprep.subr.mxu0 0.0
    %2549 = vmatpush1.xpose.msra.mxu0 0.0
    %2550 = vmatprep.subr.mxu0 0.0
    %2551 = vmatpush1.xpose.msra.mxu0 0.0
    %2552 = vmatprep.subr.mxu0 0.0
    %2553 = vmatpush1.xpose.msra.mxu0 0.0
    %2554 = vmatprep.subr.mxu0 0.0
    %2555 = vmatpush1.xpose.msra.mxu0 0.0
    %2556 = vmatprep.subr.mxu0 0.0
    %2557 = vmatpush1.xpose.msra.mxu0 0.0
    %2558 = vmatprep.subr.mxu0 0.0
    %2559 = vmatpush1.xpose.msra.mxu0 0.0
    %2560 = vmatprep.mubr.f32.mxu0 0.0
    %2561 = vmatmul.mubr.f32.gmra.mrb[0].mxu0 %v2488
    %v2562 = vpop.f32.mrb[0].mxu0
    %v2563 = vadd.f32 0.0, %v2562
    %v2564 = vpop.f32.mrb[0].mxu0
    %2565 = vmatprep.mubr.f32.mxu0 0.0
    %2566 = vmatmul.mubr.f32.gmra.mrb[0].mxu0 %v2490
    %v2567 = vpop.f32.mrb[0].mxu0
    %v2568 = vadd.f32 0.0, %v2567
    %v2569 = vpop.f32.mrb[0].mxu0
    %2570 = vdwg.mxu0
    %2571 = vrot.lane.b32.xlu0 %v2373, 96
    %v2572 = vpop.permute.xlu0 %2571
    %2573 = vrot.lane.b32.xlu0 %v2375, 96
    %v2574 = vpop.permute.xlu0 %2573
    %v2575 = vsel %vm423, %v2373, 0
    %v2577 = vsel %vm423, %v2375, 0
    %v2579 = vsel %vm423, %v2572, 0
    %v2581 = vsel %vm423, %v2574, 0
    %2583 = vmatprep.subr.mxu0 0.0
    %2584 = vmatpush1.xpose.msra.mxu0 %v2579
    %2585 = vmatprep.subr.mxu0 0.0
    %2586 = vmatpush1.xpose.msra.mxu0 %v2581
    %2587 = vmatprep.subr.mxu0 0.0
    %2588 = vmatpush1.xpose.msra.mxu0 0.0
    %2589 = vmatprep.subr.mxu0 0.0
    %2590 = vmatpush1.xpose.msra.mxu0 0.0
    %2591 = vmatprep.subr.mxu0 0.0
    %2592 = vmatpush1.xpose.msra.mxu0 0.0
    %2593 = vmatprep.subr.mxu0 0.0
    %2594 = vmatpush1.xpose.msra.mxu0 0.0
    %2595 = vmatprep.subr.mxu0 0.0
    %2596 = vmatpush1.xpose.msra.mxu0 0.0
    %2597 = vmatprep.subr.mxu0 0.0
    %2598 = vmatpush1.xpose.msra.mxu0 0.0
    %2599 = vmatprep.subr.mxu0 0.0
    %2600 = vmatpush1.xpose.msra.mxu0 0.0
    %2601 = vmatprep.subr.mxu0 0.0
    %2602 = vmatpush1.xpose.msra.mxu0 0.0
    %2603 = vmatprep.subr.mxu0 0.0
    %2604 = vmatpush1.xpose.msra.mxu0 0.0
    %2605 = vmatprep.subr.mxu0 0.0
    %2606 = vmatpush1.xpose.msra.mxu0 0.0
    %2607 = vmatprep.subr.mxu0 0.0
    %2608 = vmatpush1.xpose.msra.mxu0 0.0
    %2609 = vmatprep.subr.mxu0 0.0
    %2610 = vmatpush1.xpose.msra.mxu0 0.0
    %2611 = vmatprep.subr.mxu0 0.0
    %2612 = vmatpush1.xpose.msra.mxu0 0.0
    %2613 = vmatprep.subr.mxu0 0.0
    %2614 = vmatpush1.xpose.msra.mxu0 0.0
    %2615 = vmatprep.subr.mxu0 0.0
    %2616 = vmatpush1.xpose.msra.mxu0 0.0
    %2617 = vmatprep.subr.mxu0 0.0
    %2618 = vmatpush1.xpose.msra.mxu0 0.0
    %2619 = vmatprep.subr.mxu0 0.0
    %2620 = vmatpush1.xpose.msra.mxu0 0.0
    %2621 = vmatprep.subr.mxu0 0.0
    %2622 = vmatpush1.xpose.msra.mxu0 0.0
    %2623 = vmatprep.subr.mxu0 0.0
    %2624 = vmatpush1.xpose.msra.mxu0 0.0
    %2625 = vmatprep.subr.mxu0 0.0
    %2626 = vmatpush1.xpose.msra.mxu0 0.0
    %2627 = vmatprep.subr.mxu0 0.0
    %2628 = vmatpush1.xpose.msra.mxu0 0.0
    %2629 = vmatprep.subr.mxu0 0.0
    %2630 = vmatpush1.xpose.msra.mxu0 0.0
    %2631 = vmatprep.subr.mxu0 0.0
    %2632 = vmatpush1.xpose.msra.mxu0 0.0
    %2633 = vmatprep.subr.mxu0 0.0
    %2634 = vmatpush1.xpose.msra.mxu0 0.0
    %2635 = vmatprep.subr.mxu0 0.0
    %2636 = vmatpush1.xpose.msra.mxu0 0.0
    %2637 = vmatprep.subr.mxu0 0.0
    %2638 = vmatpush1.xpose.msra.mxu0 0.0
    %2639 = vmatprep.subr.mxu0 0.0
    %2640 = vmatpush1.xpose.msra.mxu0 0.0
    %2641 = vmatprep.subr.mxu0 0.0
    %2642 = vmatpush1.xpose.msra.mxu0 0.0
    %2643 = vmatprep.subr.mxu0 0.0
    %2644 = vmatpush1.xpose.msra.mxu0 0.0
    %2645 = vmatprep.subr.mxu0 0.0
    %2646 = vmatpush1.xpose.msra.mxu0 0.0
    %2647 = vmatprep.mubr.f32.mxu0 0.0
    %2648 = vmatmul.mubr.f32.gmra.mrb[0].mxu0 %v2575
    %v2649 = vpop.f32.mrb[0].mxu0
    %v2650 = vadd.f32 0.0, %v2649
    %v2651 = vpop.f32.mrb[0].mxu0
    %2652 = vmatprep.mubr.f32.mxu0 0.0
    %2653 = vmatmul.mubr.f32.gmra.mrb[0].mxu0 %v2577
    %v2654 = vpop.f32.mrb[0].mxu0
    %v2655 = vadd.f32 0.0, %v2654
    %v2656 = vpop.f32.mrb[0].mxu0
    %2657 = vdwg.mxu0
    %2658 = vrot.lane.b32.xlu0 %v2377, 96
    %v2659 = vpop.permute.xlu0 %2658
    %2660 = vrot.lane.b32.xlu0 %v2379, 96
    %v2661 = vpop.permute.xlu0 %2660
    %v2662 = vsel %vm423, %v2377, 0
    %v2664 = vsel %vm423, %v2379, 0
    %v2666 = vsel %vm423, %v2659, 0
    %v2668 = vsel %vm423, %v2661, 0
    %2670 = vmatprep.subr.mxu0 0.0
    %2671 = vmatpush1.xpose.msra.mxu0 %v2666
    %2672 = vmatprep.subr.mxu0 0.0
    %2673 = vmatpush1.xpose.msra.mxu0 %v2668
    %2674 = vmatprep.subr.mxu0 0.0
    %2675 = vmatpush1.xpose.msra.mxu0 0.0
    %2676 = vmatprep.subr.mxu0 0.0
    %2677 = vmatpush1.xpose.msra.mxu0 0.0
    %2678 = vmatprep.subr.mxu0 0.0
    %2679 = vmatpush1.xpose.msra.mxu0 0.0
    %2680 = vmatprep.subr.mxu0 0.0
    %2681 = vmatpush1.xpose.msra.mxu0 0.0
    %2682 = vmatprep.subr.mxu0 0.0
    %2683 = vmatpush1.xpose.msra.mxu0 0.0
    %2684 = vmatprep.subr.mxu0 0.0
    %2685 = vmatpush1.xpose.msra.mxu0 0.0
    %2686 = vmatprep.subr.mxu0 0.0
    %2687 = vmatpush1.xpose.msra.mxu0 0.0
    %2688 = vmatprep.subr.mxu0 0.0
    %2689 = vmatpush1.xpose.msra.mxu0 0.0
    %2690 = vmatprep.subr.mxu0 0.0
    %2691 = vmatpush1.xpose.msra.mxu0 0.0
    %2692 = vmatprep.subr.mxu0 0.0
    %2693 = vmatpush1.xpose.msra.mxu0 0.0
    %2694 = vmatprep.subr.mxu0 0.0
    %2695 = vmatpush1.xpose.msra.mxu0 0.0
    %2696 = vmatprep.subr.mxu0 0.0
    %2697 = vmatpush1.xpose.msra.mxu0 0.0
    %2698 = vmatprep.subr.mxu0 0.0
    %2699 = vmatpush1.xpose.msra.mxu0 0.0
    %2700 = vmatprep.subr.mxu0 0.0
    %2701 = vmatpush1.xpose.msra.mxu0 0.0
    %2702 = vmatprep.subr.mxu0 0.0
    %2703 = vmatpush1.xpose.msra.mxu0 0.0
    %2704 = vmatprep.subr.mxu0 0.0
    %2705 = vmatpush1.xpose.msra.mxu0 0.0
    %2706 = vmatprep.subr.mxu0 0.0
    %2707 = vmatpush1.xpose.msra.mxu0 0.0
    %2708 = vmatprep.subr.mxu0 0.0
    %2709 = vmatpush1.xpose.msra.mxu0 0.0
    %2710 = vmatprep.subr.mxu0 0.0
    %2711 = vmatpush1.xpose.msra.mxu0 0.0
    %2712 = vmatprep.subr.mxu0 0.0
    %2713 = vmatpush1.xpose.msra.mxu0 0.0
    %2714 = vmatprep.subr.mxu0 0.0
    %2715 = vmatpush1.xpose.msra.mxu0 0.0
    %2716 = vmatprep.subr.mxu0 0.0
    %2717 = vmatpush1.xpose.msra.mxu0 0.0
    %2718 = vmatprep.subr.mxu0 0.0
    %2719 = vmatpush1.xpose.msra.mxu0 0.0
    %2720 = vmatprep.subr.mxu0 0.0
    %2721 = vmatpush1.xpose.msra.mxu0 0.0
    %2722 = vmatprep.subr.mxu0 0.0
    %2723 = vmatpush1.xpose.msra.mxu0 0.0
    %2724 = vmatprep.subr.mxu0 0.0
    %2725 = vmatpush1.xpose.msra.mxu0 0.0
    %2726 = vmatprep.subr.mxu0 0.0
    %2727 = vmatpush1.xpose.msra.mxu0 0.0
    %2728 = vmatprep.subr.mxu0 0.0
    %2729 = vmatpush1.xpose.msra.mxu0 0.0
    %2730 = vmatprep.subr.mxu0 0.0
    %2731 = vmatpush1.xpose.msra.mxu0 0.0
    %2732 = vmatprep.subr.mxu0 0.0
    %2733 = vmatpush1.xpose.msra.mxu0 0.0
    %2734 = vmatprep.mubr.f32.mxu0 0.0
    %2735 = vmatmul.mubr.f32.gmra.mrb[0].mxu0 %v2662
    %v2736 = vpop.f32.mrb[0].mxu0
    %v2737 = vadd.f32 0.0, %v2736
    %v2738 = vpop.f32.mrb[0].mxu0
    %2739 = vmatprep.mubr.f32.mxu0 0.0
    %2740 = vmatmul.mubr.f32.gmra.mrb[0].mxu0 %v2664
    %v2741 = vpop.f32.mrb[0].mxu0
    %v2742 = vadd.f32 0.0, %v2741
    %v2743 = vpop.f32.mrb[0].mxu0
    %2744 = vdwg.mxu0
    %2745 = vrot.lane.b32.xlu0 %v2384, 96
    %v2746 = vpop.permute.xlu0 %2745
    %2747 = vrot.lane.b32.xlu0 %v2383, 96
    %v2748 = vpop.permute.xlu0 %2747
    %v2749 = vsel %vm423, %v2384, 0
    %v2751 = vsel %vm423, %v2383, 0
    %v2753 = vsel %vm423, %v2746, 0
    %v2755 = vsel %vm423, %v2748, 0
    %2757 = vmatprep.subr.mxu0 0.0
    %2758 = vmatpush1.xpose.msra.mxu0 %v2753
    %2759 = vmatprep.subr.mxu0 0.0
    %2760 = vmatpush1.xpose.msra.mxu0 %v2755
    %2761 = vmatprep.subr.mxu0 0.0
    %2762 = vmatpush1.xpose.msra.mxu0 0.0
    %2763 = vmatprep.subr.mxu0 0.0
    %2764 = vmatpush1.xpose.msra.mxu0 0.0
    %2765 = vmatprep.subr.mxu0 0.0
    %2766 = vmatpush1.xpose.msra.mxu0 0.0
    %2767 = vmatprep.subr.mxu0 0.0
    %2768 = vmatpush1.xpose.msra.mxu0 0.0
    %2769 = vmatprep.subr.mxu0 0.0
    %2770 = vmatpush1.xpose.msra.mxu0 0.0
    %2771 = vmatprep.subr.mxu0 0.0
    %2772 = vmatpush1.xpose.msra.mxu0 0.0
    %2773 = vmatprep.subr.mxu0 0.0
    %2774 = vmatpush1.xpose.msra.mxu0 0.0
    %2775 = vmatprep.subr.mxu0 0.0
    %2776 = vmatpush1.xpose.msra.mxu0 0.0
    %2777 = vmatprep.subr.mxu0 0.0
    %2778 = vmatpush1.xpose.msra.mxu0 0.0
    %2779 = vmatprep.subr.mxu0 0.0
    %2780 = vmatpush1.xpose.msra.mxu0 0.0
    %2781 = vmatprep.subr.mxu0 0.0
    %2782 = vmatpush1.xpose.msra.mxu0 0.0
    %2783 = vmatprep.subr.mxu0 0.0
    %2784 = vmatpush1.xpose.msra.mxu0 0.0
    %2785 = vmatprep.subr.mxu0 0.0
    %2786 = vmatpush1.xpose.msra.mxu0 0.0
    %2787 = vmatprep.subr.mxu0 0.0
    %2788 = vmatpush1.xpose.msra.mxu0 0.0
    %2789 = vmatprep.subr.mxu0 0.0
    %2790 = vmatpush1.xpose.msra.mxu0 0.0
    %2791 = vmatprep.subr.mxu0 0.0
    %2792 = vmatpush1.xpose.msra.mxu0 0.0
    %2793 = vmatprep.subr.mxu0 0.0
    %2794 = vmatpush1.xpose.msra.mxu0 0.0
    %2795 = vmatprep.subr.mxu0 0.0
    %2796 = vmatpush1.xpose.msra.mxu0 0.0
    %2797 = vmatprep.subr.mxu0 0.0
    %2798 = vmatpush1.xpose.msra.mxu0 0.0
    %2799 = vmatprep.subr.mxu0 0.0
    %2800 = vmatpush1.xpose.msra.mxu0 0.0
    %2801 = vmatprep.subr.mxu0 0.0
    %2802 = vmatpush1.xpose.msra.mxu0 0.0
    %2803 = vmatprep.subr.mxu0 0.0
    %2804 = vmatpush1.xpose.msra.mxu0 0.0
    %2805 = vmatprep.subr.mxu0 0.0
    %2806 = vmatpush1.xpose.msra.mxu0 0.0
    %2807 = vmatprep.subr.mxu0 0.0
    %2808 = vmatpush1.xpose.msra.mxu0 0.0
    %2809 = vmatprep.subr.mxu0 0.0
    %2810 = vmatpush1.xpose.msra.mxu0 0.0
    %2811 = vmatprep.subr.mxu0 0.0
    %2812 = vmatpush1.xpose.msra.mxu0 0.0
    %2813 = vmatprep.subr.mxu0 0.0
    %2814 = vmatpush1.xpose.msra.mxu0 0.0
    %2815 = vmatprep.subr.mxu0 0.0
    %2816 = vmatpush1.xpose.msra.mxu0 0.0
    %2817 = vmatprep.subr.mxu0 0.0
    %2818 = vmatpush1.xpose.msra.mxu0 0.0
    %2819 = vmatprep.subr.mxu0 0.0
    %2820 = vmatpush1.xpose.msra.mxu0 0.0
    %2821 = vmatprep.mubr.f32.mxu0 0.0
    %2822 = vmatmul.mubr.f32.gmra.mrb[0].mxu0 %v2749
    %v2823 = vpop.f32.mrb[0].mxu0
    %v2824 = vadd.f32 0.0, %v2823
    %v2825 = vpop.f32.mrb[0].mxu0
    %2826 = vmatprep.mubr.f32.mxu0 0.0
    %2827 = vmatmul.mubr.f32.gmra.mrb[0].mxu0 %v2751
    %v2828 = vpop.f32.mrb[0].mxu0
    %v2829 = vadd.f32 0.0, %v2828
    %v2830 = vpop.f32.mrb[0].mxu0
    %2831 = vdwg.mxu0
    %2832 = vrot.lane.b32.xlu0 %v2386, 96
    %v2833 = vpop.permute.xlu0 %2832
    %2834 = vrot.lane.b32.xlu0 %v2388, 96
    %v2835 = vpop.permute.xlu0 %2834
    %v2836 = vsel %vm423, %v2386, 0
    %v2838 = vsel %vm423, %v2388, 0
    %v2840 = vsel %vm423, %v2833, 0
    %v2842 = vsel %vm423, %v2835, 0
    %2844 = vmatprep.subr.mxu0 0.0
    %2845 = vmatpush1.xpose.msra.mxu0 %v2840
    %2846 = vmatprep.subr.mxu0 0.0
    %2847 = vmatpush1.xpose.msra.mxu0 %v2842
    %2848 = vmatprep.subr.mxu0 0.0
    %2849 = vmatpush1.xpose.msra.mxu0 0.0
    %2850 = vmatprep.subr.mxu0 0.0
    %2851 = vmatpush1.xpose.msra.mxu0 0.0
    %2852 = vmatprep.subr.mxu0 0.0
    %2853 = vmatpush1.xpose.msra.mxu0 0.0
    %2854 = vmatprep.subr.mxu0 0.0
    %2855 = vmatpush1.xpose.msra.mxu0 0.0
    %2856 = vmatprep.subr.mxu0 0.0
    %2857 = vmatpush1.xpose.msra.mxu0 0.0
    %2858 = vmatprep.subr.mxu0 0.0
    %2859 = vmatpush1.xpose.msra.mxu0 0.0
    %2860 = vmatprep.subr.mxu0 0.0
    %2861 = vmatpush1.xpose.msra.mxu0 0.0
    %2862 = vmatprep.subr.mxu0 0.0
    %2863 = vmatpush1.xpose.msra.mxu0 0.0
    %2864 = vmatprep.subr.mxu0 0.0
    %2865 = vmatpush1.xpose.msra.mxu0 0.0
    %2866 = vmatprep.subr.mxu0 0.0
    %2867 = vmatpush1.xpose.msra.mxu0 0.0
    %2868 = vmatprep.subr.mxu0 0.0
    %2869 = vmatpush1.xpose.msra.mxu0 0.0
    %2870 = vmatprep.subr.mxu0 0.0
    %2871 = vmatpush1.xpose.msra.mxu0 0.0
    %2872 = vmatprep.subr.mxu0 0.0
    %2873 = vmatpush1.xpose.msra.mxu0 0.0
    %2874 = vmatprep.subr.mxu0 0.0
    %2875 = vmatpush1.xpose.msra.mxu0 0.0
    %2876 = vmatprep.subr.mxu0 0.0
    %2877 = vmatpush1.xpose.msra.mxu0 0.0
    %2878 = vmatprep.subr.mxu0 0.0
    %2879 = vmatpush1.xpose.msra.mxu0 0.0
    %2880 = vmatprep.subr.mxu0 0.0
    %2881 = vmatpush1.xpose.msra.mxu0 0.0
    %2882 = vmatprep.subr.mxu0 0.0
    %2883 = vmatpush1.xpose.msra.mxu0 0.0
    %2884 = vmatprep.subr.mxu0 0.0
    %2885 = vmatpush1.xpose.msra.mxu0 0.0
    %2886 = vmatprep.subr.mxu0 0.0
    %2887 = vmatpush1.xpose.msra.mxu0 0.0
    %2888 = vmatprep.subr.mxu0 0.0
    %2889 = vmatpush1.xpose.msra.mxu0 0.0
    %2890 = vmatprep.subr.mxu0 0.0
    %2891 = vmatpush1.xpose.msra.mxu0 0.0
    %2892 = vmatprep.subr.mxu0 0.0
    %2893 = vmatpush1.xpose.msra.mxu0 0.0
    %2894 = vmatprep.subr.mxu0 0.0
    %2895 = vmatpush1.xpose.msra.mxu0 0.0
    %2896 = vmatprep.subr.mxu0 0.0
    %2897 = vmatpush1.xpose.msra.mxu0 0.0
    %2898 = vmatprep.subr.mxu0 0.0
    %2899 = vmatpush1.xpose.msra.mxu0 0.0
    %2900 = vmatprep.subr.mxu0 0.0
    %2901 = vmatpush1.xpose.msra.mxu0 0.0
    %2902 = vmatprep.subr.mxu0 0.0
    %2903 = vmatpush1.xpose.msra.mxu0 0.0
    %2904 = vmatprep.subr.mxu0 0.0
    %2905 = vmatpush1.xpose.msra.mxu0 0.0
    %2906 = vmatprep.subr.mxu0 0.0
    %2907 = vmatpush1.xpose.msra.mxu0 0.0
    %2908 = vmatprep.mubr.f32.mxu0 0.0
    %2909 = vmatmul.mubr.f32.gmra.mrb[0].mxu0 %v2836
    %v2910 = vpop.f32.mrb[0].mxu0
    %v2911 = vadd.f32 0.0, %v2910
    %v2912 = vpop.f32.mrb[0].mxu0
    %2913 = vmatprep.mubr.f32.mxu0 0.0
    %2914 = vmatmul.mubr.f32.gmra.mrb[0].mxu0 %v2838
    %v2915 = vpop.f32.mrb[0].mxu0
    %v2916 = vadd.f32 0.0, %v2915
    %v2917 = vpop.f32.mrb[0].mxu0
    %2918 = vdwg.mxu0
    %2919 = vrot.lane.b32.xlu0 %v2390, 96
    %v2920 = vpop.permute.xlu0 %2919
    %2921 = vrot.lane.b32.xlu0 %v2392, 96
    %v2922 = vpop.permute.xlu0 %2921
    %v2923 = vsel %vm423, %v2390, 0
    %v2925 = vsel %vm423, %v2392, 0
    %v2927 = vsel %vm423, %v2920, 0
    %v2929 = vsel %vm423, %v2922, 0
    %2931 = vmatprep.subr.mxu0 0.0
    %2932 = vmatpush1.xpose.msra.mxu0 %v2927
    %2933 = vmatprep.subr.mxu0 0.0
    %2934 = vmatpush1.xpose.msra.mxu0 %v2929
    %2935 = vmatprep.subr.mxu0 0.0
    %2936 = vmatpush1.xpose.msra.mxu0 0.0
    %2937 = vmatprep.subr.mxu0 0.0
    %2938 = vmatpush1.xpose.msra.mxu0 0.0
    %2939 = vmatprep.subr.mxu0 0.0
    %2940 = vmatpush1.xpose.msra.mxu0 0.0
    %2941 = vmatprep.subr.mxu0 0.0
    %2942 = vmatpush1.xpose.msra.mxu0 0.0
    %2943 = vmatprep.subr.mxu0 0.0
    %2944 = vmatpush1.xpose.msra.mxu0 0.0
    %2945 = vmatprep.subr.mxu0 0.0
    %2946 = vmatpush1.xpose.msra.mxu0 0.0
    %2947 = vmatprep.subr.mxu0 0.0
    %2948 = vmatpush1.xpose.msra.mxu0 0.0
    %2949 = vmatprep.subr.mxu0 0.0
    %2950 = vmatpush1.xpose.msra.mxu0 0.0
    %2951 = vmatprep.subr.mxu0 0.0
    %2952 = vmatpush1.xpose.msra.mxu0 0.0
    %2953 = vmatprep.subr.mxu0 0.0
    %2954 = vmatpush1.xpose.msra.mxu0 0.0
    %2955 = vmatprep.subr.mxu0 0.0
    %2956 = vmatpush1.xpose.msra.mxu0 0.0
    %2957 = vmatprep.subr.mxu0 0.0
    %2958 = vmatpush1.xpose.msra.mxu0 0.0
    %2959 = vmatprep.subr.mxu0 0.0
    %2960 = vmatpush1.xpose.msra.mxu0 0.0
    %2961 = vmatprep.subr.mxu0 0.0
    %2962 = vmatpush1.xpose.msra.mxu0 0.0
    %2963 = vmatprep.subr.mxu0 0.0
    %2964 = vmatpush1.xpose.msra.mxu0 0.0
    %2965 = vmatprep.subr.mxu0 0.0
    %2966 = vmatpush1.xpose.msra.mxu0 0.0
    %2967 = vmatprep.subr.mxu0 0.0
    %2968 = vmatpush1.xpose.msra.mxu0 0.0
    %2969 = vmatprep.subr.mxu0 0.0
    %2970 = vmatpush1.xpose.msra.mxu0 0.0
    %2971 = vmatprep.subr.mxu0 0.0
    %2972 = vmatpush1.xpose.msra.mxu0 0.0
    %2973 = vmatprep.subr.mxu0 0.0
    %2974 = vmatpush1.xpose.msra.mxu0 0.0
    %2975 = vmatprep.subr.mxu0 0.0
    %2976 = vmatpush1.xpose.msra.mxu0 0.0
    %2977 = vmatprep.subr.mxu0 0.0
    %2978 = vmatpush1.xpose.msra.mxu0 0.0
    %2979 = vmatprep.subr.mxu0 0.0
    %2980 = vmatpush1.xpose.msra.mxu0 0.0
    %2981 = vmatprep.subr.mxu0 0.0
    %2982 = vmatpush1.xpose.msra.mxu0 0.0
    %2983 = vmatprep.subr.mxu0 0.0
    %2984 = vmatpush1.xpose.msra.mxu0 0.0
    %2985 = vmatprep.subr.mxu0 0.0
    %2986 = vmatpush1.xpose.msra.mxu0 0.0
    %2987 = vmatprep.subr.mxu0 0.0
    %2988 = vmatpush1.xpose.msra.mxu0 0.0
    %2989 = vmatprep.subr.mxu0 0.0
    %2990 = vmatpush1.xpose.msra.mxu0 0.0
    %2991 = vmatprep.subr.mxu0 0.0
    %2992 = vmatpush1.xpose.msra.mxu0 0.0
    %2993 = vmatprep.subr.mxu0 0.0
    %2994 = vmatpush1.xpose.msra.mxu0 0.0
    %2995 = vmatprep.mubr.f32.mxu0 0.0
    %2996 = vmatmul.mubr.f32.gmra.mrb[0].mxu0 %v2923
    %v2997 = vpop.f32.mrb[0].mxu0
    %v2998 = vadd.f32 0.0, %v2997
    %v2999 = vpop.f32.mrb[0].mxu0
    %3000 = vmatprep.mubr.f32.mxu0 0.0
    %3001 = vmatmul.mubr.f32.gmra.mrb[0].mxu0 %v2925
    %v3002 = vpop.f32.mrb[0].mxu0
    %v3003 = vadd.f32 0.0, %v3002
    %v3004 = vpop.f32.mrb[0].mxu0
    %3005 = vdwg.mxu0
    %3006 = vrot.lane.b32.xlu0 %v2394, 96
    %v3007 = vpop.permute.xlu0 %3006
    %3008 = vrot.lane.b32.xlu0 %v2396, 96
    %v3009 = vpop.permute.xlu0 %3008
    %v3010 = vsel %vm423, %v2394, 0
    %v3012 = vsel %vm423, %v2396, 0
    %v3014 = vsel %vm423, %v3007, 0
    %v3016 = vsel %vm423, %v3009, 0
    %3018 = vmatprep.subr.mxu0 0.0
    %3019 = vmatpush1.xpose.msra.mxu0 %v3014
    %3020 = vmatprep.subr.mxu0 0.0
    %3021 = vmatpush1.xpose.msra.mxu0 %v3016
    %3022 = vmatprep.subr.mxu0 0.0
    %3023 = vmatpush1.xpose.msra.mxu0 0.0
    %3024 = vmatprep.subr.mxu0 0.0
    %3025 = vmatpush1.xpose.msra.mxu0 0.0
    %3026 = vmatprep.subr.mxu0 0.0
    %3027 = vmatpush1.xpose.msra.mxu0 0.0
    %3028 = vmatprep.subr.mxu0 0.0
    %3029 = vmatpush1.xpose.msra.mxu0 0.0
    %3030 = vmatprep.subr.mxu0 0.0
    %3031 = vmatpush1.xpose.msra.mxu0 0.0
    %3032 = vmatprep.subr.mxu0 0.0
    %3033 = vmatpush1.xpose.msra.mxu0 0.0
    %3034 = vmatprep.subr.mxu0 0.0
    %3035 = vmatpush1.xpose.msra.mxu0 0.0
    %3036 = vmatprep.subr.mxu0 0.0
    %3037 = vmatpush1.xpose.msra.mxu0 0.0
    %3038 = vmatprep.subr.mxu0 0.0
    %3039 = vmatpush1.xpose.msra.mxu0 0.0
    %3040 = vmatprep.subr.mxu0 0.0
    %3041 = vmatpush1.xpose.msra.mxu0 0.0
    %3042 = vmatprep.subr.mxu0 0.0
    %3043 = vmatpush1.xpose.msra.mxu0 0.0
    %3044 = vmatprep.subr.mxu0 0.0
    %3045 = vmatpush1.xpose.msra.mxu0 0.0
    %3046 = vmatprep.subr.mxu0 0.0
    %3047 = vmatpush1.xpose.msra.mxu0 0.0
    %3048 = vmatprep.subr.mxu0 0.0
    %3049 = vmatpush1.xpose.msra.mxu0 0.0
    %3050 = vmatprep.subr.mxu0 0.0
    %3051 = vmatpush1.xpose.msra.mxu0 0.0
    %3052 = vmatprep.subr.mxu0 0.0
    %3053 = vmatpush1.xpose.msra.mxu0 0.0
    %3054 = vmatprep.subr.mxu0 0.0
    %3055 = vmatpush1.xpose.msra.mxu0 0.0
    %3056 = vmatprep.subr.mxu0 0.0
    %3057 = vmatpush1.xpose.msra.mxu0 0.0
    %3058 = vmatprep.subr.mxu0 0.0
    %3059 = vmatpush1.xpose.msra.mxu0 0.0
    %3060 = vmatprep.subr.mxu0 0.0
    %3061 = vmatpush1.xpose.msra.mxu0 0.0
    %3062 = vmatprep.subr.mxu0 0.0
    %3063 = vmatpush1.xpose.msra.mxu0 0.0
    %3064 = vmatprep.subr.mxu0 0.0
    %3065 = vmatpush1.xpose.msra.mxu0 0.0
    %3066 = vmatprep.subr.mxu0 0.0
    %3067 = vmatpush1.xpose.msra.mxu0 0.0
    %3068 = vmatprep.subr.mxu0 0.0
    %3069 = vmatpush1.xpose.msra.mxu0 0.0
    %3070 = vmatprep.subr.mxu0 0.0
    %3071 = vmatpush1.xpose.msra.mxu0 0.0
    %3072 = vmatprep.subr.mxu0 0.0
    %3073 = vmatpush1.xpose.msra.mxu0 0.0
    %3074 = vmatprep.subr.mxu0 0.0
    %3075 = vmatpush1.xpose.msra.mxu0 0.0
    %3076 = vmatprep.subr.mxu0 0.0
    %3077 = vmatpush1.xpose.msra.mxu0 0.0
    %3078 = vmatprep.subr.mxu0 0.0
    %3079 = vmatpush1.xpose.msra.mxu0 0.0
    %3080 = vmatprep.subr.mxu0 0.0
    %3081 = vmatpush1.xpose.msra.mxu0 0.0
    %3082 = vmatprep.mubr.f32.mxu0 0.0
    %3083 = vmatmul.mubr.f32.gmra.mrb[0].mxu0 %v3010
    %v3084 = vpop.f32.mrb[0].mxu0
    %v3085 = vadd.f32 0.0, %v3084
    %v3086 = vpop.f32.mrb[0].mxu0
    %3087 = vmatprep.mubr.f32.mxu0 0.0
    %3088 = vmatmul.mubr.f32.gmra.mrb[0].mxu0 %v3012
    %v3089 = vpop.f32.mrb[0].mxu0
    %v3090 = vadd.f32 0.0, %v3089
    %v3091 = vpop.f32.mrb[0].mxu0
    %3092 = vdwg.mxu0
    %v3093 = vmul.f32 %v2476, 0.35355338
    %v3094 = vmul.f32 %v2481, 0.35355338
    %v3095 = vmul.f32 %v2563, 0.35355338
    %v3096 = vmul.f32 %v2568, 0.35355338
    %v3097 = vmul.f32 %v2650, 0.35355338
    %v3098 = vmul.f32 %v2655, 0.35355338
    %v3099 = vmul.f32 %v2737, 0.35355338
    %v3100 = vmul.f32 %v2742, 0.35355338
    %v3101 = vmul.f32 %v2824, 0.35355338
    %v3102 = vmul.f32 %v2829, 0.35355338
    %v3103 = vmul.f32 %v2911, 0.35355338
    %v3104 = vmul.f32 %v2916, 0.35355338
    %v3105 = vmul.f32 %v2998, 0.35355338
    %v3106 = vmul.f32 %v3003, 0.35355338
    %v3107 = vmul.f32 %v3085, 0.35355338
    %v3108 = vmul.f32 %v3090, 0.35355338
    %vm3109 = vcmask 80896
    %v3110 = vsel %vm3109, %v3093, -inf
    %3111 = vmax.xlane.f32.xlu0 %v3110
    %v3112 = vpop.xlane.xlu0 %3111
    %vm3113 = vcmask 74752
    %v3114 = vsel %vm3113, %v3094, -inf
    %3115 = vmax.xlane.f32.xlu0 %v3114
    %v3116 = vpop.xlane.xlu0 %3115
    %v3117 = vsel %vm3109, %v3095, -inf
    %3118 = vmax.xlane.f32.xlu0 %v3117
    %v3119 = vpop.xlane.xlu0 %3118
    %v3120 = vsel %vm3113, %v3096, -inf
    %3121 = vmax.xlane.f32.xlu0 %v3120
    %v3122 = vpop.xlane.xlu0 %3121
    %v3123 = vsel %vm3109, %v3097, -inf
    %3124 = vmax.xlane.f32.xlu0 %v3123
    %v3125 = vpop.xlane.xlu0 %3124
    %v3126 = vsel %vm3113, %v3098, -inf
    %3127 = vmax.xlane.f32.xlu0 %v3126
    %v3128 = vpop.xlane.xlu0 %3127
    %v3129 = vsel %vm3109, %v3099, -inf
    %3130 = vmax.xlane.f32.xlu0 %v3129
    %v3131 = vpop.xlane.xlu0 %3130
    %v3132 = vsel %vm3113, %v3100, -inf
    %3133 = vmax.xlane.f32.xlu0 %v3132
    %v3134 = vpop.xlane.xlu0 %3133
    %v3135 = vsel %vm3109, %v3101, -inf
    %3136 = vmax.xlane.f32.xlu0 %v3135
    %v3137 = vpop.xlane.xlu0 %3136
    %v3138 = vsel %vm3113, %v3102, -inf
    %3139 = vmax.xlane.f32.xlu0 %v3138
    %v3140 = vpop.xlane.xlu0 %3139
    %v3141 = vsel %vm3109, %v3103, -inf
    %3142 = vmax.xlane.f32.xlu0 %v3141
    %v3143 = vpop.xlane.xlu0 %3142
    %v3144 = vsel %vm3113, %v3104, -inf
    %3145 = vmax.xlane.f32.xlu0 %v3144
    %v3146 = vpop.xlane.xlu0 %3145
    %v3147 = vsel %vm3109, %v3105, -inf
    %3148 = vmax.xlane.f32.xlu0 %v3147
    %v3149 = vpop.xlane.xlu0 %3148
    %v3150 = vsel %vm3113, %v3106, -inf
    %3151 = vmax.xlane.f32.xlu0 %v3150
    %v3152 = vpop.xlane.xlu0 %3151
    %v3153 = vsel %vm3109, %v3107, -inf
    %3154 = vmax.xlane.f32.xlu0 %v3153
    %v3155 = vpop.xlane.xlu0 %3154
    %v3156 = vsel %vm3113, %v3108, -inf
    %3157 = vmax.xlane.f32.xlu0 %v3156
    %v3158 = vpop.xlane.xlu0 %3157
    %v3159 = vsub.f32 %v3093, %v3112
    %v3160 = vsub.f32 %v3094, %v3116
    %v3161 = vsub.f32 %v3095, %v3119
    %v3162 = vsub.f32 %v3096, %v3122
    %v3163 = vsub.f32 %v3097, %v3125
    %v3164 = vsub.f32 %v3098, %v3128
    %v3165 = vsub.f32 %v3099, %v3131
    %v3166 = vsub.f32 %v3100, %v3134
    %v3167 = vsub.f32 %v3101, %v3137
    %v3168 = vsub.f32 %v3102, %v3140
    %v3169 = vsub.f32 %v3103, %v3143
    %v3170 = vsub.f32 %v3104, %v3146
    %v3171 = vsub.f32 %v3105, %v3149
    %v3172 = vsub.f32 %v3106, %v3152
    %v3173 = vsub.f32 %v3107, %v3155
    %v3174 = vsub.f32 %v3108, %v3158
    %v3175 = vmul.f32 %v3159, 1.442695
    %v3176 = vpow.pop %v3175
    %v3177 = vmul.f32 %v3160, 1.442695
    %v3178 = vpow.pop %v3177
    %v3179 = vmul.f32 %v3161, 1.442695
    %v3180 = vpow.pop %v3179
    %v3181 = vmul.f32 %v3162, 1.442695
    %v3182 = vpow.pop %v3181
    %v3183 = vmul.f32 %v3163, 1.442695
    %v3184 = vpow.pop %v3183
    %v3185 = vmul.f32 %v3164, 1.442695
    %v3186 = vpow.pop %v3185
    %v3187 = vmul.f32 %v3165, 1.442695
    %v3188 = vpow.pop %v3187
    %v3189 = vmul.f32 %v3166, 1.442695
    %v3190 = vpow.pop %v3189
    %v3191 = vmul.f32 %v3167, 1.442695
    %v3192 = vpow.pop %v3191
    %v3193 = vmul.f32 %v3168, 1.442695
    %v3194 = vpow.pop %v3193
    %v3195 = vmul.f32 %v3169, 1.442695
    %v3196 = vpow.pop %v3195
    %v3197 = vmul.f32 %v3170, 1.442695
    %v3198 = vpow.pop %v3197
    %v3199 = vmul.f32 %v3171, 1.442695
    %v3200 = vpow.pop %v3199
    %v3201 = vmul.f32 %v3172, 1.442695
    %v3202 = vpow.pop %v3201
    %v3203 = vmul.f32 %v3173, 1.442695
    %v3204 = vpow.pop %v3203
    %v3205 = vmul.f32 %v3174, 1.442695
    %v3206 = vpow.pop %v3205
    %v3207 = vsel %vm3109, %v3176, 0.0
    %3208 = vadd.xlane.f32.xlu0 %v3207
    %v3209 = vpop.xlane.xlu0 %3208
    %v3210 = vsel %vm3113, %v3178, 0.0
    %3211 = vadd.xlane.f32.xlu0 %v3210
    %v3212 = vpop.xlane.xlu0 %3211
    %v3213 = vsel %vm3109, %v3180, 0.0
    %3214 = vadd.xlane.f32.xlu0 %v3213
    %v3215 = vpop.xlane.xlu0 %3214
    %v3216 = vsel %vm3113, %v3182, 0.0
    %3217 = vadd.xlane.f32.xlu0 %v3216
    %v3218 = vpop.xlane.xlu0 %3217
    %v3219 = vsel %vm3109, %v3184, 0.0
    %3220 = vadd.xlane.f32.xlu0 %v3219
    %v3221 = vpop.xlane.xlu0 %3220
    %v3222 = vsel %vm3113, %v3186, 0.0
    %3223 = vadd.xlane.f32.xlu0 %v3222
    %v3224 = vpop.xlane.xlu0 %3223
    %v3225 = vsel %vm3109, %v3188, 0.0
    %3226 = vadd.xlane.f32.xlu0 %v3225
    %v3227 = vpop.xlane.xlu0 %3226
    %v3228 = vsel %vm3113, %v3190, 0.0
    %3229 = vadd.xlane.f32.xlu0 %v3228
    %v3230 = vpop.xlane.xlu0 %3229
    %v3231 = vsel %vm3109, %v3192, 0.0
    %3232 = vadd.xlane.f32.xlu0 %v3231
    %v3233 = vpop.xlane.xlu0 %3232
    %v3234 = vsel %vm3113, %v3194, 0.0
    %3235 = vadd.xlane.f32.xlu0 %v3234
    %v3236 = vpop.xlane.xlu0 %3235
    %v3237 = vsel %vm3109, %v3196, 0.0
    %3238 = vadd.xlane.f32.xlu0 %v3237
    %v3239 = vpop.xlane.xlu0 %3238
    %v3240 = vsel %vm3113, %v3198, 0.0
    %3241 = vadd.xlane.f32.xlu0 %v3240
    %v3242 = vpop.xlane.xlu0 %3241
    %v3243 = vsel %vm3109, %v3200, 0.0
    %3244 = vadd.xlane.f32.xlu0 %v3243
    %v3245 = vpop.xlane.xlu0 %3244
    %v3246 = vsel %vm3113, %v3202, 0.0
    %3247 = vadd.xlane.f32.xlu0 %v3246
    %v3248 = vpop.xlane.xlu0 %3247
    %v3249 = vsel %vm3109, %v3204, 0.0
    %3250 = vadd.xlane.f32.xlu0 %v3249
    %v3251 = vpop.xlane.xlu0 %3250
    %v3252 = vsel %vm3113, %v3206, 0.0
    %3253 = vadd.xlane.f32.xlu0 %v3252
    %v3254 = vpop.xlane.xlu0 %3253
    %v3255 = vrcp.pop %v3209
    %v3256 = vrcp.pop %v3212
    %v3257 = vrcp.pop %v3215
    %v3258 = vrcp.pop %v3218
    %v3259 = vrcp.pop %v3221
    %v3260 = vrcp.pop %v3224
    %v3261 = vrcp.pop %v3227
    %v3262 = vrcp.pop %v3230
    %v3263 = vrcp.pop %v3233
    %v3264 = vrcp.pop %v3236
    %v3265 = vrcp.pop %v3239
    %v3266 = vrcp.pop %v3242
    %v3267 = vrcp.pop %v3245
    %v3268 = vrcp.pop %v3248
    %v3269 = vrcp.pop %v3251
    %v3270 = vrcp.pop %v3254
    %v3271 = vmul.f32 %v3176, %v3255
    %v3272 = vmul.f32 %v3178, %v3256
    %v3273 = vmul.f32 %v3180, %v3257
    %v3274 = vmul.f32 %v3182, %v3258
    %v3275 = vmul.f32 %v3184, %v3259
    %v3276 = vmul.f32 %v3186, %v3260
    %v3277 = vmul.f32 %v3188, %v3261
    %v3278 = vmul.f32 %v3190, %v3262
    %v3279 = vmul.f32 %v3192, %v3263
    %v3280 = vmul.f32 %v3194, %v3264
    %v3281 = vmul.f32 %v3196, %v3265
    %v3282 = vmul.f32 %v3198, %v3266
    %v3283 = vmul.f32 %v3200, %v3267
    %v3284 = vmul.f32 %v3202, %v3268
    %v3285 = vmul.f32 %v3204, %v3269
    %v3286 = vmul.f32 %v3206, %v3270
    %3287 = vrot.lane.b32.xlu0 %v2353, 64
    %v3288 = vpop.permute.xlu0 %3287
    %3289 = vrot.lane.b32.xlu0 %v2358, 64
    %v3290 = vpop.permute.xlu0 %3289
    %v3293 = vsel %vm3109, %v3271, 0
    %v3296 = vsel %vm3109, %v3272, 0
    %v3298 = vsel %vm2172, %v3290, 0
    %3300 = vmatprep.subr.mxu0 0.0
    %3301 = vmatpush1.msra.mxu0 %v3288
    %3302 = vmatprep.subr.mxu0 0.0
    %3303 = vmatpush1.msra.mxu0 %v3298
    %3304 = vmatprep.subr.mxu0 0.0
    %3305 = vmatpush1.msra.mxu0 0.0
    %3306 = vmatprep.subr.mxu0 0.0
    %3307 = vmatpush1.msra.mxu0 0.0
    %3308 = vmatprep.subr.mxu0 0.0
    %3309 = vmatpush1.msra.mxu0 0.0
    %3310 = vmatprep.subr.mxu0 0.0
    %3311 = vmatpush1.msra.mxu0 0.0
    %3312 = vmatprep.subr.mxu0 0.0
    %3313 = vmatpush1.msra.mxu0 0.0
    %3314 = vmatprep.subr.mxu0 0.0
    %3315 = vmatpush1.msra.mxu0 0.0
    %3316 = vmatprep.subr.mxu0 0.0
    %3317 = vmatpush1.msra.mxu0 0.0
    %3318 = vmatprep.subr.mxu0 0.0
    %3319 = vmatpush1.msra.mxu0 0.0
    %3320 = vmatprep.subr.mxu0 0.0
    %3321 = vmatpush1.msra.mxu0 0.0
    %3322 = vmatprep.subr.mxu0 0.0
    %3323 = vmatpush1.msra.mxu0 0.0
    %3324 = vmatprep.subr.mxu0 0.0
    %3325 = vmatpush1.msra.mxu0 0.0
    %3326 = vmatprep.subr.mxu0 0.0
    %3327 = vmatpush1.msra.mxu0 0.0
    %3328 = vmatprep.subr.mxu0 0.0
    %3329 = vmatpush1.msra.mxu0 0.0
    %3330 = vmatprep.subr.mxu0 0.0
    %3331 = vmatpush1.msra.mxu0 0.0
    %3332 = vmatprep.subr.mxu0 0.0
    %3333 = vmatpush1.msra.mxu0 0.0
    %3334 = vmatprep.subr.mxu0 0.0
    %3335 = vmatpush1.msra.mxu0 0.0
    %3336 = vmatprep.subr.mxu0 0.0
    %3337 = vmatpush1.msra.mxu0 0.0
    %3338 = vmatprep.subr.mxu0 0.0
    %3339 = vmatpush1.msra.mxu0 0.0
    %3340 = vmatprep.subr.mxu0 0.0
    %3341 = vmatpush1.msra.mxu0 0.0
    %3342 = vmatprep.subr.mxu0 0.0
    %3343 = vmatpush1.msra.mxu0 0.0
    %3344 = vmatprep.subr.mxu0 0.0
    %3345 = vmatpush1.msra.mxu0 0.0
    %3346 = vmatprep.subr.mxu0 0.0
    %3347 = vmatpush1.msra.mxu0 0.0
    %3348 = vmatprep.subr.mxu0 0.0
    %3349 = vmatpush1.msra.mxu0 0.0
    %3350 = vmatprep.subr.mxu0 0.0
    %3351 = vmatpush1.msra.mxu0 0.0
    %3352 = vmatprep.subr.mxu0 0.0
    %3353 = vmatpush1.msra.mxu0 0.0
    %3354 = vmatprep.subr.mxu0 0.0
    %3355 = vmatpush1.msra.mxu0 0.0
    %3356 = vmatprep.subr.mxu0 0.0
    %3357 = vmatpush1.msra.mxu0 0.0
    %3358 = vmatprep.subr.mxu0 0.0
    %3359 = vmatpush1.msra.mxu0 0.0
    %3360 = vmatprep.subr.mxu0 0.0
    %3361 = vmatpush1.msra.mxu0 0.0
    %3362 = vmatprep.subr.mxu0 0.0
    %3363 = vmatpush1.msra.mxu0 0.0
    %3364 = vmatprep.mubr.f32.mxu0 0.0
    %3365 = vmatmul.mubr.f32.gmra.mrb[0].mxu0 %v3293
    %v3366 = vpop.f32.mrb[0].mxu0
    %v3367 = vadd.f32 0.0, %v3366
    %v3368 = vpop.f32.mrb[0].mxu0
    %3369 = vmatprep.mubr.f32.mxu0 0.0
    %3370 = vmatmul.mubr.f32.gmra.mrb[0].mxu0 %v3296
    %v3371 = vpop.f32.mrb[0].mxu0
    %v3372 = vadd.f32 0.0, %v3371
    %v3373 = vpop.f32.mrb[0].mxu0
    %3374 = vdwg.mxu0
    %3375 = vrot.lane.b32.xlu0 %v2369, 64
    %v3376 = vpop.permute.xlu0 %3375
    %3377 = vrot.lane.b32.xlu0 %v2371, 64
    %v3378 = vpop.permute.xlu0 %3377
    %v3381 = vsel %vm3109, %v3273, 0
    %v3384 = vsel %vm3109, %v3274, 0
    %v3386 = vsel %vm2172, %v3378, 0
    %3388 = vmatprep.subr.mxu0 0.0
    %3389 = vmatpush1.msra.mxu0 %v3376
    %3390 = vmatprep.subr.mxu0 0.0
    %3391 = vmatpush1.msra.mxu0 %v3386
    %3392 = vmatprep.subr.mxu0 0.0
    %3393 = vmatpush1.msra.mxu0 0.0
    %3394 = vmatprep.subr.mxu0 0.0
    %3395 = vmatpush1.msra.mxu0 0.0
    %3396 = vmatprep.subr.mxu0 0.0
    %3397 = vmatpush1.msra.mxu0 0.0
    %3398 = vmatprep.subr.mxu0 0.0
    %3399 = vmatpush1.msra.mxu0 0.0
    %3400 = vmatprep.subr.mxu0 0.0
    %3401 = vmatpush1.msra.mxu0 0.0
    %3402 = vmatprep.subr.mxu0 0.0
    %3403 = vmatpush1.msra.mxu0 0.0
    %3404 = vmatprep.subr.mxu0 0.0
    %3405 = vmatpush1.msra.mxu0 0.0
    %3406 = vmatprep.subr.mxu0 0.0
    %3407 = vmatpush1.msra.mxu0 0.0
    %3408 = vmatprep.subr.mxu0 0.0
    %3409 = vmatpush1.msra.mxu0 0.0
    %3410 = vmatprep.subr.mxu0 0.0
    %3411 = vmatpush1.msra.mxu0 0.0
    %3412 = vmatprep.subr.mxu0 0.0
    %3413 = vmatpush1.msra.mxu0 0.0
    %3414 = vmatprep.subr.mxu0 0.0
    %3415 = vmatpush1.msra.mxu0 0.0
    %3416 = vmatprep.subr.mxu0 0.0
    %3417 = vmatpush1.msra.mxu0 0.0
    %3418 = vmatprep.subr.mxu0 0.0
    %3419 = vmatpush1.msra.mxu0 0.0
    %3420 = vmatprep.subr.mxu0 0.0
    %3421 = vmatpush1.msra.mxu0 0.0
    %3422 = vmatprep.subr.mxu0 0.0
    %3423 = vmatpush1.msra.mxu0 0.0
    %3424 = vmatprep.subr.mxu0 0.0
    %3425 = vmatpush1.msra.mxu0 0.0
    %3426 = vmatprep.subr.mxu0 0.0
    %3427 = vmatpush1.msra.mxu0 0.0
    %3428 = vmatprep.subr.mxu0 0.0
    %3429 = vmatpush1.msra.mxu0 0.0
    %3430 = vmatprep.subr.mxu0 0.0
    %3431 = vmatpush1.msra.mxu0 0.0
    %3432 = vmatprep.subr.mxu0 0.0
    %3433 = vmatpush1.msra.mxu0 0.0
    %3434 = vmatprep.subr.mxu0 0.0
    %3435 = vmatpush1.msra.mxu0 0.0
    %3436 = vmatprep.subr.mxu0 0.0
    %3437 = vmatpush1.msra.mxu0 0.0
    %3438 = vmatprep.subr.mxu0 0.0
    %3439 = vmatpush1.msra.mxu0 0.0
    %3440 = vmatprep.subr.mxu0 0.0
    %3441 = vmatpush1.msra.mxu0 0.0
    %3442 = vmatprep.subr.mxu0 0.0
    %3443 = vmatpush1.msra.mxu0 0.0
    %3444 = vmatprep.subr.mxu0 0.0
    %3445 = vmatpush1.msra.mxu0 0.0
    %3446 = vmatprep.subr.mxu0 0.0
    %3447 = vmatpush1.msra.mxu0 0.0
    %3448 = vmatprep.subr.mxu0 0.0
    %3449 = vmatpush1.msra.mxu0 0.0
    %3450 = vmatprep.subr.mxu0 0.0
    %3451 = vmatpush1.msra.mxu0 0.0
    %3452 = vmatprep.mubr.f32.mxu0 0.0
    %3453 = vmatmul.mubr.f32.gmra.mrb[0].mxu0 %v3381
    %v3454 = vpop.f32.mrb[0].mxu0
    %v3455 = vadd.f32 0.0, %v3454
    %v3456 = vpop.f32.mrb[0].mxu0
    %3457 = vmatprep.mubr.f32.mxu0 0.0
    %3458 = vmatmul.mubr.f32.gmra.mrb[0].mxu0 %v3384
    %v3459 = vpop.f32.mrb[0].mxu0
    %v3460 = vadd.f32 0.0, %v3459
    %v3461 = vpop.f32.mrb[0].mxu0
    %3462 = vdwg.mxu0
    %3463 = vrot.lane.b32.xlu0 %v2373, 64
    %v3464 = vpop.permute.xlu0 %3463
    %3465 = vrot.lane.b32.xlu0 %v2375, 64
    %v3466 = vpop.permute.xlu0 %3465
    %v3469 = vsel %vm3109, %v3275, 0
    %v3472 = vsel %vm3109, %v3276, 0
    %v3474 = vsel %vm2172, %v3466, 0
    %3476 = vmatprep.subr.mxu0 0.0
    %3477 = vmatpush1.msra.mxu0 %v3464
    %3478 = vmatprep.subr.mxu0 0.0
    %3479 = vmatpush1.msra.mxu0 %v3474
    %3480 = vmatprep.subr.mxu0 0.0
    %3481 = vmatpush1.msra.mxu0 0.0
    %3482 = vmatprep.subr.mxu0 0.0
    %3483 = vmatpush1.msra.mxu0 0.0
    %3484 = vmatprep.subr.mxu0 0.0
    %3485 = vmatpush1.msra.mxu0 0.0
    %3486 = vmatprep.subr.mxu0 0.0
    %3487 = vmatpush1.msra.mxu0 0.0
    %3488 = vmatprep.subr.mxu0 0.0
    %3489 = vmatpush1.msra.mxu0 0.0
    %3490 = vmatprep.subr.mxu0 0.0
    %3491 = vmatpush1.msra.mxu0 0.0
    %3492 = vmatprep.subr.mxu0 0.0
    %3493 = vmatpush1.msra.mxu0 0.0
    %3494 = vmatprep.subr.mxu0 0.0
    %3495 = vmatpush1.msra.mxu0 0.0
    %3496 = vmatprep.subr.mxu0 0.0
    %3497 = vmatpush1.msra.mxu0 0.0
    %3498 = vmatprep.subr.mxu0 0.0
    %3499 = vmatpush1.msra.mxu0 0.0
    %3500 = vmatprep.subr.mxu0 0.0
    %3501 = vmatpush1.msra.mxu0 0.0
    %3502 = vmatprep.subr.mxu0 0.0
    %3503 = vmatpush1.msra.mxu0 0.0
    %3504 = vmatprep.subr.mxu0 0.0
    %3505 = vmatpush1.msra.mxu0 0.0
    %3506 = vmatprep.subr.mxu0 0.0
    %3507 = vmatpush1.msra.mxu0 0.0
    %3508 = vmatprep.subr.mxu0 0.0
    %3509 = vmatpush1.msra.mxu0 0.0
    %3510 = vmatprep.subr.mxu0 0.0
    %3511 = vmatpush1.msra.mxu0 0.0
    %3512 = vmatprep.subr.mxu0 0.0
    %3513 = vmatpush1.msra.mxu0 0.0
    %3514 = vmatprep.subr.mxu0 0.0
    %3515 = vmatpush1.msra.mxu0 0.0
    %3516 = vmatprep.subr.mxu0 0.0
    %3517 = vmatpush1.msra.mxu0 0.0
    %3518 = vmatprep.subr.mxu0 0.0
    %3519 = vmatpush1.msra.mxu0 0.0
    %3520 = vmatprep.subr.mxu0 0.0
    %3521 = vmatpush1.msra.mxu0 0.0
    %3522 = vmatprep.subr.mxu0 0.0
    %3523 = vmatpush1.msra.mxu0 0.0
    %3524 = vmatprep.subr.mxu0 0.0
    %3525 = vmatpush1.msra.mxu0 0.0
    %3526 = vmatprep.subr.mxu0 0.0
    %3527 = vmatpush1.msra.mxu0 0.0
    %3528 = vmatprep.subr.mxu0 0.0
    %3529 = vmatpush1.msra.mxu0 0.0
    %3530 = vmatprep.subr.mxu0 0.0
    %3531 = vmatpush1.msra.mxu0 0.0
    %3532 = vmatprep.subr.mxu0 0.0
    %3533 = vmatpush1.msra.mxu0 0.0
    %3534 = vmatprep.subr.mxu0 0.0
    %3535 = vmatpush1.msra.mxu0 0.0
    %3536 = vmatprep.subr.mxu0 0.0
    %3537 = vmatpush1.msra.mxu0 0.0
    %3538 = vmatprep.subr.mxu0 0.0
    %3539 = vmatpush1.msra.mxu0 0.0
    %3540 = vmatprep.mubr.f32.mxu0 0.0
    %3541 = vmatmul.mubr.f32.gmra.mrb[0].mxu0 %v3469
    %v3542 = vpop.f32.mrb[0].mxu0
    %v3543 = vadd.f32 0.0, %v3542
    %v3544 = vpop.f32.mrb[0].mxu0
    %3545 = vmatprep.mubr.f32.mxu0 0.0
    %3546 = vmatmul.mubr.f32.gmra.mrb[0].mxu0 %v3472
    %v3547 = vpop.f32.mrb[0].mxu0
    %v3548 = vadd.f32 0.0, %v3547
    %v3549 = vpop.f32.mrb[0].mxu0
    %3550 = vdwg.mxu0
    %3551 = vrot.lane.b32.xlu0 %v2377, 64
    %v3552 = vpop.permute.xlu0 %3551
    %3553 = vrot.lane.b32.xlu0 %v2379, 64
    %v3554 = vpop.permute.xlu0 %3553
    %v3557 = vsel %vm3109, %v3277, 0
    %v3560 = vsel %vm3109, %v3278, 0
    %v3562 = vsel %vm2172, %v3554, 0
    %3564 = vmatprep.subr.mxu0 0.0
    %3565 = vmatpush1.msra.mxu0 %v3552
    %3566 = vmatprep.subr.mxu0 0.0
    %3567 = vmatpush1.msra.mxu0 %v3562
    %3568 = vmatprep.subr.mxu0 0.0
    %3569 = vmatpush1.msra.mxu0 0.0
    %3570 = vmatprep.subr.mxu0 0.0
    %3571 = vmatpush1.msra.mxu0 0.0
    %3572 = vmatprep.subr.mxu0 0.0
    %3573 = vmatpush1.msra.mxu0 0.0
    %3574 = vmatprep.subr.mxu0 0.0
    %3575 = vmatpush1.msra.mxu0 0.0
    %3576 = vmatprep.subr.mxu0 0.0
    %3577 = vmatpush1.msra.mxu0 0.0
    %3578 = vmatprep.subr.mxu0 0.0
    %3579 = vmatpush1.msra.mxu0 0.0
    %3580 = vmatprep.subr.mxu0 0.0
    %3581 = vmatpush1.msra.mxu0 0.0
    %3582 = vmatprep.subr.mxu0 0.0
    %3583 = vmatpush1.msra.mxu0 0.0
    %3584 = vmatprep.subr.mxu0 0.0
    %3585 = vmatpush1.msra.mxu0 0.0
    %3586 = vmatprep.subr.mxu0 0.0
    %3587 = vmatpush1.msra.mxu0 0.0
    %3588 = vmatprep.subr.mxu0 0.0
    %3589 = vmatpush1.msra.mxu0 0.0
    %3590 = vmatprep.subr.mxu0 0.0
    %3591 = vmatpush1.msra.mxu0 0.0
    %3592 = vmatprep.subr.mxu0 0.0
    %3593 = vmatpush1.msra.mxu0 0.0
    %3594 = vmatprep.subr.mxu0 0.0
    %3595 = vmatpush1.msra.mxu0 0.0
    %3596 = vmatprep.subr.mxu0 0.0
    %3597 = vmatpush1.msra.mxu0 0.0
    %3598 = vmatprep.subr.mxu0 0.0
    %3599 = vmatpush1.msra.mxu0 0.0
    %3600 = vmatprep.subr.mxu0 0.0
    %3601 = vmatpush1.msra.mxu0 0.0
    %3602 = vmatprep.subr.mxu0 0.0
    %3603 = vmatpush1.msra.mxu0 0.0
    %3604 = vmatprep.subr.mxu0 0.0
    %3605 = vmatpush1.msra.mxu0 0.0
    %3606 = vmatprep.subr.mxu0 0.0
    %3607 = vmatpush1.msra.mxu0 0.0
    %3608 = vmatprep.subr.mxu0 0.0
    %3609 = vmatpush1.msra.mxu0 0.0
    %3610 = vmatprep.subr.mxu0 0.0
    %3611 = vmatpush1.msra.mxu0 0.0
    %3612 = vmatprep.subr.mxu0 0.0
    %3613 = vmatpush1.msra.mxu0 0.0
    %3614 = vmatprep.subr.mxu0 0.0
    %3615 = vmatpush1.msra.mxu0 0.0
    %3616 = vmatprep.subr.mxu0 0.0
    %3617 = vmatpush1.msra.mxu0 0.0
    %3618 = vmatprep.subr.mxu0 0.0
    %3619 = vmatpush1.msra.mxu0 0.0
    %3620 = vmatprep.subr.mxu0 0.0
    %3621 = vmatpush1.msra.mxu0 0.0
    %3622 = vmatprep.subr.mxu0 0.0
    %3623 = vmatpush1.msra.mxu0 0.0
    %3624 = vmatprep.subr.mxu0 0.0
    %3625 = vmatpush1.msra.mxu0 0.0
    %3626 = vmatprep.subr.mxu0 0.0
    %3627 = vmatpush1.msra.mxu0 0.0
    %3628 = vmatprep.mubr.f32.mxu0 0.0
    %3629 = vmatmul.mubr.f32.gmra.mrb[0].mxu0 %v3557
    %v3630 = vpop.f32.mrb[0].mxu0
    %v3631 = vadd.f32 0.0, %v3630
    %v3632 = vpop.f32.mrb[0].mxu0
    %3633 = vmatprep.mubr.f32.mxu0 0.0
    %3634 = vmatmul.mubr.f32.gmra.mrb[0].mxu0 %v3560
    %v3635 = vpop.f32.mrb[0].mxu0
    %v3636 = vadd.f32 0.0, %v3635
    %v3637 = vpop.f32.mrb[0].mxu0
    %3638 = vdwg.mxu0
    %3639 = vrot.lane.b32.xlu0 %v2384, 64
    %v3640 = vpop.permute.xlu0 %3639
    %3641 = vrot.lane.b32.xlu0 %v2383, 64
    %v3642 = vpop.permute.xlu0 %3641
    %v3645 = vsel %vm3109, %v3279, 0
    %v3648 = vsel %vm3109, %v3280, 0
    %v3650 = vsel %vm2172, %v3642, 0
    %3652 = vmatprep.subr.mxu0 0.0
    %3653 = vmatpush1.msra.mxu0 %v3640
    %3654 = vmatprep.subr.mxu0 0.0
    %3655 = vmatpush1.msra.mxu0 %v3650
    %3656 = vmatprep.subr.mxu0 0.0
    %3657 = vmatpush1.msra.mxu0 0.0
    %3658 = vmatprep.subr.mxu0 0.0
    %3659 = vmatpush1.msra.mxu0 0.0
    %3660 = vmatprep.subr.mxu0 0.0
    %3661 = vmatpush1.msra.mxu0 0.0
    %3662 = vmatprep.subr.mxu0 0.0
    %3663 = vmatpush1.msra.mxu0 0.0
    %3664 = vmatprep.subr.mxu0 0.0
    %3665 = vmatpush1.msra.mxu0 0.0
    %3666 = vmatprep.subr.mxu0 0.0
    %3667 = vmatpush1.msra.mxu0 0.0
    %3668 = vmatprep.subr.mxu0 0.0
    %3669 = vmatpush1.msra.mxu0 0.0
    %3670 = vmatprep.subr.mxu0 0.0
    %3671 = vmatpush1.msra.mxu0 0.0
    %3672 = vmatprep.subr.mxu0 0.0
    %3673 = vmatpush1.msra.mxu0 0.0
    %3674 = vmatprep.subr.mxu0 0.0
    %3675 = vmatpush1.msra.mxu0 0.0
    %3676 = vmatprep.subr.mxu0 0.0
    %3677 = vmatpush1.msra.mxu0 0.0
    %3678 = vmatprep.subr.mxu0 0.0
    %3679 = vmatpush1.msra.mxu0 0.0
    %3680 = vmatprep.subr.mxu0 0.0
    %3681 = vmatpush1.msra.mxu0 0.0
    %3682 = vmatprep.subr.mxu0 0.0
    %3683 = vmatpush1.msra.mxu0 0.0
    %3684 = vmatprep.subr.mxu0 0.0
    %3685 = vmatpush1.msra.mxu0 0.0
    %3686 = vmatprep.subr.mxu0 0.0
    %3687 = vmatpush1.msra.mxu0 0.0
    %3688 = vmatprep.subr.mxu0 0.0
    %3689 = vmatpush1.msra.mxu0 0.0
    %3690 = vmatprep.subr.mxu0 0.0
    %3691 = vmatpush1.msra.mxu0 0.0
    %3692 = vmatprep.subr.mxu0 0.0
    %3693 = vmatpush1.msra.mxu0 0.0
    %3694 = vmatprep.subr.mxu0 0.0
    %3695 = vmatpush1.msra.mxu0 0.0
    %3696 = vmatprep.subr.mxu0 0.0
    %3697 = vmatpush1.msra.mxu0 0.0
    %3698 = vmatprep.subr.mxu0 0.0
    %3699 = vmatpush1.msra.mxu0 0.0
    %3700 = vmatprep.subr.mxu0 0.0
    %3701 = vmatpush1.msra.mxu0 0.0
    %3702 = vmatprep.subr.mxu0 0.0
    %3703 = vmatpush1.msra.mxu0 0.0
    %3704 = vmatprep.subr.mxu0 0.0
    %3705 = vmatpush1.msra.mxu0 0.0
    %3706 = vmatprep.subr.mxu0 0.0
    %3707 = vmatpush1.msra.mxu0 0.0
    %3708 = vmatprep.subr.mxu0 0.0
    %3709 = vmatpush1.msra.mxu0 0.0
    %3710 = vmatprep.subr.mxu0 0.0
    %3711 = vmatpush1.msra.mxu0 0.0
    %3712 = vmatprep.subr.mxu0 0.0
    %3713 = vmatpush1.msra.mxu0 0.0
    %3714 = vmatprep.subr.mxu0 0.0
    %3715 = vmatpush1.msra.mxu0 0.0
    %3716 = vmatprep.mubr.f32.mxu0 0.0
    %3717 = vmatmul.mubr.f32.gmra.mrb[0].mxu0 %v3645
    %v3718 = vpop.f32.mrb[0].mxu0
    %v3719 = vadd.f32 0.0, %v3718
    %v3720 = vpop.f32.mrb[0].mxu0
    %3721 = vmatprep.mubr.f32.mxu0 0.0
    %3722 = vmatmul.mubr.f32.gmra.mrb[0].mxu0 %v3648
    %v3723 = vpop.f32.mrb[0].mxu0
    %v3724 = vadd.f32 0.0, %v3723
    %v3725 = vpop.f32.mrb[0].mxu0
    %3726 = vdwg.mxu0
    %3727 = vrot.lane.b32.xlu0 %v2386, 64
    %v3728 = vpop.permute.xlu0 %3727
    %3729 = vrot.lane.b32.xlu0 %v2388, 64
    %v3730 = vpop.permute.xlu0 %3729
    %v3733 = vsel %vm3109, %v3281, 0
    %v3736 = vsel %vm3109, %v3282, 0
    %v3738 = vsel %vm2172, %v3730, 0
    %3740 = vmatprep.subr.mxu0 0.0
    %3741 = vmatpush1.msra.mxu0 %v3728
    %3742 = vmatprep.subr.mxu0 0.0
    %3743 = vmatpush1.msra.mxu0 %v3738
    %3744 = vmatprep.subr.mxu0 0.0
    %3745 = vmatpush1.msra.mxu0 0.0
    %3746 = vmatprep.subr.mxu0 0.0
    %3747 = vmatpush1.msra.mxu0 0.0
    %3748 = vmatprep.subr.mxu0 0.0
    %3749 = vmatpush1.msra.mxu0 0.0
    %3750 = vmatprep.subr.mxu0 0.0
    %3751 = vmatpush1.msra.mxu0 0.0
    %3752 = vmatprep.subr.mxu0 0.0
    %3753 = vmatpush1.msra.mxu0 0.0
    %3754 = vmatprep.subr.mxu0 0.0
    %3755 = vmatpush1.msra.mxu0 0.0
    %3756 = vmatprep.subr.mxu0 0.0
    %3757 = vmatpush1.msra.mxu0 0.0
    %3758 = vmatprep.subr.mxu0 0.0
    %3759 = vmatpush1.msra.mxu0 0.0
    %3760 = vmatprep.subr.mxu0 0.0
    %3761 = vmatpush1.msra.mxu0 0.0
    %3762 = vmatprep.subr.mxu0 0.0
    %3763 = vmatpush1.msra.mxu0 0.0
    %3764 = vmatprep.subr.mxu0 0.0
    %3765 = vmatpush1.msra.mxu0 0.0
    %3766 = vmatprep.subr.mxu0 0.0
    %3767 = vmatpush1.msra.mxu0 0.0
    %3768 = vmatprep.subr.mxu0 0.0
    %3769 = vmatpush1.msra.mxu0 0.0
    %3770 = vmatprep.subr.mxu0 0.0
    %3771 = vmatpush1.msra.mxu0 0.0
    %3772 = vmatprep.subr.mxu0 0.0
    %3773 = vmatpush1.msra.mxu0 0.0
    %3774 = vmatprep.subr.mxu0 0.0
    %3775 = vmatpush1.msra.mxu0 0.0
    %3776 = vmatprep.subr.mxu0 0.0
    %3777 = vmatpush1.msra.mxu0 0.0
    %3778 = vmatprep.subr.mxu0 0.0
    %3779 = vmatpush1.msra.mxu0 0.0
    %3780 = vmatprep.subr.mxu0 0.0
    %3781 = vmatpush1.msra.mxu0 0.0
    %3782 = vmatprep.subr.mxu0 0.0
    %3783 = vmatpush1.msra.mxu0 0.0
    %3784 = vmatprep.subr.mxu0 0.0
    %3785 = vmatpush1.msra.mxu0 0.0
    %3786 = vmatprep.subr.mxu0 0.0
    %3787 = vmatpush1.msra.mxu0 0.0
    %3788 = vmatprep.subr.mxu0 0.0
    %3789 = vmatpush1.msra.mxu0 0.0
    %3790 = vmatprep.subr.mxu0 0.0
    %3791 = vmatpush1.msra.mxu0 0.0
    %3792 = vmatprep.subr.mxu0 0.0
    %3793 = vmatpush1.msra.mxu0 0.0
    %3794 = vmatprep.subr.mxu0 0.0
    %3795 = vmatpush1.msra.mxu0 0.0
    %3796 = vmatprep.subr.mxu0 0.0
    %3797 = vmatpush1.msra.mxu0 0.0
    %3798 = vmatprep.subr.mxu0 0.0
    %3799 = vmatpush1.msra.mxu0 0.0
    %3800 = vmatprep.subr.mxu0 0.0
    %3801 = vmatpush1.msra.mxu0 0.0
    %3802 = vmatprep.subr.mxu0 0.0
    %3803 = vmatpush1.msra.mxu0 0.0
    %3804 = vmatprep.mubr.f32.mxu0 0.0
    %3805 = vmatmul.mubr.f32.gmra.mrb[0].mxu0 %v3733
    %v3806 = vpop.f32.mrb[0].mxu0
    %v3807 = vadd.f32 0.0, %v3806
    %v3808 = vpop.f32.mrb[0].mxu0
    %3809 = vmatprep.mubr.f32.mxu0 0.0
    %3810 = vmatmul.mubr.f32.gmra.mrb[0].mxu0 %v3736
    %v3811 = vpop.f32.mrb[0].mxu0
    %v3812 = vadd.f32 0.0, %v3811
    %v3813 = vpop.f32.mrb[0].mxu0
    %3814 = vdwg.mxu0
    %3815 = vrot.lane.b32.xlu0 %v2390, 64
    %v3816 = vpop.permute.xlu0 %3815
    %3817 = vrot.lane.b32.xlu0 %v2392, 64
    %v3818 = vpop.permute.xlu0 %3817
    %v3821 = vsel %vm3109, %v3283, 0
    %v3824 = vsel %vm3109, %v3284, 0
    %v3826 = vsel %vm2172, %v3818, 0
    %3828 = vmatprep.subr.mxu0 0.0
    %3829 = vmatpush1.msra.mxu0 %v3816
    %3830 = vmatprep.subr.mxu0 0.0
    %3831 = vmatpush1.msra.mxu0 %v3826
    %3832 = vmatprep.subr.mxu0 0.0
    %3833 = vmatpush1.msra.mxu0 0.0
    %3834 = vmatprep.subr.mxu0 0.0
    %3835 = vmatpush1.msra.mxu0 0.0
    %3836 = vmatprep.subr.mxu0 0.0
    %3837 = vmatpush1.msra.mxu0 0.0
    %3838 = vmatprep.subr.mxu0 0.0
    %3839 = vmatpush1.msra.mxu0 0.0
    %3840 = vmatprep.subr.mxu0 0.0
    %3841 = vmatpush1.msra.mxu0 0.0
    %3842 = vmatprep.subr.mxu0 0.0
    %3843 = vmatpush1.msra.mxu0 0.0
    %3844 = vmatprep.subr.mxu0 0.0
    %3845 = vmatpush1.msra.mxu0 0.0
    %3846 = vmatprep.subr.mxu0 0.0
    %3847 = vmatpush1.msra.mxu0 0.0
    %3848 = vmatprep.subr.mxu0 0.0
    %3849 = vmatpush1.msra.mxu0 0.0
    %3850 = vmatprep.subr.mxu0 0.0
    %3851 = vmatpush1.msra.mxu0 0.0
    %3852 = vmatprep.subr.mxu0 0.0
    %3853 = vmatpush1.msra.mxu0 0.0
    %3854 = vmatprep.subr.mxu0 0.0
    %3855 = vmatpush1.msra.mxu0 0.0
    %3856 = vmatprep.subr.mxu0 0.0
    %3857 = vmatpush1.msra.mxu0 0.0
    %3858 = vmatprep.subr.mxu0 0.0
    %3859 = vmatpush1.msra.mxu0 0.0
    %3860 = vmatprep.subr.mxu0 0.0
    %3861 = vmatpush1.msra.mxu0 0.0
    %3862 = vmatprep.subr.mxu0 0.0
    %3863 = vmatpush1.msra.mxu0 0.0
    %3864 = vmatprep.subr.mxu0 0.0
    %3865 = vmatpush1.msra.mxu0 0.0
    %3866 = vmatprep.subr.mxu0 0.0
    %3867 = vmatpush1.msra.mxu0 0.0
    %3868 = vmatprep.subr.mxu0 0.0
    %3869 = vmatpush1.msra.mxu0 0.0
    %3870 = vmatprep.subr.mxu0 0.0
    %3871 = vmatpush1.msra.mxu0 0.0
    %3872 = vmatprep.subr.mxu0 0.0
    %3873 = vmatpush1.msra.mxu0 0.0
    %3874 = vmatprep.subr.mxu0 0.0
    %3875 = vmatpush1.msra.mxu0 0.0
    %3876 = vmatprep.subr.mxu0 0.0
    %3877 = vmatpush1.msra.mxu0 0.0
    %3878 = vmatprep.subr.mxu0 0.0
    %3879 = vmatpush1.msra.mxu0 0.0
    %3880 = vmatprep.subr.mxu0 0.0
    %3881 = vmatpush1.msra.mxu0 0.0
    %3882 = vmatprep.subr.mxu0 0.0
    %3883 = vmatpush1.msra.mxu0 0.0
    %3884 = vmatprep.subr.mxu0 0.0
    %3885 = vmatpush1.msra.mxu0 0.0
    %3886 = vmatprep.subr.mxu0 0.0
    %3887 = vmatpush1.msra.mxu0 0.0
    %3888 = vmatprep.subr.mxu0 0.0
    %3889 = vmatpush1.msra.mxu0 0.0
    %3890 = vmatprep.subr.mxu0 0.0
    %3891 = vmatpush1.msra.mxu0 0.0
    %3892 = vmatprep.mubr.f32.mxu0 0.0
    %3893 = vmatmul.mubr.f32.gmra.mrb[0].mxu0 %v3821
    %v3894 = vpop.f32.mrb[0].mxu0
    %v3895 = vadd.f32 0.0, %v3894
    %v3896 = vpop.f32.mrb[0].mxu0
    %3897 = vmatprep.mubr.f32.mxu0 0.0
    %3898 = vmatmul.mubr.f32.gmra.mrb[0].mxu0 %v3824
    %v3899 = vpop.f32.mrb[0].mxu0
    %v3900 = vadd.f32 0.0, %v3899
    %v3901 = vpop.f32.mrb[0].mxu0
    %3902 = vdwg.mxu0
    %3903 = vrot.lane.b32.xlu0 %v2394, 64
    %v3904 = vpop.permute.xlu0 %3903
    %3905 = vrot.lane.b32.xlu0 %v2396, 64
    %v3906 = vpop.permute.xlu0 %3905
    %v3909 = vsel %vm3109, %v3285, 0
    %v3912 = vsel %vm3109, %v3286, 0
    %v3914 = vsel %vm2172, %v3906, 0
    %3916 = vmatprep.subr.mxu0 0.0
    %3917 = vmatpush1.msra.mxu0 %v3904
    %3918 = vmatprep.subr.mxu0 0.0
    %3919 = vmatpush1.msra.mxu0 %v3914
    %3920 = vmatprep.subr.mxu0 0.0
    %3921 = vmatpush1.msra.mxu0 0.0
    %3922 = vmatprep.subr.mxu0 0.0
    %3923 = vmatpush1.msra.mxu0 0.0
    %3924 = vmatprep.subr.mxu0 0.0
    %3925 = vmatpush1.msra.mxu0 0.0
    %3926 = vmatprep.subr.mxu0 0.0
    %3927 = vmatpush1.msra.mxu0 0.0
    %3928 = vmatprep.subr.mxu0 0.0
    %3929 = vmatpush1.msra.mxu0 0.0
    %3930 = vmatprep.subr.mxu0 0.0
    %3931 = vmatpush1.msra.mxu0 0.0
    %3932 = vmatprep.subr.mxu0 0.0
    %3933 = vmatpush1.msra.mxu0 0.0
    %3934 = vmatprep.subr.mxu0 0.0
    %3935 = vmatpush1.msra.mxu0 0.0
    %3936 = vmatprep.subr.mxu0 0.0
    %3937 = vmatpush1.msra.mxu0 0.0
    %3938 = vmatprep.subr.mxu0 0.0
    %3939 = vmatpush1.msra.mxu0 0.0
    %3940 = vmatprep.subr.mxu0 0.0
    %3941 = vmatpush1.msra.mxu0 0.0
    %3942 = vmatprep.subr.mxu0 0.0
    %3943 = vmatpush1.msra.mxu0 0.0
    %3944 = vmatprep.subr.mxu0 0.0
    %3945 = vmatpush1.msra.mxu0 0.0
    %3946 = vmatprep.subr.mxu0 0.0
    %3947 = vmatpush1.msra.mxu0 0.0
    %3948 = vmatprep.subr.mxu0 0.0
    %3949 = vmatpush1.msra.mxu0 0.0
    %3950 = vmatprep.subr.mxu0 0.0
    %3951 = vmatpush1.msra.mxu0 0.0
    %3952 = vmatprep.subr.mxu0 0.0
    %3953 = vmatpush1.msra.mxu0 0.0
    %3954 = vmatprep.subr.mxu0 0.0
    %3955 = vmatpush1.msra.mxu0 0.0
    %3956 = vmatprep.subr.mxu0 0.0
    %3957 = vmatpush1.msra.mxu0 0.0
    %3958 = vmatprep.subr.mxu0 0.0
    %3959 = vmatpush1.msra.mxu0 0.0
    %3960 = vmatprep.subr.mxu0 0.0
    %3961 = vmatpush1.msra.mxu0 0.0
    %3962 = vmatprep.subr.mxu0 0.0
    %3963 = vmatpush1.msra.mxu0 0.0
    %3964 = vmatprep.subr.mxu0 0.0
    %3965 = vmatpush1.msra.mxu0 0.0
    %3966 = vmatprep.subr.mxu0 0.0
    %3967 = vmatpush1.msra.mxu0 0.0
    %3968 = vmatprep.subr.mxu0 0.0
    %3969 = vmatpush1.msra.mxu0 0.0
    %3970 = vmatprep.subr.mxu0 0.0
    %3971 = vmatpush1.msra.mxu0 0.0
    %3972 = vmatprep.subr.mxu0 0.0
    %3973 = vmatpush1.msra.mxu0 0.0
    %3974 = vmatprep.subr.mxu0 0.0
    %3975 = vmatpush1.msra.mxu0 0.0
    %3976 = vmatprep.subr.mxu0 0.0
    %3977 = vmatpush1.msra.mxu0 0.0
    %3978 = vmatprep.subr.mxu0 0.0
    %3979 = vmatpush1.msra.mxu0 0.0
    %3980 = vmatprep.mubr.f32.mxu0 0.0
    %3981 = vmatmul.mubr.f32.gmra.mrb[0].mxu0 %v3909
    %v3982 = vpop.f32.mrb[0].mxu0
    %v3983 = vadd.f32 0.0, %v3982
    %v3984 = vpop.f32.mrb[0].mxu0
    %3985 = vmatprep.mubr.f32.mxu0 0.0
    %3986 = vmatmul.mubr.f32.gmra.mrb[0].mxu0 %v3912
    %v3987 = vpop.f32.mrb[0].mxu0
    %v3988 = vadd.f32 0.0, %v3987
    %v3989 = vpop.f32.mrb[0].mxu0
    %3990 = vdwg.mxu0
    %3993 = vrot.lane.b32.xlu0 %v3455, 8
    %v3994 = vpop.permute.xlu0 %3993
    %3995 = vrot.lane.b32.xlu0 %v3460, 8
    %v3996 = vpop.permute.xlu0 %3995
    %4001 = vrot.lane.b32.xlu0 %v3543, 16
    %v4002 = vpop.permute.xlu0 %4001
    %4003 = vrot.lane.b32.xlu0 %v3548, 16
    %v4004 = vpop.permute.xlu0 %4003
    %4009 = vrot.lane.b32.xlu0 %v3631, 24
    %v4010 = vpop.permute.xlu0 %4009
    %4011 = vrot.lane.b32.xlu0 %v3636, 24
    %v4012 = vpop.permute.xlu0 %4011
    %v4015 = vsel %vm423, %v3367, %v3994
    %v4016 = vsel %vm423, %v3372, %v3996
    %v4017 = vsel %vm156, %v4015, %v4002
    %v4018 = vsel %vm156, %v4016, %v4004
    %v4019 = vsel %vm1748, %v4017, %v4010
    %v4020 = vsel %vm1748, %v4018, %v4012
    %4023 = vrot.lane.b32.xlu0 %v3807, 8
    %v4024 = vpop.permute.xlu0 %4023
    %4025 = vrot.lane.b32.xlu0 %v3812, 8
    %v4026 = vpop.permute.xlu0 %4025
    %4031 = vrot.lane.b32.xlu0 %v3895, 16
    %v4032 = vpop.permute.xlu0 %4031
    %4033 = vrot.lane.b32.xlu0 %v3900, 16
    %v4034 = vpop.permute.xlu0 %4033
    %4039 = vrot.lane.b32.xlu0 %v3983, 24
    %v4040 = vpop.permute.xlu0 %4039
    %4041 = vrot.lane.b32.xlu0 %v3988, 24
    %v4042 = vpop.permute.xlu0 %4041
    %v4045 = vsel %vm423, %v3719, %v4024
    %v4046 = vsel %vm423, %v3724, %v4026
    %v4047 = vsel %vm156, %v4045, %v4032
    %v4048 = vsel %vm156, %v4046, %v4034
    %v4049 = vsel %vm1748, %v4047, %v4040
    %v4050 = vsel %vm1748, %v4048, %v4042
    %v4053 = vrot.slane %v4049, 6
    %v4054 = vrot.slane %v4050, 6
    %v4055 = vsel %vm2172, %v4053, %v4054
    %v4057 = vsel %vm2172, %v4020, %v4053
    %v4059 = vlaneseq
    %v4060 = vshrl.u32 %v4059, 7
    %v4061 = vsub.s32 0, %v4060
    %v4062 = vrot.slane %v2186, %v4061
    %v4065 = vsel %vm276, %v4019, 0
    %v4068 = vsel %vm276, %v4057, 0
    %v4070 = vsel %vm276, %v4055, 0
    %4072 = vmatprep.subr.mxu0 0.0
    %4073 = vmatpush1.msra.mxu0 %v2182
    %4074 = vmatprep.subr.mxu0 0.0
    %4075 = vmatpush1.msra.mxu0 %v2183
    %4076 = vmatprep.subr.mxu0 0.0
    %4077 = vmatpush1.msra.mxu0 %v2184
    %4078 = vmatprep.subr.mxu0 0.0
    %4079 = vmatpush1.msra.mxu0 %v2185
    %4080 = vmatprep.subr.mxu0 0.0
    %4081 = vmatpush1.msra.mxu0 0.0
    %4082 = vmatprep.subr.mxu0 0.0
    %4083 = vmatpush1.msra.mxu0 0.0
    %4084 = vmatprep.subr.mxu0 0.0
    %4085 = vmatpush1.msra.mxu0 0.0
    %4086 = vmatprep.subr.mxu0 0.0
    %4087 = vmatpush1.msra.mxu0 0.0
    %4088 = vmatprep.subr.mxu0 0.0
    %4089 = vmatpush1.msra.mxu0 0.0
    %4090 = vmatprep.subr.mxu0 0.0
    %4091 = vmatpush1.msra.mxu0 0.0
    %4092 = vmatprep.subr.mxu0 0.0
    %4093 = vmatpush1.msra.mxu0 0.0
    %4094 = vmatprep.subr.mxu0 0.0
    %4095 = vmatpush1.msra.mxu0 0.0
    %4096 = vmatprep.subr.mxu0 0.0
    %4097 = vmatpush1.msra.mxu0 0.0
    %4098 = vmatprep.subr.mxu0 0.0
    %4099 = vmatpush1.msra.mxu0 0.0
    %4100 = vmatprep.subr.mxu0 0.0
    %4101 = vmatpush1.msra.mxu0 0.0
    %4102 = vmatprep.subr.mxu0 0.0
    %4103 = vmatpush1.msra.mxu0 0.0
    %4104 = vmatprep.subr.mxu0 0.0
    %4105 = vmatpush1.msra.mxu0 0.0
    %4106 = vmatprep.subr.mxu0 0.0
    %4107 = vmatpush1.msra.mxu0 0.0
    %4108 = vmatprep.subr.mxu0 0.0
    %4109 = vmatpush1.msra.mxu0 0.0
    %4110 = vmatprep.subr.mxu0 0.0
    %4111 = vmatpush1.msra.mxu0 0.0
    %4112 = vmatprep.subr.mxu0 0.0
    %4113 = vmatpush1.msra.mxu0 0.0
    %4114 = vmatprep.subr.mxu0 0.0
    %4115 = vmatpush1.msra.mxu0 0.0
    %4116 = vmatprep.subr.mxu0 0.0
    %4117 = vmatpush1.msra.mxu0 0.0
    %4118 = vmatprep.subr.mxu0 0.0
    %4119 = vmatpush1.msra.mxu0 0.0
    %4120 = vmatprep.subr.mxu0 0.0
    %4121 = vmatpush1.msra.mxu0 0.0
    %4122 = vmatprep.subr.mxu0 0.0
    %4123 = vmatpush1.msra.mxu0 0.0
    %4124 = vmatprep.subr.mxu0 0.0
    %4125 = vmatpush1.msra.mxu0 0.0
    %4126 = vmatprep.subr.mxu0 0.0
    %4127 = vmatpush1.msra.mxu0 0.0
    %4128 = vmatprep.subr.mxu0 0.0
    %4129 = vmatpush1.msra.mxu0 0.0
    %4130 = vmatprep.subr.mxu0 0.0
    %4131 = vmatpush1.msra.mxu0 0.0
    %4132 = vmatprep.subr.mxu0 0.0
    %4133 = vmatpush1.msra.mxu0 0.0
    %4134 = vmatprep.subr.mxu0 0.0
    %4135 = vmatpush1.msra.mxu0 0.0
    %4136 = vmatprep.mubr.f32.mxu0 0.0
    %4137 = vmatmul.mubr.f32.gmra.mrb[0].mxu0 %v4065
    %v4138 = vpop.f32.mrb[0].mxu0
    %v4139 = vadd.f32 %v4062, %v4138
    %v4140 = vpop.f32.mrb[0].mxu0
    %4141 = vmatprep.mubr.f32.mxu0 0.0
    %4142 = vmatmul.mubr.f32.gmra.mrb[0].mxu0 %v4068
    %v4143 = vpop.f32.mrb[0].mxu0
    %v4144 = vadd.f32 %v4062, %v4143
    %v4145 = vpop.f32.mrb[0].mxu0
    %4146 = vmatprep.mubr.f32.mxu0 0.0
    %4147 = vmatmul.mubr.f32.gmra.mrb[0].mxu0 %v4070
    %v4148 = vpop.f32.mrb[0].mxu0
    %v4149 = vadd.f32 %v4062, %v4148
    %v4150 = vpop.f32.mrb[0].mxu0
    %4151 = vdwg.mxu0
    %v4152 = vadd.f32 %v2173, %v4139
    %v4153 = vadd.f32 %v2176, %v4144
    %v4154 = vadd.f32 %v2170, %v4149
    %v4155 = vsel %vm276, %v4152, 0.0
    %4156 = vadd.xlane.f32.xlu0 %v4155
    %v4157 = vpop.xlane.xlu0 %4156
    %v4158 = vsel %vm276, %v4153, 0.0
    %4159 = vadd.xlane.f32.xlu0 %v4158
    %v4160 = vpop.xlane.xlu0 %4159
    %v4161 = vsel %vm2219, %v4154, 0.0
    %4162 = vadd.xlane.f32.xlu0 %v4161
    %v4163 = vpop.xlane.xlu0 %4162
    %v4164 = vmul.f32 %v4157, %v283
    %v4165 = vmul.f32 %v4160, %v283
    %v4166 = vmul.f32 %v4163, %v283
    %v4167 = vsub.f32 %v4152, %v4164
    %v4168 = vsub.f32 %v4153, %v4165
    %v4169 = vsub.f32 %v4154, %v4166
    %v4170 = vmul.f32 %v4167, %v4167
    %v4171 = vmul.f32 %v4168, %v4168
    %v4172 = vmul.f32 %v4169, %v4169
    %v4173 = vsel %vm276, %v4170, 0.0
    %4174 = vadd.xlane.f32.xlu0 %v4173
    %v4175 = vpop.xlane.xlu0 %4174
    %v4176 = vsel %vm276, %v4171, 0.0
    %4177 = vadd.xlane.f32.xlu0 %v4176
    %v4178 = vpop.xlane.xlu0 %4177
    %v4179 = vsel %vm2219, %v4172, 0.0
    %4180 = vadd.xlane.f32.xlu0 %v4179
    %v4181 = vpop.xlane.xlu0 %4180
    %v4182 = vmul.f32 %v4175, %v283
    %v4183 = vmul.f32 %v4178, %v283
    %v4184 = vmul.f32 %v4181, %v283
    %v4185 = vadd.f32 %v4182, 1e-05
    %v4186 = vadd.f32 %v4183, 1e-05
    %v4187 = vadd.f32 %v4184, 1e-05
    %v4188 = vrsqrt.pop %v4185
    %v4189 = vrsqrt.pop %v4186
    %v4190 = vrsqrt.pop %v4187
    %v4191 = vmul.f32 %v4167, %v4188
    %v4192 = vmul.f32 %v4168, %v4189
    %v4193 = vmul.f32 %v4169, %v4190
    %v4195 = vlaneseq
    %v4196 = vshrl.u32 %v4195, 7
    %v4197 = vsub.s32 0, %v4196
    %v4198 = vrot.slane %v2189, %v4197
    %v4200 = vmul.f32 %v4191, %v4198
    %v4201 = vmul.f32 %v4192, %v4198
    %v4202 = vmul.f32 %v4193, %v4198
    %v4204 = vlaneseq
    %v4205 = vshrl.u32 %v4204, 7
    %v4206 = vsub.s32 0, %v4205
    %v4207 = vrot.slane %v2190, %v4206
    %v4209 = vadd.f32 %v4200, %v4207
    %v4210 = vadd.f32 %v4201, %v4207
    %v4211 = vadd.f32 %v4202, %v4207
    %v4213 = vlaneseq
    %v4214 = vshrl.u32 %v4213, 7
    %v4215 = vsub.s32 0, %v4214
    %v4216 = vrot.slane %v2195, %v4215
    %v4219 = vsel %vm276, %v4209, 0
    %v4222 = vsel %vm276, %v4210, 0
    %v4225 = vsel %vm276, %v4211, 0
    %4227 = vmatprep.subr.mxu0 0.0
    %4228 = vmatpush1.msra.mxu0 %v2191
    %4229 = vmatprep.subr.mxu0 0.0
    %4230 = vmatpush1.msra.mxu0 %v2192
    %4231 = vmatprep.subr.mxu0 0.0
    %4232 = vmatpush1.msra.mxu0 %v2193
    %4233 = vmatprep.subr.mxu0 0.0
    %4234 = vmatpush1.msra.mxu0 %v2194
    %4235 = vmatprep.subr.mxu0 0.0
    %4236 = vmatpush1.msra.mxu0 0.0
    %4237 = vmatprep.subr.mxu0 0.0
    %4238 = vmatpush1.msra.mxu0 0.0
    %4239 = vmatprep.subr.mxu0 0.0
    %4240 = vmatpush1.msra.mxu0 0.0
    %4241 = vmatprep.subr.mxu0 0.0
    %4242 = vmatpush1.msra.mxu0 0.0
    %4243 = vmatprep.subr.mxu0 0.0
    %4244 = vmatpush1.msra.mxu0 0.0
    %4245 = vmatprep.subr.mxu0 0.0
    %4246 = vmatpush1.msra.mxu0 0.0
    %4247 = vmatprep.subr.mxu0 0.0
    %4248 = vmatpush1.msra.mxu0 0.0
    %4249 = vmatprep.subr.mxu0 0.0
    %4250 = vmatpush1.msra.mxu0 0.0
    %4251 = vmatprep.subr.mxu0 0.0
    %4252 = vmatpush1.msra.mxu0 0.0
    %4253 = vmatprep.subr.mxu0 0.0
    %4254 = vmatpush1.msra.mxu0 0.0
    %4255 = vmatprep.subr.mxu0 0.0
    %4256 = vmatpush1.msra.mxu0 0.0
    %4257 = vmatprep.subr.mxu0 0.0
    %4258 = vmatpush1.msra.mxu0 0.0
    %4259 = vmatprep.subr.mxu0 0.0
    %4260 = vmatpush1.msra.mxu0 0.0
    %4261 = vmatprep.subr.mxu0 0.0
    %4262 = vmatpush1.msra.mxu0 0.0
    %4263 = vmatprep.subr.mxu0 0.0
    %4264 = vmatpush1.msra.mxu0 0.0
    %4265 = vmatprep.subr.mxu0 0.0
    %4266 = vmatpush1.msra.mxu0 0.0
    %4267 = vmatprep.subr.mxu0 0.0
    %4268 = vmatpush1.msra.mxu0 0.0
    %4269 = vmatprep.subr.mxu0 0.0
    %4270 = vmatpush1.msra.mxu0 0.0
    %4271 = vmatprep.subr.mxu0 0.0
    %4272 = vmatpush1.msra.mxu0 0.0
    %4273 = vmatprep.subr.mxu0 0.0
    %4274 = vmatpush1.msra.mxu0 0.0
    %4275 = vmatprep.subr.mxu0 0.0
    %4276 = vmatpush1.msra.mxu0 0.0
    %4277 = vmatprep.subr.mxu0 0.0
    %4278 = vmatpush1.msra.mxu0 0.0
    %4279 = vmatprep.subr.mxu0 0.0
    %4280 = vmatpush1.msra.mxu0 0.0
    %4281 = vmatprep.subr.mxu0 0.0
    %4282 = vmatpush1.msra.mxu0 0.0
    %4283 = vmatprep.subr.mxu0 0.0
    %4284 = vmatpush1.msra.mxu0 0.0
    %4285 = vmatprep.subr.mxu0 0.0
    %4286 = vmatpush1.msra.mxu0 0.0
    %4287 = vmatprep.subr.mxu0 0.0
    %4288 = vmatpush1.msra.mxu0 0.0
    %4289 = vmatprep.subr.mxu0 0.0
    %4290 = vmatpush1.msra.mxu0 0.0
    %4291 = vmatprep.mubr.f32.mxu0 0.0
    %4292 = vmatmul.mubr.f32.gmra.mrb[0].mxu0 %v4219
    %v4293 = vpop.f32.mrb[0].mxu0
    %v4294 = vadd.f32 %v4216, %v4293
    %v4295 = vpop.f32.mrb[0].mxu0
    %4296 = vmatprep.mubr.f32.mxu0 0.0
    %4297 = vmatmul.mubr.f32.gmra.mrb[0].mxu0 %v4222
    %v4298 = vpop.f32.mrb[0].mxu0
    %v4299 = vadd.f32 %v4216, %v4298
    %v4300 = vpop.f32.mrb[0].mxu0
    %4301 = vmatprep.mubr.f32.mxu0 0.0
    %4302 = vmatmul.mubr.f32.gmra.mrb[0].mxu0 %v4225
    %v4303 = vpop.f32.mrb[0].mxu0
    %v4304 = vadd.f32 %v4216, %v4303
    %v4305 = vpop.f32.mrb[0].mxu0
    %4306 = vdwg.mxu0
    %v4307 = vmax.f32 %v4294, 0.0
    %v4308 = vmax.f32 %v4299, 0.0
    %v4309 = vmax.f32 %v4304, 0.0
    %v4311 = vlaneseq
    %v4312 = vshrl.u32 %v4311, 7
    %v4313 = vsub.s32 0, %v4312
    %v4314 = vrot.slane %v2212, %v4313
    %4316 = vmatprep.subr.mxu0 0.0
    %4317 = vmatpush1.msra.mxu0 %v2196
    %4318 = vmatprep.subr.mxu0 0.0
    %4319 = vmatpush1.msra.mxu0 %v2197
    %4320 = vmatprep.subr.mxu0 0.0
    %4321 = vmatpush1.msra.mxu0 %v2198
    %4322 = vmatprep.subr.mxu0 0.0
    %4323 = vmatpush1.msra.mxu0 %v2199
    %4324 = vmatprep.subr.mxu0 0.0
    %4325 = vmatpush1.msra.mxu0 %v2200
    %4326 = vmatprep.subr.mxu0 0.0
    %4327 = vmatpush1.msra.mxu0 %v2201
    %4328 = vmatprep.subr.mxu0 0.0
    %4329 = vmatpush1.msra.mxu0 %v2202
    %4330 = vmatprep.subr.mxu0 0.0
    %4331 = vmatpush1.msra.mxu0 %v2203
    %4332 = vmatprep.subr.mxu0 0.0
    %4333 = vmatpush1.msra.mxu0 %v2204
    %4334 = vmatprep.subr.mxu0 0.0
    %4335 = vmatpush1.msra.mxu0 %v2205
    %4336 = vmatprep.subr.mxu0 0.0
    %4337 = vmatpush1.msra.mxu0 %v2206
    %4338 = vmatprep.subr.mxu0 0.0
    %4339 = vmatpush1.msra.mxu0 %v2207
    %4340 = vmatprep.subr.mxu0 0.0
    %4341 = vmatpush1.msra.mxu0 %v2208
    %4342 = vmatprep.subr.mxu0 0.0
    %4343 = vmatpush1.msra.mxu0 %v2209
    %4344 = vmatprep.subr.mxu0 0.0
    %4345 = vmatpush1.msra.mxu0 %v2210
    %4346 = vmatprep.subr.mxu0 0.0
    %4347 = vmatpush1.msra.mxu0 %v2211
    %4348 = vmatprep.subr.mxu0 0.0
    %4349 = vmatpush1.msra.mxu0 0.0
    %4350 = vmatprep.subr.mxu0 0.0
    %4351 = vmatpush1.msra.mxu0 0.0
    %4352 = vmatprep.subr.mxu0 0.0
    %4353 = vmatpush1.msra.mxu0 0.0
    %4354 = vmatprep.subr.mxu0 0.0
    %4355 = vmatpush1.msra.mxu0 0.0
    %4356 = vmatprep.subr.mxu0 0.0
    %4357 = vmatpush1.msra.mxu0 0.0
    %4358 = vmatprep.subr.mxu0 0.0
    %4359 = vmatpush1.msra.mxu0 0.0
    %4360 = vmatprep.subr.mxu0 0.0
    %4361 = vmatpush1.msra.mxu0 0.0
    %4362 = vmatprep.subr.mxu0 0.0
    %4363 = vmatpush1.msra.mxu0 0.0
    %4364 = vmatprep.subr.mxu0 0.0
    %4365 = vmatpush1.msra.mxu0 0.0
    %4366 = vmatprep.subr.mxu0 0.0
    %4367 = vmatpush1.msra.mxu0 0.0
    %4368 = vmatprep.subr.mxu0 0.0
    %4369 = vmatpush1.msra.mxu0 0.0
    %4370 = vmatprep.subr.mxu0 0.0
    %4371 = vmatpush1.msra.mxu0 0.0
    %4372 = vmatprep.subr.mxu0 0.0
    %4373 = vmatpush1.msra.mxu0 0.0
    %4374 = vmatprep.subr.mxu0 0.0
    %4375 = vmatpush1.msra.mxu0 0.0
    %4376 = vmatprep.subr.mxu0 0.0
    %4377 = vmatpush1.msra.mxu0 0.0
    %4378 = vmatprep.subr.mxu0 0.0
    %4379 = vmatpush1.msra.mxu0 0.0
    %4380 = vmatprep.mubr.f32.mxu0 0.0
    %4381 = vmatmul.mubr.f32.gmra.mrb[0].mxu0 %v4307
    %v4382 = vpop.f32.mrb[0].mxu0
    %v4383 = vadd.f32 %v4314, %v4382
    %v4384 = vpop.f32.mrb[0].mxu0
    %4385 = vmatprep.mubr.f32.mxu0 0.0
    %4386 = vmatmul.mubr.f32.gmra.mrb[0].mxu0 %v4308
    %v4387 = vpop.f32.mrb[0].mxu0
    %v4388 = vadd.f32 %v4314, %v4387
    %v4389 = vpop.f32.mrb[0].mxu0
    %4390 = vmatprep.mubr.f32.mxu0 0.0
    %4391 = vmatmul.mubr.f32.gmra.mrb[0].mxu0 %v4309
    %v4392 = vpop.f32.mrb[0].mxu0
    %v4393 = vpop.f32.mrb[0].mxu0
    %4394 = vdwg.mxu0
    %v4395 = vadd.f32 %v4152, %v4383
    %v4396 = vadd.f32 %v4153, %v4388
    %v4398 = vrot.slane %v4395, 1
    %4399 = vrot.lane.b32.xlu0 %v4398, 32
    %v4400 = vpop.permute.xlu0 %4399
    %v4402 = vsel %vm276, %v4395, %v4400
    %v4404 = vrot.slane %v4396, 1
    %4405 = vrot.lane.b32.xlu0 %v4404, 32
    %v4406 = vpop.permute.xlu0 %4405
    %v4408 = vsel %vm276, %v4396, %v4406
    %v4410 = vrot.slane %v4408, 1
    %vm4412 = vcmask 1040384
    %v4413 = vsel %vm4412, %v4402, %v4410
    %v4414 = vld [vmem:[%s63] sm:$0xff]
    %v4415 = vld [vmem:[%s63 + $0x8] sm:$0xff]
    %v4416 = vld [vmem:[%s63 + $0x10] sm:$0xff]
    %v4417 = vld [vmem:[%s63 + $0x18] sm:$0xff]
    %v4418 = vld [vmem:[%s63 + $0x20] sm:$0xff]
    %v4419 = vld [vmem:[%s63 + $0x28] sm:$0xff]
    %v4420 = vld [vmem:[%s63 + $0x30] sm:$0xff]
    %v4421 = vld [vmem:[%s63 + $0x38] sm:$0xff]
    %v4422 = vld [vmem:[%s65] sm:$0x1]
    %v4424 = vlaneseq
    %v4425 = vshrl.u32 %v4424, 7
    %v4426 = vsub.s32 0, %v4425
    %v4427 = vrot.slane %v4422, %v4426
    %vm4429 = vcmask 523264
    %v4431 = vsel %vm4429, %v4413, 0
    %4433 = vmatprep.subr.mxu0 0.0
    %4434 = vmatpush1.msra.mxu0 %v4414
    %4435 = vmatprep.subr.mxu0 0.0
    %4436 = vmatpush1.msra.mxu0 %v4415
    %4437 = vmatprep.subr.mxu0 0.0
    %4438 = vmatpush1.msra.mxu0 %v4416
    %4439 = vmatprep.subr.mxu0 0.0
    %4440 = vmatpush1.msra.mxu0 %v4417
    %4441 = vmatprep.subr.mxu0 0.0
    %4442 = vmatpush1.msra.mxu0 %v4418
    %4443 = vmatprep.subr.mxu0 0.0
    %4444 = vmatpush1.msra.mxu0 %v4419
    %4445 = vmatprep.subr.mxu0 0.0
    %4446 = vmatpush1.msra.mxu0 %v4420
    %4447 = vmatprep.subr.mxu0 0.0
    %4448 = vmatpush1.msra.mxu0 %v4421
    %4449 = vmatprep.subr.mxu0 0.0
    %4450 = vmatpush1.msra.mxu0 0.0
    %4451 = vmatprep.subr.mxu0 0.0
    %4452 = vmatpush1.msra.mxu0 0.0
    %4453 = vmatprep.subr.mxu0 0.0
    %4454 = vmatpush1.msra.mxu0 0.0
    %4455 = vmatprep.subr.mxu0 0.0
    %4456 = vmatpush1.msra.mxu0 0.0
    %4457 = vmatprep.subr.mxu0 0.0
    %4458 = vmatpush1.msra.mxu0 0.0
    %4459 = vmatprep.subr.mxu0 0.0
    %4460 = vmatpush1.msra.mxu0 0.0
    %4461 = vmatprep.subr.mxu0 0.0
    %4462 = vmatpush1.msra.mxu0 0.0
    %4463 = vmatprep.subr.mxu0 0.0
    %4464 = vmatpush1.msra.mxu0 0.0
    %4465 = vmatprep.subr.mxu0 0.0
    %4466 = vmatpush1.msra.mxu0 0.0
    %4467 = vmatprep.subr.mxu0 0.0
    %4468 = vmatpush1.msra.mxu0 0.0
    %4469 = vmatprep.subr.mxu0 0.0
    %4470 = vmatpush1.msra.mxu0 0.0
    %4471 = vmatprep.subr.mxu0 0.0
    %4472 = vmatpush1.msra.mxu0 0.0
    %4473 = vmatprep.subr.mxu0 0.0
    %4474 = vmatpush1.msra.mxu0 0.0
    %4475 = vmatprep.subr.mxu0 0.0
    %4476 = vmatpush1.msra.mxu0 0.0
    %4477 = vmatprep.subr.mxu0 0.0
    %4478 = vmatpush1.msra.mxu0 0.0
    %4479 = vmatprep.subr.mxu0 0.0
    %4480 = vmatpush1.msra.mxu0 0.0
    %4481 = vmatprep.subr.mxu0 0.0
    %4482 = vmatpush1.msra.mxu0 0.0
    %4483 = vmatprep.subr.mxu0 0.0
    %4484 = vmatpush1.msra.mxu0 0.0
    %4485 = vmatprep.subr.mxu0 0.0
    %4486 = vmatpush1.msra.mxu0 0.0
    %4487 = vmatprep.subr.mxu0 0.0
    %4488 = vmatpush1.msra.mxu0 0.0
    %4489 = vmatprep.subr.mxu0 0.0
    %4490 = vmatpush1.msra.mxu0 0.0
    %4491 = vmatprep.subr.mxu0 0.0
    %4492 = vmatpush1.msra.mxu0 0.0
    %4493 = vmatprep.subr.mxu0 0.0
    %4494 = vmatpush1.msra.mxu0 0.0
    %4495 = vmatprep.subr.mxu0 0.0
    %4496 = vmatpush1.msra.mxu0 0.0
    %4497 = vmatprep.mubr.f32.mxu0 0.0
    %4498 = vmatmul.mubr.f32.gmra.mrb[0].mxu0 %v4431
    %v4499 = vpop.f32.mrb[0].mxu0
    %v4500 = vadd.f32 %v4427, %v4499
    %v4501 = vpop.f32.mrb[0].mxu0
    %4502 = vdwg.mxu0
    %v4503 = vmul.f32 %v4500, 0.5
    %v4504 = vmul.f32 %v4503, 1.442695
    %v4505 = vpow.pop %v4504
    %v4506 = vld [vmem:[%s67] sm:$0x3]
    %4508 = vrot.lane.b32.xlu0 %v4506, 8
    %v4509 = vpop.permute.xlu0 %4508
    %v4511 = vmul.f32 %v4505, %v4509
    %4513 = vrot.lane.b32.xlu0 %v4511, 120
    %v4514 = vpop.permute.xlu0 %4513
    %v4516 = vadd.f32 %v4500, %v4514
    %4518 = vrot.lane.b32.xlu0 %v4500, 8
    %v4519 = vpop.permute.xlu0 %4518
    %4522 = vrot.lane.b32.xlu0 %v4505, 8
    %v4523 = vpop.permute.xlu0 %4522
    %v4525 = vsel %vm423, %v4516, %v4519
    %v4526 = vsel %vm156, %v4525, %v4523
    %v4527 = vsel %vm1748, %v4526, 0.0
    %4528 = vst [vmem:[#allocation2] sm:$0x3] %v4527
    // Predicated region
    $region138: #{tpu_custom_call.1} parent=1 // pred_check
      _
    $region139: #{tpu_custom_call.1} parent=1 // pred_check_branch
      %4530 = sbr.rel (0) target = $region141
    $region140: #{tpu_custom_call.1} parent=1 // pred_region
      %s4532 = ssub.s32 32, 32
      %4533 = vsyncadd [#allocation3], %s4532
      %s4535 = sshll.u32 [#allocation2], 4
      %s4536 = int_to_ptr.vmem [resolvable:$true] %s4535
      %4538 = dma.vmem_to_hbm [thread:$0]  %s4536, 32, %s69, [#allocation3]
    $region141: #{tpu_custom_call.1} parent=1 // pred_fallthru
      _
    // Predicated region
    $region142: #{tpu_custom_call.1} parent=1 // pred_check
      _
    $region143: #{tpu_custom_call.1} parent=1 // pred_check_branch
      %4540 = sbr.rel (0) target = $region145
    $region144: #{tpu_custom_call.1} parent=1 // pred_region
      %4541 = dma.done [#allocation3], 32
    $region145: #{tpu_custom_call.1} parent=1 // pred_fallthru
      _
    %4542 = vsyncpa [#allocation3], 1

</llo_original>
